<compile_context>
chip_gen: v6e
topology: v6e:2x2x1
jax: 0.10.0
libtpu: 0.0.40
codegen_flags: <defaults>
</compile_context>

<pallas_src>
import functools
import math

import jax
import jax.numpy as jnp
from jax import lax
from jax.experimental import pallas as pl
from jax.experimental.pallas import tpu as pltpu

_VMEM_LIMIT = 48 * 1024 * 1024   # explicit scoped-VMEM limit (safe on v5e/v6e/v7x)


# ----------------------------------------------------------------------------
# Constant attention helper matrices (computed once in JAX, outside kernels)
# ----------------------------------------------------------------------------

def _attn_constants(n_heads, s_k, embed_dim):
    """rep:  (H*s_k, s_k)  0/1  row-replication matrix (applied on the MXU)
       mbd:  (H*s_k, E)    0/1  head block-diagonal selection mask
       bsum: (H*s_k, H)    0/1  per-head block-sum / broadcast matrix"""
    hs = n_heads * s_k
    d = embed_dim // n_heads
    row = jnp.arange(hs)
    head = row // s_k
    rep = (row[:, None] % s_k == jnp.arange(s_k)[None, :]).astype(jnp.bfloat16)
    mbd = (head[:, None] == (jnp.arange(embed_dim)[None, :] // d)).astype(jnp.float32)
    bsum = (head[:, None] == jnp.arange(n_heads)[None, :]).astype(jnp.float32)
    return rep, mbd, bsum


def _causal_mask_bd(s_q, n_heads, s_k):
    """cmask[i, h*s_k + j] = 1.0 if j <= i else 0.0 (torch masked_fill(mask==0, 0.))."""
    col = jnp.arange(n_heads * s_k) % s_k
    return (col[None, :] <= jnp.arange(s_q)[:, None]).astype(jnp.float32)


# ----------------------------------------------------------------------------
# In-kernel building blocks (2-D (seq, embed) tiles)
# ----------------------------------------------------------------------------

def _layer_norm(x, g, b, eps):
    mu = jnp.mean(x, axis=-1, keepdims=True)
    var = jnp.mean(jnp.square(x - mu), axis=-1, keepdims=True)
    return (x - mu) * lax.rsqrt(var + eps) * g + b


def _ffn(x, w1, b1, w2, b2):
    h = jnp.dot(x.astype(jnp.bfloat16), w1,
                preferred_element_type=jnp.float32) + b1
    h = jnp.maximum(h, 0.0)
    return jnp.dot(h.astype(jnp.bfloat16), w2,
                   preferred_element_type=jnp.float32) + b2


def _mha_block(xq16, xkv16, wq, wk, wv, wo, bo, rep, mbd, bsum, cmask, scale):
    """Multi-head attention on 2-D bf16 tiles, all constants hoisted.

    Heads are batched via a block-diagonal key/value layout built with one
    MXU row-replication matmul (rep @ k) and a precomputed 0/1 mask.  No
    iota / where / transpose / concat inside the kernel.  Mask semantics
    match the torch reference exactly:
      masked_fill(mask == 0, 0.0)  ->  / sqrt(d)  ->  softmax (full key axis).
    """
    q = jnp.dot(xq16, wq, preferred_element_type=jnp.float32)        # (sq, E)
    k = jnp.dot(xkv16, wk, preferred_element_type=jnp.float32)       # (sk, E)
    v = jnp.dot(xkv16, wv, preferred_element_type=jnp.float32)       # (sk, E)

    # Replicate rows per head on the MXU, then mask to block-diagonal.
    k_bd = jnp.dot(rep, k.astype(jnp.bfloat16),
                   preferred_element_type=jnp.float32) * mbd         # (hs, E)
    v_bd = jnp.dot(rep, v.astype(jnp.bfloat16),
                   preferred_element_type=jnp.float32) * mbd         # (hs, E)

    # scores[i, h*sk+j] = q_h[i] . k_h[j]   ('nt' matmul -> no explicit k.T)
    scores = lax.dot_general(q.astype(jnp.bfloat16), k_bd.astype(jnp.bfloat16),
                             (((1,), (1,)), ((), ())),
                             preferred_element_type=jnp.float32)     # (sq, hs)
    if cmask is not None:
        scores = scores * cmask               # masked_fill(mask == 0, 0.0)
    scores = scores * scale

    # Blocked softmax over each sk-wide head block (shift-invariant row max).
    m = jnp.max(scores, axis=-1, keepdims=True)
    ex = jnp.exp(scores - m)
    dh = jnp.dot(ex, bsum, preferred_element_type=jnp.float32)       # (sq, H)
    denom = lax.dot_general(dh, bsum, (((1,), (1,)), ((), ())),
                            preferred_element_type=jnp.float32)      # (sq, hs)
    p = ex * pl.reciprocal(denom, approx=True)

    ctx = jnp.dot(p.astype(jnp.bfloat16), v_bd.astype(jnp.bfloat16),
                  preferred_element_type=jnp.float32)                # (sq, E)
    return jnp.dot(ctx.astype(jnp.bfloat16), wo,
                   preferred_element_type=jnp.float32) + bo


# ----------------------------------------------------------------------------
# Fused stack kernels (grid = (num_layers,); whole batch per step)
# ----------------------------------------------------------------------------

def _encoder_stack_kernel(x_ref, qkv_ref, ow_ref, ob_ref, lng_ref, lnb_ref,
                          w1_ref, b1_ref, w2_ref, b2_ref, fg_ref, fb_ref,
                          rep_ref, mbd_ref, bsum_ref,
                          o_ref, act_ref, *, n_heads, batch):
    layer = pl.program_id(0)

    @pl.when(layer == 0)
    def _():
        act_ref[...] = x_ref[...]

    # Per-layer weights / constants loaded once per grid step (not per batch).
    wq, wk, wv = qkv_ref[0, 0], qkv_ref[0, 1], qkv_ref[0, 2]
    wo, ob = ow_ref[0], ob_ref[0]
    lng, lnb = lng_ref[0], lnb_ref[0]
    w1, b1, w2, b2 = w1_ref[0], b1_ref[0], w2_ref[0], b2_ref[0]
    rep, mbd, bsum = rep_ref[...], mbd_ref[...], bsum_ref[...]

    e = act_ref.shape[-1]
    scale = 1.0 / math.sqrt(e // n_heads)

    for b in range(batch):
        x = act_ref[b]                                     # (S, E) f32
        x16 = x.astype(jnp.bfloat16)
        attn = _mha_block(x16, x16, wq, wk, wv, wo, ob,
                          rep, mbd, bsum, None, scale)
        y1 = _layer_norm(attn + x, lng[0:1], lnb[0:1], 1e-5)
        ff = _ffn(y1, w1, b1, w2, b2)
        y2 = _layer_norm(ff + y1, lng[1:2], lnb[1:2], 1e-5)
        act_ref[b] = y2

    @pl.when(layer == pl.num_programs(0) - 1)
    def _():
        # final encoder LayerNorm (eps = 1e-6)
        # NOTE: with E < 128 the store is lane-masked; production E >= 128
        # keeps this lane-dense.
        for b in range(batch):
            o_ref[b] = _layer_norm(act_ref[b], fg_ref[...], fb_ref[...],
                                   1e-6).astype(o_ref.dtype)


def _decoder_stack_kernel(x_ref, enc_ref, sa_qkv_ref, sa_ow_ref, sa_ob_ref,
                          ca_qkv_ref, ca_ow_ref, ca_ob_ref, lng_ref, lnb_ref,
                          w1_ref, b1_ref, w2_ref, b2_ref,
                          rep_sa_ref, mbd_sa_ref, bsum_sa_ref, cmask_ref,
                          rep_ca_ref, mbd_ca_ref, bsum_ca_ref,
                          o_ref, act_ref, *, n_heads, batch):
    layer = pl.program_id(0)

    @pl.when(layer == 0)
    def _():
        act_ref[...] = x_ref[...]

    sa_wq, sa_wk, sa_wv = sa_qkv_ref[0, 0], sa_qkv_ref[0, 1], sa_qkv_ref[0, 2]
    sa_wo, sa_ob = sa_ow_ref[0], sa_ob_ref[0]
    ca_wq, ca_wk, ca_wv = ca_qkv_ref[0, 0], ca_qkv_ref[0, 1], ca_qkv_ref[0, 2]
    ca_wo, ca_ob = ca_ow_ref[0], ca_ob_ref[0]
    lng, lnb = lng_ref[0], lnb_ref[0]
    w1, b1, w2, b2 = w1_ref[0], b1_ref[0], w2_ref[0], b2_ref[0]
    rep_sa, mbd_sa, bsum_sa = rep_sa_ref[...], mbd_sa_ref[...], bsum_sa_ref[...]
    cmask = cmask_ref[...]
    rep_ca, mbd_ca, bsum_ca = rep_ca_ref[...], mbd_ca_ref[...], bsum_ca_ref[...]

    e = act_ref.shape[-1]
    scale = 1.0 / math.sqrt(e // n_heads)

    for b in range(batch):
        x = act_ref[b]                                     # (Sd, E) f32
        x16 = x.astype(jnp.bfloat16)
        enc16 = enc_ref[b]                                 # (Se, E) bf16

        # DecoderBlock: causal self-attention + residual + LayerNorm
        sa = _mha_block(x16, x16, sa_wq, sa_wk, sa_wv, sa_wo, sa_ob,
                        rep_sa, mbd_sa, bsum_sa, cmask, scale)
        q = _layer_norm(sa + x, lng[0:1], lnb[0:1], 1e-5)

        # TransformerBlock: cross attention (key = value = encoder output)
        ca = _mha_block(q.astype(jnp.bfloat16), enc16, ca_wq, ca_wk, ca_wv,
                        ca_wo, ca_ob, rep_ca, mbd_ca, bsum_ca, None, scale)
        y1 = _layer_norm(ca + q, lng[1:2], lnb[1:2], 1e-5)
        ff = _ffn(y1, w1, b1, w2, b2)
        y2 = _layer_norm(ff + y1, lng[2:3], lnb[2:3], 1e-5)
        act_ref[b] = y2

    @pl.when(layer == pl.num_programs(0) - 1)
    def _():
        o_ref[...] = act_ref[...]


def _fc_out_kernel(x_ref, w_ref, b_ref, o_ref):
    logits = jnp.dot(x_ref[...].astype(jnp.bfloat16), w_ref[...],
                     preferred_element_type=jnp.float32) + b_ref[...]
    o_ref[...] = logits.astype(o_ref.dtype)


# ----------------------------------------------------------------------------
# pallas_call wrappers
# ----------------------------------------------------------------------------

def encoder_stack(x_emb, p, *, n_heads):
    B, S, E = x_emb.shape
    L = p["qkv"].shape[0]
    Hff = p["ff_w1"].shape[-1]
    HS = n_heads * S
    rep, mbd, bsum = _attn_constants(n_heads, S, E)
    kernel = functools.partial(_encoder_stack_kernel, n_heads=n_heads, batch=B)
    return pl.pallas_call(
        kernel,
        out_shape=jax.ShapeDtypeStruct((B, S, E), jnp.float32),
        grid=(L,),
        in_specs=[
            pl.BlockSpec((B, S, E), lambda l: (0, 0, 0)),        # x (constant idx)
            pl.BlockSpec((1, 3, E, E), lambda l: (l, 0, 0, 0)),  # qkv
            pl.BlockSpec((1, E, E), lambda l: (l, 0, 0)),        # out_w
            pl.BlockSpec((1, 1, E), lambda l: (l, 0, 0)),        # out_b
            pl.BlockSpec((1, 2, E), lambda l: (l, 0, 0)),        # ln_g
            pl.BlockSpec((1, 2, E), lambda l: (l, 0, 0)),        # ln_b
            pl.BlockSpec((1, E, Hff), lambda l: (l, 0, 0)),      # ff_w1
            pl.BlockSpec((1, 1, Hff), lambda l: (l, 0, 0)),      # ff_b1
            pl.BlockSpec((1, Hff, E), lambda l: (l, 0, 0)),      # ff_w2
            pl.BlockSpec((1, 1, E), lambda l: (l, 0, 0)),        # ff_b2
            pl.BlockSpec((1, E), lambda l: (0, 0)),              # final_g
            pl.BlockSpec((1, E), lambda l: (0, 0)),              # final_b
            pl.BlockSpec((HS, S), lambda l: (0, 0)),             # rep
            pl.BlockSpec((HS, E), lambda l: (0, 0)),             # mbd
            pl.BlockSpec((HS, n_heads), lambda l: (0, 0)),       # bsum
        ],
        out_specs=pl.BlockSpec((B, S, E), lambda l: (0, 0, 0)),
        scratch_shapes=[pltpu.VMEM((B, S, E), jnp.float32)],
        compiler_params=pltpu.CompilerParams(
            dimension_semantics=("arbitrary",),
            vmem_limit_bytes=_VMEM_LIMIT),
    )(x_emb, p["qkv"], p["out_w"], p["out_b"], p["ln_g"], p["ln_b"],
      p["ff_w1"], p["ff_b1"], p["ff_w2"], p["ff_b2"],
      p["final_g"], p["final_b"], rep, mbd, bsum)


def decoder_stack(x_emb, enc_ebd_bf16, p, *, n_heads):
    B, S, E = x_emb.shape
    Se = enc_ebd_bf16.shape[1]
    L = p["sa_qkv"].shape[0]
    Hff = p["ff_w1"].shape[-1]
    HSd = n_heads * S
    HSe = n_heads * Se
    rep_sa, mbd_sa, bsum_sa = _attn_constants(n_heads, S, E)
    cmask = _causal_mask_bd(S, n_heads, S)
    rep_ca, mbd_ca, bsum_ca = _attn_constants(n_heads, Se, E)
    kernel = functools.partial(_decoder_stack_kernel, n_heads=n_heads, batch=B)
    return pl.pallas_call(
        kernel,
        out_shape=jax.ShapeDtypeStruct((B, S, E), jnp.float32),
        grid=(L,),
        in_specs=[
            pl.BlockSpec((B, S, E), lambda l: (0, 0, 0)),        # x (constant idx)
            pl.BlockSpec((B, Se, E), lambda l: (0, 0, 0)),       # enc (bf16, const)
            pl.BlockSpec((1, 3, E, E), lambda l: (l, 0, 0, 0)),  # sa_qkv
            pl.BlockSpec((1, E, E), lambda l: (l, 0, 0)),        # sa_ow
            pl.BlockSpec((1, 1, E), lambda l: (l, 0, 0)),        # sa_ob
            pl.BlockSpec((1, 3, E, E), lambda l: (l, 0, 0, 0)),  # ca_qkv
            pl.BlockSpec((1, E, E), lambda l: (l, 0, 0)),        # ca_ow
            pl.BlockSpec((1, 1, E), lambda l: (l, 0, 0)),        # ca_ob
            pl.BlockSpec((1, 3, E), lambda l: (l, 0, 0)),        # ln_g
            pl.BlockSpec((1, 3, E), lambda l: (l, 0, 0)),        # ln_b
            pl.BlockSpec((1, E, Hff), lambda l: (l, 0, 0)),      # ff_w1
            pl.BlockSpec((1, 1, Hff), lambda l: (l, 0, 0)),      # ff_b1
            pl.BlockSpec((1, Hff, E), lambda l: (l, 0, 0)),      # ff_w2
            pl.BlockSpec((1, 1, E), lambda l: (l, 0, 0)),        # ff_b2
            pl.BlockSpec((HSd, S), lambda l: (0, 0)),            # rep (self-attn)
            pl.BlockSpec((HSd, E), lambda l: (0, 0)),            # mbd (self-attn)
            pl.BlockSpec((HSd, n_heads), lambda l: (0, 0)),      # bsum (self-attn)
            pl.BlockSpec((S, HSd), lambda l: (0, 0)),            # causal mask
            pl.BlockSpec((HSe, Se), lambda l: (0, 0)),           # rep (cross-attn)
            pl.BlockSpec((HSe, E), lambda l: (0, 0)),            # mbd (cross-attn)
            pl.BlockSpec((HSe, n_heads), lambda l: (0, 0)),      # bsum (cross-attn)
        ],
        out_specs=pl.BlockSpec((B, S, E), lambda l: (0, 0, 0)),
        scratch_shapes=[pltpu.VMEM((B, S, E), jnp.float32)],
        compiler_params=pltpu.CompilerParams(
            dimension_semantics=("arbitrary",),
            vmem_limit_bytes=_VMEM_LIMIT),
    )(x_emb, enc_ebd_bf16, p["sa_qkv"], p["sa_ow"], p["sa_ob"],
      p["ca_qkv"], p["ca_ow"], p["ca_ob"], p["ln_g"], p["ln_b"],
      p["ff_w1"], p["ff_b1"], p["ff_w2"], p["ff_b2"],
      rep_sa, mbd_sa, bsum_sa, cmask, rep_ca, mbd_ca, bsum_ca)


def fc_out(x2d, w, b):
    """Vocab projection, separate from the layer loop; tiled lane-dense over Vp."""
    M, E = x2d.shape
    Vp = w.shape[1]
    tv = Vp
    for cand in (1024, 512, 256, 128):
        if Vp >= cand and Vp % cand == 0:
            tv = cand
            break
    return pl.pallas_call(
        _fc_out_kernel,
        out_shape=jax.ShapeDtypeStruct((M, Vp), jnp.float32),
        grid=(Vp // tv,),
        in_specs=[
            pl.BlockSpec((M, E), lambda j: (0, 0)),
            pl.BlockSpec((E, tv), lambda j: (0, j)),
            pl.BlockSpec((1, tv), lambda j: (0, j)),
        ],
        out_specs=pl.BlockSpec((M, tv), lambda j: (0, j)),
        compiler_params=pltpu.CompilerParams(
            dimension_semantics=("parallel",),
            vmem_limit_bytes=_VMEM_LIMIT),
    )(x2d, w, b)


# ----------------------------------------------------------------------------
# Parameter construction (deterministic, mirrors the module __init__ shapes)
# ----------------------------------------------------------------------------

def _linear(key, out_dim, in_dim, bias=True):
    kw, kb = jax.random.split(key)
    bound = 1.0 / math.sqrt(in_dim)
    w = jax.random.uniform(kw, (out_dim, in_dim), jnp.float32, -bound, bound)
    b = (jax.random.uniform(kb, (out_dim,), jnp.float32, -bound, bound)
         if bias else None)
    return w, b


def _mha_weights(key, embed_dim, n_heads):
    """Shared per-head (d, d) Q/K/V linears folded into block-diagonal (E, E)."""
    d = embed_dim // n_heads
    k1, k2, k3, k4 = jax.random.split(key, 4)
    wq, _ = _linear(k1, d, d, bias=False)
    wk, _ = _linear(k2, d, d, bias=False)
    wv, _ = _linear(k3, d, d, bias=False)
    wo, bo = _linear(k4, embed_dim, embed_dim)
    eye = jnp.eye(n_heads, dtype=jnp.float32)
    qkv = jnp.stack([jnp.kron(eye, wq.T), jnp.kron(eye, wk.T),
                     jnp.kron(eye, wv.T)])                 # (3, E, E)
    return qkv, wo.T, bo.reshape(1, embed_dim)


def _positional_encoding(max_seq_len, embed_dim):
    pe = [[0.0] * embed_dim for _ in range(max_seq_len)]
    for pos in range(max_seq_len):
        for i in range(0, embed_dim, 2):
            pe[pos][i] = math.sin(pos / 10000 ** (2 * i / embed_dim))
            pe[pos][i + 1] = math.cos(pos / 10000 ** (2 * (i + 1) / embed_dim))
    return jnp.array(pe, dtype=jnp.float32)


def _encoder_params(key, signal_size, patch_size, embed_dim, num_layers,
                    expansion_factor, n_heads):
    E = embed_dim
    Hff = expansion_factor * E
    n_patches = signal_size // patch_size
    keys = jax.random.split(key, num_layers + 1)
    kw, kb = jax.random.split(keys[-1])
    bound = 1.0 / math.sqrt(patch_size)          # Conv1d fan_in = in_chans*kernel
    conv_w = jax.random.uniform(kw, (E, patch_size), jnp.float32, -bound, bound)
    conv_b = jax.random.uniform(kb, (E,), jnp.float32, -bound, bound)

    qkvs, ows, obs, w1s, b1s, w2s, b2s = [], [], [], [], [], [], []
    for i in range(num_layers):
        k_a, k_f1, k_f2 = jax.random.split(keys[i], 3)
        qkv, ow, ob = _mha_weights(k_a, E, n_heads)
        w1, b1 = _linear(k_f1, Hff, E)
        w2, b2 = _linear(k_f2, E, Hff)
        qkvs.append(qkv); ows.append(ow); obs.append(ob)
        w1s.append(w1.T); b1s.append(b1.reshape(1, Hff))
        w2s.append(w2.T); b2s.append(b2.reshape(1, E))

    L = num_layers
    return {
        "proj_w_t": conv_w.T,                               # (patch, E)
        "proj_b": conv_b,
        "cls_token": jnp.zeros((1, 1, E), jnp.float32),
        "pos_embed": jnp.zeros((1, 1 + n_patches, E), jnp.float32),
        "qkv": jnp.stack(qkvs).astype(jnp.bfloat16),        # (L, 3, E, E)
        "out_w": jnp.stack(ows).astype(jnp.bfloat16),       # (L, E, E)
        "out_b": jnp.stack(obs),                            # (L, 1, E)
        "ln_g": jnp.ones((L, 2, E), jnp.float32),
        "ln_b": jnp.zeros((L, 2, E), jnp.float32),
        "ff_w1": jnp.stack(w1s).astype(jnp.bfloat16),       # (L, E, Hff)
        "ff_b1": jnp.stack(b1s),
        "ff_w2": jnp.stack(w2s).astype(jnp.bfloat16),       # (L, Hff, E)
        "ff_b2": jnp.stack(b2s),
        "final_g": jnp.ones((1, E), jnp.float32),
        "final_b": jnp.zeros((1, E), jnp.float32),
    }


def _decoder_params(key, vocab, embed_dim, max_seq_len, num_layers,
                    expansion_factor, n_heads):
    E = embed_dim
    Hff = expansion_factor * E
    v_pad = ((vocab + 127) // 128) * 128
    keys = jax.random.split(key, num_layers + 2)
    word_emb = jax.random.normal(keys[-1], (vocab, E), jnp.float32)
    fc_w, fc_b = _linear(keys[-2], vocab, E)
    fc_w_t = jnp.zeros((E, v_pad), jnp.float32).at[:, :vocab].set(fc_w.T)
    fc_b_p = jnp.zeros((1, v_pad), jnp.float32).at[:, :vocab].set(
        fc_b.reshape(1, vocab))

    sa_qkv, sa_ow, sa_ob = [], [], []
    ca_qkv, ca_ow, ca_ob = [], [], []
    w1s, b1s, w2s, b2s = [], [], [], []
    for i in range(num_layers):
        k_sa, k_ca, k_f1, k_f2 = jax.random.split(keys[i], 4)
        qkv, ow, ob = _mha_weights(k_sa, E, n_heads)
        sa_qkv.append(qkv); sa_ow.append(ow); sa_ob.append(ob)
        qkv, ow, ob = _mha_weights(k_ca, E, n_heads)
        ca_qkv.append(qkv); ca_ow.append(ow); ca_ob.append(ob)
        w1, b1 = _linear(k_f1, Hff, E)
        w2, b2 = _linear(k_f2, E, Hff)
        w1s.append(w1.T); b1s.append(b1.reshape(1, Hff))
        w2s.append(w2.T); b2s.append(b2.reshape(1, E))

    L = num_layers
    return {
        "word_embedding": word_emb,
        "pe": _positional_encoding(max_seq_len, E),
        "sa_qkv": jnp.stack(sa_qkv).astype(jnp.bfloat16),
        "sa_ow": jnp.stack(sa_ow).astype(jnp.bfloat16),
        "sa_ob": jnp.stack(sa_ob),
        "ca_qkv": jnp.stack(ca_qkv).astype(jnp.bfloat16),
        "ca_ow": jnp.stack(ca_ow).astype(jnp.bfloat16),
        "ca_ob": jnp.stack(ca_ob),
        "ln_g": jnp.ones((L, 3, E), jnp.float32),
        "ln_b": jnp.zeros((L, 3, E), jnp.float32),
        "ff_w1": jnp.stack(w1s).astype(jnp.bfloat16),
        "ff_b1": jnp.stack(b1s),
        "ff_w2": jnp.stack(w2s).astype(jnp.bfloat16),
        "ff_b2": jnp.stack(b2s),
        "fc_w": fc_w_t.astype(jnp.bfloat16),                # (E, V_pad)
        "fc_b": fc_b_p,                                     # (1, V_pad)
    }


# ----------------------------------------------------------------------------
# Full FCGTransformer forward (Pallas on the hot paths, plain-JAX glue)
# ----------------------------------------------------------------------------

def fcg_transformer_forward(params, src, trg, *, n_heads, tgt_vocab):
    enc_p, dec_p = params["encoder"], params["decoder"]
    E = dec_p["word_embedding"].shape[1]

    # ---- encoder front-end ----
    # TODO(synk): Conv1d patch-embed + cls/pos add kept as plain-JAX glue
    # (one-off strided conv == reshape + matmul; not a hot path).
    B = src.shape[0]
    patch = enc_p["proj_w_t"].shape[0]
    n_patches = src.shape[-1] // patch
    patches = src.reshape(B, n_patches, patch)              # in_chans = 1
    emb = jnp.einsum("bnp,pe->bne", patches, enc_p["proj_w_t"]) + enc_p["proj_b"]
    cls = jnp.broadcast_to(enc_p["cls_token"], (B, 1, E))
    x_enc = jnp.concatenate([cls, emb], axis=1) + enc_p["pos_embed"]
    # pos_drop is identity in eval mode

    enc_ebd = encoder_stack(x_enc, enc_p, n_heads=n_heads)

    # ---- decoder front-end ----
    # TODO(synk): nn.Embedding gather kept in plain JAX (data-dependent gather).
    S = trg.shape[1]
    x = jnp.take(dec_p["word_embedding"], trg, axis=0)
    x = x * jnp.float32(math.sqrt(E)) + dec_p["pe"][None, :S, :]
    # decoder dropout is identity in eval mode

    # Encoder output is only a K/V source in cross-attention -> pass as bf16.
    dec_out = decoder_stack(x, enc_ebd.astype(jnp.bfloat16), dec_p,
                            n_heads=n_heads)                # (B, S, E)

    # ---- vocab projection (separate kernel, lane-dense padded vocab) ----
    logits2d = fc_out(dec_out.reshape(B * S, E), dec_p["fc_w"], dec_p["fc_b"])
    return logits2d.reshape(B, S, -1)[..., :tgt_vocab]      # (B, S, V)


# ----------------------------------------------------------------------------
# Demo
# ----------------------------------------------------------------------------

if __name__ == "__main__":
    EMBED, N_HEADS, NUM_LAYERS, EXPANSION = 32, 8, 2, 4
    SRC_VOCAB = 16        # doubles as patch_size in the reference constructor
    TGT_VOCAB = 16
    SEQ_LEN = 64          # doubles as encoder signal_size
    TRG_LEN = 8
    BATCH = 2

    root = jax.random.PRNGKey(0)
    k_enc, k_dec, k_src, k_trg = jax.random.split(root, 4)

    params = {
        "encoder": _encoder_params(k_enc, SEQ_LEN, SRC_VOCAB, EMBED,
                                   NUM_LAYERS, EXPANSION, N_HEADS),
        "decoder": _decoder_params(k_dec, TGT_VOCAB, EMBED, SEQ_LEN,
                                   NUM_LAYERS, EXPANSION, N_HEADS),
    }

    src = jax.random.normal(k_src, (BATCH, 1, SEQ_LEN), jnp.float32)
    trg = jax.random.randint(k_trg, (BATCH, TRG_LEN), 0, TGT_VOCAB,
                             dtype=jnp.int32)

    out = fcg_transformer_forward(params, src, trg,
                                  n_heads=N_HEADS, tgt_vocab=TGT_VOCAB)
    out = jax.block_until_ready(out)

    assert out.shape == (BATCH, TRG_LEN, TGT_VOCAB)
    assert bool(jnp.isfinite(out).all())
    print("KERNEL_OK")
</pallas_src>

<mosaic_0001>
module attributes {stable_mosaic.version = 11 : i64} {
  func.func @_encoder_stack_kernel(%arg0: i32, %arg1: memref<2x5x32xf32, #tpu.memory_space<vmem>>, %arg2: memref<1x3x32x32xbf16, #tpu.memory_space<vmem>>, %arg3: memref<1x32x32xbf16, #tpu.memory_space<vmem>>, %arg4: memref<1x1x32xf32, #tpu.memory_space<vmem>>, %arg5: memref<1x2x32xf32, #tpu.memory_space<vmem>>, %arg6: memref<1x2x32xf32, #tpu.memory_space<vmem>>, %arg7: memref<1x32x128xbf16, #tpu.memory_space<vmem>>, %arg8: memref<1x1x128xf32, #tpu.memory_space<vmem>>, %arg9: memref<1x128x32xbf16, #tpu.memory_space<vmem>>, %arg10: memref<1x1x32xf32, #tpu.memory_space<vmem>>, %arg11: memref<1x32xf32, #tpu.memory_space<vmem>>, %arg12: memref<1x32xf32, #tpu.memory_space<vmem>>, %arg13: memref<40x5xbf16, #tpu.memory_space<vmem>>, %arg14: memref<40x32xf32, #tpu.memory_space<vmem>>, %arg15: memref<40x8xf32, #tpu.memory_space<vmem>>, %arg16: memref<2x5x32xf32, #tpu.memory_space<vmem>>, %arg17: memref<2x5x32xf32, #tpu.memory_space<vmem>>) attributes {dimension_semantics = [#tpu.dimension_semantics<arbitrary>], iteration_bounds = array<i64: 2>, scalar_prefetch = 0 : i64, scratch_operands = 1 : i64, tpu.core_type = #tpu.core_type<tc>, window_params = [{pipeline_mode = #tpu.pipeline_mode<synchronous>, transform_indices = @transform_0, window_bounds = array<i64: 2, 5, 32>}, {transform_indices = @transform_1, window_bounds = array<i64: 1, 3, 32, 32>}, {transform_indices = @transform_2, window_bounds = array<i64: 1, 32, 32>}, {transform_indices = @transform_3, window_bounds = array<i64: 1, 1, 32>}, {transform_indices = @transform_4, window_bounds = array<i64: 1, 2, 32>}, {transform_indices = @transform_5, window_bounds = array<i64: 1, 2, 32>}, {transform_indices = @transform_6, window_bounds = array<i64: 1, 32, 128>}, {transform_indices = @transform_7, window_bounds = array<i64: 1, 1, 128>}, {transform_indices = @transform_8, window_bounds = array<i64: 1, 128, 32>}, {transform_indices = @transform_9, window_bounds = array<i64: 1, 1, 32>}, {pipeline_mode = #tpu.pipeline_mode<synchronous>, transform_indices = @transform_10, window_bounds = array<i64: 1, 32>}, {pipeline_mode = #tpu.pipeline_mode<synchronous>, transform_indices = @transform_11, window_bounds = array<i64: 1, 32>}, {pipeline_mode = #tpu.pipeline_mode<synchronous>, transform_indices = @transform_12, window_bounds = array<i64: 40, 5>}, {pipeline_mode = #tpu.pipeline_mode<synchronous>, transform_indices = @transform_13, window_bounds = array<i64: 40, 32>}, {pipeline_mode = #tpu.pipeline_mode<synchronous>, transform_indices = @transform_14, window_bounds = array<i64: 40, 8>}, {pipeline_mode = #tpu.pipeline_mode<synchronous>, transform_indices = @transform_15, window_bounds = array<i64: 2, 5, 32>}]} {
    %c0_i32 = arith.constant 0 : i32
    %0 = arith.cmpi eq, %arg0, %c0_i32 : i32
    %1 = arith.extui %0 : i1 to i32
    %c0_i32_0 = arith.constant 0 : i32
    %2 = arith.cmpi ne, %1, %c0_i32_0 : i32
    scf.if %2 {
      %c0_102 = arith.constant 0 : index
      %c0_103 = arith.constant 0 : index
      %c0_104 = arith.constant 0 : index
      %223 = vector.load %arg1[%c0_102, %c0_103, %c0_104] : memref<2x5x32xf32, #tpu.memory_space<vmem>>, vector<2x5x32xf32>
      %c0_105 = arith.constant 0 : index
      %c0_106 = arith.constant 0 : index
      %c0_107 = arith.constant 0 : index
      %224 = vector.load %arg17[%c0_105, %c0_106, %c0_107] : memref<2x5x32xf32, #tpu.memory_space<vmem>>, vector<2x5x32xf32>
      tpu.vector_store %arg17[%c0_105, %c0_106, %c0_107], %223 {strides = array<i32>} : memref<2x5x32xf32, #tpu.memory_space<vmem>>, vector<2x5x32xf32>,
    } else {
    }
    %c0 = arith.constant 0 : index
    %c0_1 = arith.constant 0 : index
    %c0_2 = arith.constant 0 : index
    %c0_3 = arith.constant 0 : index
    %3 = vector.load %arg2[%c0, %c0_1, %c0_2, %c0_3] : memref<1x3x32x32xbf16, #tpu.memory_space<vmem>>, vector<1x1x32x32xbf16>
    %4 = vector.shape_cast %3 : vector<1x1x32x32xbf16> to vector<32x32xbf16>
    %c0_4 = arith.constant 0 : index
    %c1 = arith.constant 1 : index
    %c0_5 = arith.constant 0 : index
    %c0_6 = arith.constant 0 : index
    %5 = vector.load %arg2[%c0_4, %c1, %c0_5, %c0_6] : memref<1x3x32x32xbf16, #tpu.memory_space<vmem>>, vector<1x1x32x32xbf16>
    %6 = vector.shape_cast %5 : vector<1x1x32x32xbf16> to vector<32x32xbf16>
    %c0_7 = arith.constant 0 : index
    %c2 = arith.constant 2 : index
    %c0_8 = arith.constant 0 : index
    %c0_9 = arith.constant 0 : index
    %7 = vector.load %arg2[%c0_7, %c2, %c0_8, %c0_9] : memref<1x3x32x32xbf16, #tpu.memory_space<vmem>>, vector<1x1x32x32xbf16>
    %8 = vector.shape_cast %7 : vector<1x1x32x32xbf16> to vector<32x32xbf16>
    %c0_10 = arith.constant 0 : index
    %c0_11 = arith.constant 0 : index
    %c0_12 = arith.constant 0 : index
    %9 = vector.load %arg3[%c0_10, %c0_11, %c0_12] : memref<1x32x32xbf16, #tpu.memory_space<vmem>>, vector<1x32x32xbf16>
    %10 = vector.shape_cast %9 : vector<1x32x32xbf16> to vector<32x32xbf16>
    %c0_13 = arith.constant 0 : index
    %c0_14 = arith.constant 0 : index
    %c0_15 = arith.constant 0 : index
    %11 = vector.load %arg4[%c0_13, %c0_14, %c0_15] : memref<1x1x32xf32, #tpu.memory_space<vmem>>, vector<1x1x32xf32>
    %12 = vector.shape_cast %11 : vector<1x1x32xf32> to vector<1x32xf32>
    %c0_16 = arith.constant 0 : index
    %c0_17 = arith.constant 0 : index
    %c0_18 = arith.constant 0 : index
    %13 = vector.load %arg5[%c0_16, %c0_17, %c0_18] : memref<1x2x32xf32, #tpu.memory_space<vmem>>, vector<1x2x32xf32>
    %14 = vector.shape_cast %13 : vector<1x2x32xf32> to vector<2x32xf32>
    %c0_19 = arith.constant 0 : index
    %c0_20 = arith.constant 0 : index
    %c0_21 = arith.constant 0 : index
    %15 = vector.load %arg6[%c0_19, %c0_20, %c0_21] : memref<1x2x32xf32, #tpu.memory_space<vmem>>, vector<1x2x32xf32>
    %16 = vector.shape_cast %15 : vector<1x2x32xf32> to vector<2x32xf32>
    %c0_22 = arith.constant 0 : index
    %c0_23 = arith.constant 0 : index
    %c0_24 = arith.constant 0 : index
    %17 = vector.load %arg7[%c0_22, %c0_23, %c0_24] : memref<1x32x128xbf16, #tpu.memory_space<vmem>>, vector<1x32x128xbf16>
    %18 = vector.shape_cast %17 : vector<1x32x128xbf16> to vector<32x128xbf16>
    %c0_25 = arith.constant 0 : index
    %c0_26 = arith.constant 0 : index
    %c0_27 = arith.constant 0 : index
    %19 = vector.load %arg8[%c0_25, %c0_26, %c0_27] : memref<1x1x128xf32, #tpu.memory_space<vmem>>, vector<1x1x128xf32>
    %20 = vector.shape_cast %19 : vector<1x1x128xf32> to vector<1x128xf32>
    %c0_28 = arith.constant 0 : index
    %c0_29 = arith.constant 0 : index
    %c0_30 = arith.constant 0 : index
    %21 = vector.load %arg9[%c0_28, %c0_29, %c0_30] : memref<1x128x32xbf16, #tpu.memory_space<vmem>>, vector<1x128x32xbf16>
    %22 = vector.shape_cast %21 : vector<1x128x32xbf16> to vector<128x32xbf16>
    %c0_31 = arith.constant 0 : index
    %c0_32 = arith.constant 0 : index
    %c0_33 = arith.constant 0 : index
    %23 = vector.load %arg10[%c0_31, %c0_32, %c0_33] : memref<1x1x32xf32, #tpu.memory_space<vmem>>, vector<1x1x32xf32>
    %24 = vector.shape_cast %23 : vector<1x1x32xf32> to vector<1x32xf32>
    %c0_34 = arith.constant 0 : index
    %c0_35 = arith.constant 0 : index
    %25 = vector.load %arg13[%c0_34, %c0_35] : memref<40x5xbf16, #tpu.memory_space<vmem>>, vector<40x5xbf16>
    %c0_36 = arith.constant 0 : index
    %c0_37 = arith.constant 0 : index
    %26 = vector.load %arg14[%c0_36, %c0_37] : memref<40x32xf32, #tpu.memory_space<vmem>>, vector<40x32xf32>
    %c0_38 = arith.constant 0 : index
    %c0_39 = arith.constant 0 : index
    %27 = vector.load %arg15[%c0_38, %c0_39] : memref<40x8xf32, #tpu.memory_space<vmem>>, vector<40x8xf32>
    %c0_40 = arith.constant 0 : index
    %c0_41 = arith.constant 0 : index
    %c0_42 = arith.constant 0 : index
    %28 = vector.load %arg17[%c0_40, %c0_41, %c0_42] : memref<2x5x32xf32, #tpu.memory_space<vmem>>, vector<1x5x32xf32>
    %29 = vector.shape_cast %28 : vector<1x5x32xf32> to vector<5x32xf32>
    %30 = arith.truncf %29 : vector<5x32xf32> to vector<5x32xbf16>
    %cst = arith.constant dense<0.000000e+00> : vector<5x32xf32>
    %31 = tpu.matmul %30, %4, %cst {dimension_numbers = #tpu.dot_dimension_numbers<[1], [0], [0], [1], [0, 0, 1, 1], [], []>} : vector<5x32xbf16>, vector<32x32xbf16>, vector<5x32xf32> -> vector<5x32xf32>
    %cst_43 = arith.constant dense<0.000000e+00> : vector<5x32xf32>
    %32 = tpu.matmul %30, %6, %cst_43 {dimension_numbers = #tpu.dot_dimension_numbers<[1], [0], [0], [1], [0, 0, 1, 1], [], []>} : vector<5x32xbf16>, vector<32x32xbf16>, vector<5x32xf32> -> vector<5x32xf32>
    %cst_44 = arith.constant dense<0.000000e+00> : vector<5x32xf32>
    %33 = tpu.matmul %30, %8, %cst_44 {dimension_numbers = #tpu.dot_dimension_numbers<[1], [0], [0], [1], [0, 0, 1, 1], [], []>} : vector<5x32xbf16>, vector<32x32xbf16>, vector<5x32xf32> -> vector<5x32xf32>
    %34 = arith.truncf %32 : vector<5x32xf32> to vector<5x32xbf16>
    %cst_45 = arith.constant dense<0.000000e+00> : vector<40x32xf32>
    %35 = tpu.matmul %25, %34, %cst_45 {dimension_numbers = #tpu.dot_dimension_numbers<[1], [0], [0], [1], [0, 0, 1, 1], [], []>} : vector<40x5xbf16>, vector<5x32xbf16>, vector<40x32xf32> -> vector<40x32xf32>
    %36 = arith.mulf %35, %26 : vector<40x32xf32>
    %37 = arith.truncf %33 : vector<5x32xf32> to vector<5x32xbf16>
    %cst_46 = arith.constant dense<0.000000e+00> : vector<40x32xf32>
    %38 = tpu.matmul %25, %37, %cst_46 {dimension_numbers = #tpu.dot_dimension_numbers<[1], [0], [0], [1], [0, 0, 1, 1], [], []>} : vector<40x5xbf16>, vector<5x32xbf16>, vector<40x32xf32> -> vector<40x32xf32>
    %39 = arith.mulf %38, %26 : vector<40x32xf32>
    %40 = arith.truncf %31 : vector<5x32xf32> to vector<5x32xbf16>
    %41 = arith.truncf %36 : vector<40x32xf32> to vector<40x32xbf16>
    %cst_47 = arith.constant dense<0.000000e+00> : vector<5x40xf32>
    %42 = tpu.matmul %40, %41, %cst_47 {dimension_numbers = #tpu.dot_dimension_numbers<[1], [1], [0], [0], [0, 0, 1, 0], [], []>} : vector<5x32xbf16>, vector<40x32xbf16>, vector<5x40xf32> -> vector<5x40xf32>
    %cst_48 = arith.constant 5.000000e-01 : f32
    %43 = vector.broadcast %cst_48 : f32 to vector<5x40xf32>
    %44 = arith.mulf %42, %43 : vector<5x40xf32>
    %cst_49 = arith.constant dense<0xFF800000> : vector<5xf32>
    %45 = vector.multi_reduction <maximumf>, %44, %cst_49 [1] : vector<5x40xf32> to vector<5xf32>
    %46 = vector.shape_cast %45 : vector<5xf32> to vector<5x1xf32>
    %47 = vector.broadcast %46 : vector<5x1xf32> to vector<5x40xf32>
    %48 = arith.subf %44, %47 : vector<5x40xf32>
    %49 = math.exp %48 : vector<5x40xf32>
    %cst_50 = arith.constant dense<0.000000e+00> : vector<5x8xf32>
    %50 = tpu.matmul %49, %27, %cst_50 {dimension_numbers = #tpu.dot_dimension_numbers<[1], [0], [0], [1], [0, 0, 1, 1], [], []>} : vector<5x40xf32>, vector<40x8xf32>, vector<5x8xf32> -> vector<5x8xf32>
    %cst_51 = arith.constant dense<0.000000e+00> : vector<5x40xf32>
    %51 = tpu.matmul %50, %27, %cst_51 {dimension_numbers = #tpu.dot_dimension_numbers<[1], [1], [0], [0], [0, 0, 1, 0], [], []>} : vector<5x8xf32>, vector<40x8xf32>, vector<5x40xf32> -> vector<5x40xf32>
    %52 = tpu.reciprocal %51 {approx = true} : vector<5x40xf32> -> vector<5x40xf32>
    %53 = arith.mulf %49, %52 : vector<5x40xf32>
    %54 = arith.truncf %53 : vector<5x40xf32> to vector<5x40xbf16>
    %55 = arith.truncf %39 : vector<40x32xf32> to vector<40x32xbf16>
    %cst_52 = arith.constant dense<0.000000e+00> : vector<5x32xf32>
    %56 = tpu.matmul %54, %55, %cst_52 {dimension_numbers = #tpu.dot_dimension_numbers<[1], [0], [0], [1], [0, 0, 1, 1], [], []>} : vector<5x40xbf16>, vector<40x32xbf16>, vector<5x32xf32> -> vector<5x32xf32>
    %57 = arith.truncf %56 : vector<5x32xf32> to vector<5x32xbf16>
    %cst_53 = arith.constant dense<0.000000e+00> : vector<5x32xf32>
    %58 = tpu.matmul %57, %10, %cst_53 {dimension_numbers = #tpu.dot_dimension_numbers<[1], [0], [0], [1], [0, 0, 1, 1], [], []>} : vector<5x32xbf16>, vector<32x32xbf16>, vector<5x32xf32> -> vector<5x32xf32>
    %59 = vector.broadcast %12 : vector<1x32xf32> to vector<5x32xf32>
    %60 = arith.addf %58, %59 : vector<5x32xf32>
    %61 = arith.addf %60, %29 : vector<5x32xf32>
    %62 = vector.extract_strided_slice %14 {offsets = [0, 0], sizes = [1, 32], strides = [1, 1]} : vector<2x32xf32> to vector<1x32xf32>
    %63 = vector.extract_strided_slice %16 {offsets = [0, 0], sizes = [1, 32], strides = [1, 1]} : vector<2x32xf32> to vector<1x32xf32>
    %cst_54 = arith.constant dense<0.000000e+00> : vector<5xf32>
    %64 = vector.multi_reduction <add>, %61, %cst_54 [1] : vector<5x32xf32> to vector<5xf32>
    %65 = vector.shape_cast %64 : vector<5xf32> to vector<5x1xf32>
    %cst_55 = arith.constant 3.200000e+01 : f32
    %66 = vector.broadcast %cst_55 : f32 to vector<5x1xf32>
    %67 = arith.divf %65, %66 : vector<5x1xf32>
    %68 = vector.broadcast %67 : vector<5x1xf32> to vector<5x32xf32>
    %69 = arith.subf %61, %68 : vector<5x32xf32>
    %70 = arith.mulf %69, %69 : vector<5x32xf32>
    %cst_56 = arith.constant dense<0.000000e+00> : vector<5xf32>
    %71 = vector.multi_reduction <add>, %70, %cst_56 [1] : vector<5x32xf32> to vector<5xf32>
    %72 = vector.shape_cast %71 : vector<5xf32> to vector<5x1xf32>
    %cst_57 = arith.constant 3.200000e+01 : f32
    %73 = vector.broadcast %cst_57 : f32 to vector<5x1xf32>
    %74 = arith.divf %72, %73 : vector<5x1xf32>
    %75 = vector.broadcast %67 : vector<5x1xf32> to vector<5x32xf32>
    %76 = arith.subf %61, %75 : vector<5x32xf32>
    %cst_58 = arith.constant 9.99999974E-6 : f32
    %77 = vector.broadcast %cst_58 : f32 to vector<5x1xf32>
    %78 = arith.addf %74, %77 : vector<5x1xf32>
    %79 = math.rsqrt %78 : vector<5x1xf32>
    %80 = vector.broadcast %79 : vector<5x1xf32> to vector<5x32xf32>
    %81 = arith.mulf %76, %80 : vector<5x32xf32>
    %82 = vector.broadcast %62 : vector<1x32xf32> to vector<5x32xf32>
    %83 = arith.mulf %81, %82 : vector<5x32xf32>
    %84 = vector.broadcast %63 : vector<1x32xf32> to vector<5x32xf32>
    %85 = arith.addf %83, %84 : vector<5x32xf32>
    %86 = arith.truncf %85 : vector<5x32xf32> to vector<5x32xbf16>
    %cst_59 = arith.constant dense<0.000000e+00> : vector<5x128xf32>
    %87 = tpu.matmul %86, %18, %cst_59 {dimension_numbers = #tpu.dot_dimension_numbers<[1], [0], [0], [1], [0, 0, 1, 1], [], []>} : vector<5x32xbf16>, vector<32x128xbf16>, vector<5x128xf32> -> vector<5x128xf32>
    %88 = vector.broadcast %20 : vector<1x128xf32> to vector<5x128xf32>
    %89 = arith.addf %87, %88 : vector<5x128xf32>
    %cst_60 = arith.constant 0.000000e+00 : f32
    %90 = vector.broadcast %cst_60 : f32 to vector<5x128xf32>
    %91 = arith.maximumf %89, %90 : vector<5x128xf32>
    %92 = arith.truncf %91 : vector<5x128xf32> to vector<5x128xbf16>
    %cst_61 = arith.constant dense<0.000000e+00> : vector<5x32xf32>
    %93 = tpu.matmul %92, %22, %cst_61 {dimension_numbers = #tpu.dot_dimension_numbers<[1], [0], [0], [1], [0, 0, 1, 1], [], []>} : vector<5x128xbf16>, vector<128x32xbf16>, vector<5x32xf32> -> vector<5x32xf32>
    %94 = vector.broadcast %24 : vector<1x32xf32> to vector<5x32xf32>
    %95 = arith.addf %93, %94 : vector<5x32xf32>
    %96 = arith.addf %95, %85 : vector<5x32xf32>
    %97 = vector.extract_strided_slice %14 {offsets = [1, 0], sizes = [1, 32], strides = [1, 1]} : vector<2x32xf32> to vector<1x32xf32>
    %98 = vector.extract_strided_slice %16 {offsets = [1, 0], sizes = [1, 32], strides = [1, 1]} : vector<2x32xf32> to vector<1x32xf32>
    %cst_62 = arith.constant dense<0.000000e+00> : vector<5xf32>
    %99 = vector.multi_reduction <add>, %96, %cst_62 [1] : vector<5x32xf32> to vector<5xf32>
    %100 = vector.shape_cast %99 : vector<5xf32> to vector<5x1xf32>
    %cst_63 = arith.constant 3.200000e+01 : f32
    %101 = vector.broadcast %cst_63 : f32 to vector<5x1xf32>
    %102 = arith.divf %100, %101 : vector<5x1xf32>
    %103 = vector.broadcast %102 : vector<5x1xf32> to vector<5x32xf32>
    %104 = arith.subf %96, %103 : vector<5x32xf32>
    %105 = arith.mulf %104, %104 : vector<5x32xf32>
    %cst_64 = arith.constant dense<0.000000e+00> : vector<5xf32>
    %106 = vector.multi_reduction <add>, %105, %cst_64 [1] : vector<5x32xf32> to vector<5xf32>
    %107 = vector.shape_cast %106 : vector<5xf32> to vector<5x1xf32>
    %cst_65 = arith.constant 3.200000e+01 : f32
    %108 = vector.broadcast %cst_65 : f32 to vector<5x1xf32>
    %109 = arith.divf %107, %108 : vector<5x1xf32>
    %110 = vector.broadcast %102 : vector<5x1xf32> to vector<5x32xf32>
    %111 = arith.subf %96, %110 : vector<5x32xf32>
    %cst_66 = arith.constant 9.99999974E-6 : f32
    %112 = vector.broadcast %cst_66 : f32 to vector<5x1xf32>
    %113 = arith.addf %109, %112 : vector<5x1xf32>
    %114 = math.rsqrt %113 : vector<5x1xf32>
    %115 = vector.broadcast %114 : vector<5x1xf32> to vector<5x32xf32>
    %116 = arith.mulf %111, %115 : vector<5x32xf32>
    %117 = vector.broadcast %97 : vector<1x32xf32> to vector<5x32xf32>
    %118 = arith.mulf %116, %117 : vector<5x32xf32>
    %119 = vector.broadcast %98 : vector<1x32xf32> to vector<5x32xf32>
    %120 = arith.addf %118, %119 : vector<5x32xf32>
    %c0_67 = arith.constant 0 : index
    %c0_68 = arith.constant 0 : index
    %c0_69 = arith.constant 0 : index
    %121 = vector.load %arg17[%c0_67, %c0_68, %c0_69] : memref<2x5x32xf32, #tpu.memory_space<vmem>>, vector<1x5x32xf32>
    %122 = vector.shape_cast %121 : vector<1x5x32xf32> to vector<5x32xf32>
    %123 = vector.shape_cast %120 : vector<5x32xf32> to vector<1x5x32xf32>
    tpu.vector_store %arg17[%c0_67, %c0_68, %c0_69], %123 {strides = array<i32>} : memref<2x5x32xf32, #tpu.memory_space<vmem>>, vector<1x5x32xf32>,
    %c1_70 = arith.constant 1 : index
    %c0_71 = arith.constant 0 : index
    %c0_72 = arith.constant 0 : index
    %124 = vector.load %arg17[%c1_70, %c0_71, %c0_72] : memref<2x5x32xf32, #tpu.memory_space<vmem>>, vector<1x5x32xf32>
    %125 = vector.shape_cast %124 : vector<1x5x32xf32> to vector<5x32xf32>
    %126 = arith.truncf %125 : vector<5x32xf32> to vector<5x32xbf16>
    %cst_73 = arith.constant dense<0.000000e+00> : vector<5x32xf32>
    %127 = tpu.matmul %126, %4, %cst_73 {dimension_numbers = #tpu.dot_dimension_numbers<[1], [0], [0], [1], [0, 0, 1, 1], [], []>} : vector<5x32xbf16>, vector<32x32xbf16>, vector<5x32xf32> -> vector<5x32xf32>
    %cst_74 = arith.constant dense<0.000000e+00> : vector<5x32xf32>
    %128 = tpu.matmul %126, %6, %cst_74 {dimension_numbers = #tpu.dot_dimension_numbers<[1], [0], [0], [1], [0, 0, 1, 1], [], []>} : vector<5x32xbf16>, vector<32x32xbf16>, vector<5x32xf32> -> vector<5x32xf32>
    %cst_75 = arith.constant dense<0.000000e+00> : vector<5x32xf32>
    %129 = tpu.matmul %126, %8, %cst_75 {dimension_numbers = #tpu.dot_dimension_numbers<[1], [0], [0], [1], [0, 0, 1, 1], [], []>} : vector<5x32xbf16>, vector<32x32xbf16>, vector<5x32xf32> -> vector<5x32xf32>
    %130 = arith.truncf %128 : vector<5x32xf32> to vector<5x32xbf16>
    %cst_76 = arith.constant dense<0.000000e+00> : vector<40x32xf32>
    %131 = tpu.matmul %25, %130, %cst_76 {dimension_numbers = #tpu.dot_dimension_numbers<[1], [0], [0], [1], [0, 0, 1, 1], [], []>} : vector<40x5xbf16>, vector<5x32xbf16>, vector<40x32xf32> -> vector<40x32xf32>
    %132 = arith.mulf %131, %26 : vector<40x32xf32>
    %133 = arith.truncf %129 : vector<5x32xf32> to vector<5x32xbf16>
    %cst_77 = arith.constant dense<0.000000e+00> : vector<40x32xf32>
    %134 = tpu.matmul %25, %133, %cst_77 {dimension_numbers = #tpu.dot_dimension_numbers<[1], [0], [0], [1], [0, 0, 1, 1], [], []>} : vector<40x5xbf16>, vector<5x32xbf16>, vector<40x32xf32> -> vector<40x32xf32>
    %135 = arith.mulf %134, %26 : vector<40x32xf32>
    %136 = arith.truncf %127 : vector<5x32xf32> to vector<5x32xbf16>
    %137 = arith.truncf %132 : vector<40x32xf32> to vector<40x32xbf16>
    %cst_78 = arith.constant dense<0.000000e+00> : vector<5x40xf32>
    %138 = tpu.matmul %136, %137, %cst_78 {dimension_numbers = #tpu.dot_dimension_numbers<[1], [1], [0], [0], [0, 0, 1, 0], [], []>} : vector<5x32xbf16>, vector<40x32xbf16>, vector<5x40xf32> -> vector<5x40xf32>
    %cst_79 = arith.constant 5.000000e-01 : f32
    %139 = vector.broadcast %cst_79 : f32 to vector<5x40xf32>
    %140 = arith.mulf %138, %139 : vector<5x40xf32>
    %cst_80 = arith.constant dense<0xFF800000> : vector<5xf32>
    %141 = vector.multi_reduction <maximumf>, %140, %cst_80 [1] : vector<5x40xf32> to vector<5xf32>
    %142 = vector.shape_cast %141 : vector<5xf32> to vector<5x1xf32>
    %143 = vector.broadcast %142 : vector<5x1xf32> to vector<5x40xf32>
    %144 = arith.subf %140, %143 : vector<5x40xf32>
    %145 = math.exp %144 : vector<5x40xf32>
    %cst_81 = arith.constant dense<0.000000e+00> : vector<5x8xf32>
    %146 = tpu.matmul %145, %27, %cst_81 {dimension_numbers = #tpu.dot_dimension_numbers<[1], [0], [0], [1], [0, 0, 1, 1], [], []>} : vector<5x40xf32>, vector<40x8xf32>, vector<5x8xf32> -> vector<5x8xf32>
    %cst_82 = arith.constant dense<0.000000e+00> : vector<5x40xf32>
    %147 = tpu.matmul %146, %27, %cst_82 {dimension_numbers = #tpu.dot_dimension_numbers<[1], [1], [0], [0], [0, 0, 1, 0], [], []>} : vector<5x8xf32>, vector<40x8xf32>, vector<5x40xf32> -> vector<5x40xf32>
    %148 = tpu.reciprocal %147 {approx = true} : vector<5x40xf32> -> vector<5x40xf32>
    %149 = arith.mulf %145, %148 : vector<5x40xf32>
    %150 = arith.truncf %149 : vector<5x40xf32> to vector<5x40xbf16>
    %151 = arith.truncf %135 : vector<40x32xf32> to vector<40x32xbf16>
    %cst_83 = arith.constant dense<0.000000e+00> : vector<5x32xf32>
    %152 = tpu.matmul %150, %151, %cst_83 {dimension_numbers = #tpu.dot_dimension_numbers<[1], [0], [0], [1], [0, 0, 1, 1], [], []>} : vector<5x40xbf16>, vector<40x32xbf16>, vector<5x32xf32> -> vector<5x32xf32>
    %153 = arith.truncf %152 : vector<5x32xf32> to vector<5x32xbf16>
    %cst_84 = arith.constant dense<0.000000e+00> : vector<5x32xf32>
    %154 = tpu.matmul %153, %10, %cst_84 {dimension_numbers = #tpu.dot_dimension_numbers<[1], [0], [0], [1], [0, 0, 1, 1], [], []>} : vector<5x32xbf16>, vector<32x32xbf16>, vector<5x32xf32> -> vector<5x32xf32>
    %155 = vector.broadcast %12 : vector<1x32xf32> to vector<5x32xf32>
    %156 = arith.addf %154, %155 : vector<5x32xf32>
    %157 = arith.addf %156, %125 : vector<5x32xf32>
    %158 = vector.extract_strided_slice %14 {offsets = [0, 0], sizes = [1, 32], strides = [1, 1]} : vector<2x32xf32> to vector<1x32xf32>
    %159 = vector.extract_strided_slice %16 {offsets = [0, 0], sizes = [1, 32], strides = [1, 1]} : vector<2x32xf32> to vector<1x32xf32>
    %cst_85 = arith.constant dense<0.000000e+00> : vector<5xf32>
    %160 = vector.multi_reduction <add>, %157, %cst_85 [1] : vector<5x32xf32> to vector<5xf32>
    %161 = vector.shape_cast %160 : vector<5xf32> to vector<5x1xf32>
    %cst_86 = arith.constant 3.200000e+01 : f32
    %162 = vector.broadcast %cst_86 : f32 to vector<5x1xf32>
    %163 = arith.divf %161, %162 : vector<5x1xf32>
    %164 = vector.broadcast %163 : vector<5x1xf32> to vector<5x32xf32>
    %165 = arith.subf %157, %164 : vector<5x32xf32>
    %166 = arith.mulf %165, %165 : vector<5x32xf32>
    %cst_87 = arith.constant dense<0.000000e+00> : vector<5xf32>
    %167 = vector.multi_reduction <add>, %166, %cst_87 [1] : vector<5x32xf32> to vector<5xf32>
    %168 = vector.shape_cast %167 : vector<5xf32> to vector<5x1xf32>
    %cst_88 = arith.constant 3.200000e+01 : f32
    %169 = vector.broadcast %cst_88 : f32 to vector<5x1xf32>
    %170 = arith.divf %168, %169 : vector<5x1xf32>
    %171 = vector.broadcast %163 : vector<5x1xf32> to vector<5x32xf32>
    %172 = arith.subf %157, %171 : vector<5x32xf32>
    %cst_89 = arith.constant 9.99999974E-6 : f32
    %173 = vector.broadcast %cst_89 : f32 to vector<5x1xf32>
    %174 = arith.addf %170, %173 : vector<5x1xf32>
    %175 = math.rsqrt %174 : vector<5x1xf32>
    %176 = vector.broadcast %175 : vector<5x1xf32> to vector<5x32xf32>
    %177 = arith.mulf %172, %176 : vector<5x32xf32>
    %178 = vector.broadcast %158 : vector<1x32xf32> to vector<5x32xf32>
    %179 = arith.mulf %177, %178 : vector<5x32xf32>
    %180 = vector.broadcast %159 : vector<1x32xf32> to vector<5x32xf32>
    %181 = arith.addf %179, %180 : vector<5x32xf32>
    %182 = arith.truncf %181 : vector<5x32xf32> to vector<5x32xbf16>
    %cst_90 = arith.constant dense<0.000000e+00> : vector<5x128xf32>
    %183 = tpu.matmul %182, %18, %cst_90 {dimension_numbers = #tpu.dot_dimension_numbers<[1], [0], [0], [1], [0, 0, 1, 1], [], []>} : vector<5x32xbf16>, vector<32x128xbf16>, vector<5x128xf32> -> vector<5x128xf32>
    %184 = vector.broadcast %20 : vector<1x128xf32> to vector<5x128xf32>
    %185 = arith.addf %183, %184 : vector<5x128xf32>
    %cst_91 = arith.constant 0.000000e+00 : f32
    %186 = vector.broadcast %cst_91 : f32 to vector<5x128xf32>
    %187 = arith.maximumf %185, %186 : vector<5x128xf32>
    %188 = arith.truncf %187 : vector<5x128xf32> to vector<5x128xbf16>
    %cst_92 = arith.constant dense<0.000000e+00> : vector<5x32xf32>
    %189 = tpu.matmul %188, %22, %cst_92 {dimension_numbers = #tpu.dot_dimension_numbers<[1], [0], [0], [1], [0, 0, 1, 1], [], []>} : vector<5x128xbf16>, vector<128x32xbf16>, vector<5x32xf32> -> vector<5x32xf32>
    %190 = vector.broadcast %24 : vector<1x32xf32> to vector<5x32xf32>
    %191 = arith.addf %189, %190 : vector<5x32xf32>
    %192 = arith.addf %191, %181 : vector<5x32xf32>
    %193 = vector.extract_strided_slice %14 {offsets = [1, 0], sizes = [1, 32], strides = [1, 1]} : vector<2x32xf32> to vector<1x32xf32>
    %194 = vector.extract_strided_slice %16 {offsets = [1, 0], sizes = [1, 32], strides = [1, 1]} : vector<2x32xf32> to vector<1x32xf32>
    %cst_93 = arith.constant dense<0.000000e+00> : vector<5xf32>
    %195 = vector.multi_reduction <add>, %192, %cst_93 [1] : vector<5x32xf32> to vector<5xf32>
    %196 = vector.shape_cast %195 : vector<5xf32> to vector<5x1xf32>
    %cst_94 = arith.constant 3.200000e+01 : f32
    %197 = vector.broadcast %cst_94 : f32 to vector<5x1xf32>
    %198 = arith.divf %196, %197 : vector<5x1xf32>
    %199 = vector.broadcast %198 : vector<5x1xf32> to vector<5x32xf32>
    %200 = arith.subf %192, %199 : vector<5x32xf32>
    %201 = arith.mulf %200, %200 : vector<5x32xf32>
    %cst_95 = arith.constant dense<0.000000e+00> : vector<5xf32>
    %202 = vector.multi_reduction <add>, %201, %cst_95 [1] : vector<5x32xf32> to vector<5xf32>
    %203 = vector.shape_cast %202 : vector<5xf32> to vector<5x1xf32>
    %cst_96 = arith.constant 3.200000e+01 : f32
    %204 = vector.broadcast %cst_96 : f32 to vector<5x1xf32>
    %205 = arith.divf %203, %204 : vector<5x1xf32>
    %206 = vector.broadcast %198 : vector<5x1xf32> to vector<5x32xf32>
    %207 = arith.subf %192, %206 : vector<5x32xf32>
    %cst_97 = arith.constant 9.99999974E-6 : f32
    %208 = vector.broadcast %cst_97 : f32 to vector<5x1xf32>
    %209 = arith.addf %205, %208 : vector<5x1xf32>
    %210 = math.rsqrt %209 : vector<5x1xf32>
    %211 = vector.broadcast %210 : vector<5x1xf32> to vector<5x32xf32>
    %212 = arith.mulf %207, %211 : vector<5x32xf32>
    %213 = vector.broadcast %193 : vector<1x32xf32> to vector<5x32xf32>
    %214 = arith.mulf %212, %213 : vector<5x32xf32>
    %215 = vector.broadcast %194 : vector<1x32xf32> to vector<5x32xf32>
    %216 = arith.addf %214, %215 : vector<5x32xf32>
    %c1_98 = arith.constant 1 : index
    %c0_99 = arith.constant 0 : index
    %c0_100 = arith.constant 0 : index
    %217 = vector.load %arg17[%c1_98, %c0_99, %c0_100] : memref<2x5x32xf32, #tpu.memory_space<vmem>>, vector<1x5x32xf32>
    %218 = vector.shape_cast %217 : vector<1x5x32xf32> to vector<5x32xf32>
    %219 = vector.shape_cast %216 : vector<5x32xf32> to vector<1x5x32xf32>
    tpu.vector_store %arg17[%c1_98, %c0_99, %c0_100], %219 {strides = array<i32>} : memref<2x5x32xf32, #tpu.memory_space<vmem>>, vector<1x5x32xf32>,
    %c1_i32 = arith.constant 1 : i32
    %220 = arith.cmpi eq, %arg0, %c1_i32 : i32
    %221 = arith.extui %220 : i1 to i32
    %c0_i32_101 = arith.constant 0 : i32
    %222 = arith.cmpi ne, %221, %c0_i32_101 : i32
    scf.if %222 {
      %c0_102 = arith.constant 0 : index
      %c0_103 = arith.constant 0 : index
      %c0_104 = arith.constant 0 : index
      %223 = vector.load %arg17[%c0_102, %c0_103, %c0_104] : memref<2x5x32xf32, #tpu.memory_space<vmem>>, vector<1x5x32xf32>
      %224 = vector.shape_cast %223 : vector<1x5x32xf32> to vector<5x32xf32>
      %c0_105 = arith.constant 0 : index
      %c0_106 = arith.constant 0 : index
      %225 = vector.load %arg11[%c0_105, %c0_106] : memref<1x32xf32, #tpu.memory_space<vmem>>, vector<1x32xf32>
      %c0_107 = arith.constant 0 : index
      %c0_108 = arith.constant 0 : index
      %226 = vector.load %arg12[%c0_107, %c0_108] : memref<1x32xf32, #tpu.memory_space<vmem>>, vector<1x32xf32>
      %cst_109 = arith.constant dense<0.000000e+00> : vector<5xf32>
      %227 = vector.multi_reduction <add>, %224, %cst_109 [1] : vector<5x32xf32> to vector<5xf32>
      %228 = vector.shape_cast %227 : vector<5xf32> to vector<5x1xf32>
      %cst_110 = arith.constant 3.200000e+01 : f32
      %229 = vector.broadcast %cst_110 : f32 to vector<5x1xf32>
      %230 = arith.divf %228, %229 : vector<5x1xf32>
      %231 = vector.broadcast %230 : vector<5x1xf32> to vector<5x32xf32>
      %232 = arith.subf %224, %231 : vector<5x32xf32>
      %233 = arith.mulf %232, %232 : vector<5x32xf32>
      %cst_111 = arith.constant dense<0.000000e+00> : vector<5xf32>
      %234 = vector.multi_reduction <add>, %233, %cst_111 [1] : vector<5x32xf32> to vector<5xf32>
      %235 = vector.shape_cast %234 : vector<5xf32> to vector<5x1xf32>
      %cst_112 = arith.constant 3.200000e+01 : f32
      %236 = vector.broadcast %cst_112 : f32 to vector<5x1xf32>
      %237 = arith.divf %235, %236 : vector<5x1xf32>
      %238 = vector.broadcast %230 : vector<5x1xf32> to vector<5x32xf32>
      %239 = arith.subf %224, %238 : vector<5x32xf32>
      %cst_113 = arith.constant 9.99999997E-7 : f32
      %240 = vector.broadcast %cst_113 : f32 to vector<5x1xf32>
      %241 = arith.addf %237, %240 : vector<5x1xf32>
      %242 = math.rsqrt %241 : vector<5x1xf32>
      %243 = vector.broadcast %242 : vector<5x1xf32> to vector<5x32xf32>
      %244 = arith.mulf %239, %243 : vector<5x32xf32>
      %245 = vector.broadcast %225 : vector<1x32xf32> to vector<5x32xf32>
      %246 = arith.mulf %244, %245 : vector<5x32xf32>
      %247 = vector.broadcast %226 : vector<1x32xf32> to vector<5x32xf32>
      %248 = arith.addf %246, %247 : vector<5x32xf32>
      %c0_114 = arith.constant 0 : index
      %c0_115 = arith.constant 0 : index
      %c0_116 = arith.constant 0 : index
      %249 = vector.load %arg16[%c0_114, %c0_115, %c0_116] : memref<2x5x32xf32, #tpu.memory_space<vmem>>, vector<1x5x32xf32>
      %250 = vector.shape_cast %249 : vector<1x5x32xf32> to vector<5x32xf32>
      %251 = vector.shape_cast %248 : vector<5x32xf32> to vector<1x5x32xf32>
      tpu.vector_store %arg16[%c0_114, %c0_115, %c0_116], %251 {strides = array<i32>} : memref<2x5x32xf32, #tpu.memory_space<vmem>>, vector<1x5x32xf32>,
      %c1_117 = arith.constant 1 : index
      %c0_118 = arith.constant 0 : index
      %c0_119 = arith.constant 0 : index
      %252 = vector.load %arg17[%c1_117, %c0_118, %c0_119] : memref<2x5x32xf32, #tpu.memory_space<vmem>>, vector<1x5x32xf32>
      %253 = vector.shape_cast %252 : vector<1x5x32xf32> to vector<5x32xf32>
      %c0_120 = arith.constant 0 : index
      %c0_121 = arith.constant 0 : index
      %254 = vector.load %arg11[%c0_120, %c0_121] : memref<1x32xf32, #tpu.memory_space<vmem>>, vector<1x32xf32>
      %c0_122 = arith.constant 0 : index
      %c0_123 = arith.constant 0 : index
      %255 = vector.load %arg12[%c0_122, %c0_123] : memref<1x32xf32, #tpu.memory_space<vmem>>, vector<1x32xf32>
      %cst_124 = arith.constant dense<0.000000e+00> : vector<5xf32>
      %256 = vector.multi_reduction <add>, %253, %cst_124 [1] : vector<5x32xf32> to vector<5xf32>
      %257 = vector.shape_cast %256 : vector<5xf32> to vector<5x1xf32>
      %cst_125 = arith.constant 3.200000e+01 : f32
      %258 = vector.broadcast %cst_125 : f32 to vector<5x1xf32>
      %259 = arith.divf %257, %258 : vector<5x1xf32>
      %260 = vector.broadcast %259 : vector<5x1xf32> to vector<5x32xf32>
      %261 = arith.subf %253, %260 : vector<5x32xf32>
      %262 = arith.mulf %261, %261 : vector<5x32xf32>
      %cst_126 = arith.constant dense<0.000000e+00> : vector<5xf32>
      %263 = vector.multi_reduction <add>, %262, %cst_126 [1] : vector<5x32xf32> to vector<5xf32>
      %264 = vector.shape_cast %263 : vector<5xf32> to vector<5x1xf32>
      %cst_127 = arith.constant 3.200000e+01 : f32
      %265 = vector.broadcast %cst_127 : f32 to vector<5x1xf32>
      %266 = arith.divf %264, %265 : vector<5x1xf32>
      %267 = vector.broadcast %259 : vector<5x1xf32> to vector<5x32xf32>
      %268 = arith.subf %253, %267 : vector<5x32xf32>
      %cst_128 = arith.constant 9.99999997E-7 : f32
      %269 = vector.broadcast %cst_128 : f32 to vector<5x1xf32>
      %270 = arith.addf %266, %269 : vector<5x1xf32>
      %271 = math.rsqrt %270 : vector<5x1xf32>
      %272 = vector.broadcast %271 : vector<5x1xf32> to vector<5x32xf32>
      %273 = arith.mulf %268, %272 : vector<5x32xf32>
      %274 = vector.broadcast %254 : vector<1x32xf32> to vector<5x32xf32>
      %275 = arith.mulf %273, %274 : vector<5x32xf32>
      %276 = vector.broadcast %255 : vector<1x32xf32> to vector<5x32xf32>
      %277 = arith.addf %275, %276 : vector<5x32xf32>
      %c1_129 = arith.constant 1 : index
      %c0_130 = arith.constant 0 : index
      %c0_131 = arith.constant 0 : index
      %278 = vector.load %arg16[%c1_129, %c0_130, %c0_131] : memref<2x5x32xf32, #tpu.memory_space<vmem>>, vector<1x5x32xf32>
      %279 = vector.shape_cast %278 : vector<1x5x32xf32> to vector<5x32xf32>
      %280 = vector.shape_cast %277 : vector<5x32xf32> to vector<1x5x32xf32>
      tpu.vector_store %arg16[%c1_129, %c0_130, %c0_131], %280 {strides = array<i32>} : memref<2x5x32xf32, #tpu.memory_space<vmem>>, vector<1x5x32xf32>,
    } else {
    }
    return
  }
  func.func @transform_0(%arg0: i32) -> (i32, i32, i32) {
    %c0_i32 = arith.constant 0 : i32
    %c0_i32_0 = arith.constant 0 : i32
    %c0_i32_1 = arith.constant 0 : i32
    %c0_i32_2 = arith.constant 0 : i32
    return %c0_i32, %c0_i32_0, %c0_i32_1 : i32, i32, i32
  }
  func.func @transform_1(%arg0: i32) -> (i32, i32, i32, i32) {
    %c0_i32 = arith.constant 0 : i32
    %c0_i32_0 = arith.constant 0 : i32
    %c0_i32_1 = arith.constant 0 : i32
    %c0_i32_2 = arith.constant 0 : i32
    return %arg0, %c0_i32, %c0_i32_0, %c0_i32_1 : i32, i32, i32, i32
  }
  func.func @transform_2(%arg0: i32) -> (i32, i32, i32) {
    %c0_i32 = arith.constant 0 : i32
    %c0_i32_0 = arith.constant 0 : i32
    %c0_i32_1 = arith.constant 0 : i32
    return %arg0, %c0_i32, %c0_i32_0 : i32, i32, i32
  }
  func.func @transform_3(%arg0: i32) -> (i32, i32, i32) {
    %c0_i32 = arith.constant 0 : i32
    %c0_i32_0 = arith.constant 0 : i32
    %c0_i32_1 = arith.constant 0 : i32
    return %arg0, %c0_i32, %c0_i32_0 : i32, i32, i32
  }
  func.func @transform_4(%arg0: i32) -> (i32, i32, i32) {
    %c0_i32 = arith.constant 0 : i32
    %c0_i32_0 = arith.constant 0 : i32
    %c0_i32_1 = arith.constant 0 : i32
    return %arg0, %c0_i32, %c0_i32_0 : i32, i32, i32
  }
  func.func @transform_5(%arg0: i32) -> (i32, i32, i32) {
    %c0_i32 = arith.constant 0 : i32
    %c0_i32_0 = arith.constant 0 : i32
    %c0_i32_1 = arith.constant 0 : i32
    return %arg0, %c0_i32, %c0_i32_0 : i32, i32, i32
  }
  func.func @transform_6(%arg0: i32) -> (i32, i32, i32) {
    %c0_i32 = arith.constant 0 : i32
    %c0_i32_0 = arith.constant 0 : i32
    %c0_i32_1 = arith.constant 0 : i32
    return %arg0, %c0_i32, %c0_i32_0 : i32, i32, i32
  }
  func.func @transform_7(%arg0: i32) -> (i32, i32, i32) {
    %c0_i32 = arith.constant 0 : i32
    %c0_i32_0 = arith.constant 0 : i32
    %c0_i32_1 = arith.constant 0 : i32
    return %arg0, %c0_i32, %c0_i32_0 : i32, i32, i32
  }
  func.func @transform_8(%arg0: i32) -> (i32, i32, i32) {
    %c0_i32 = arith.constant 0 : i32
    %c0_i32_0 = arith.constant 0 : i32
    %c0_i32_1 = arith.constant 0 : i32
    return %arg0, %c0_i32, %c0_i32_0 : i32, i32, i32
  }
  func.func @transform_9(%arg0: i32) -> (i32, i32, i32) {
    %c0_i32 = arith.constant 0 : i32
    %c0_i32_0 = arith.constant 0 : i32
    %c0_i32_1 = arith.constant 0 : i32
    return %arg0, %c0_i32, %c0_i32_0 : i32, i32, i32
  }
  func.func @transform_10(%arg0: i32) -> (i32, i32) {
    %c0_i32 = arith.constant 0 : i32
    %c0_i32_0 = arith.constant 0 : i32
    %c0_i32_1 = arith.constant 0 : i32
    return %c0_i32, %c0_i32_0 : i32, i32
  }
  func.func @transform_11(%arg0: i32) -> (i32, i32) {
    %c0_i32 = arith.constant 0 : i32
    %c0_i32_0 = arith.constant 0 : i32
    %c0_i32_1 = arith.constant 0 : i32
    return %c0_i32, %c0_i32_0 : i32, i32
  }
  func.func @transform_12(%arg0: i32) -> (i32, i32) {
    %c0_i32 = arith.constant 0 : i32
    %c0_i32_0 = arith.constant 0 : i32
    %c0_i32_1 = arith.constant 0 : i32
    return %c0_i32, %c0_i32_0 : i32, i32
  }
  func.func @transform_13(%arg0: i32) -> (i32, i32) {
    %c0_i32 = arith.constant 0 : i32
    %c0_i32_0 = arith.constant 0 : i32
    %c0_i32_1 = arith.constant 0 : i32
    return %c0_i32, %c0_i32_0 : i32, i32
  }
  func.func @transform_14(%arg0: i32) -> (i32, i32) {
    %c0_i32 = arith.constant 0 : i32
    %c0_i32_0 = arith.constant 0 : i32
    %c0_i32_1 = arith.constant 0 : i32
    return %c0_i32, %c0_i32_0 : i32, i32
  }
  func.func @transform_15(%arg0: i32) -> (i32, i32, i32) {
    %c0_i32 = arith.constant 0 : i32
    %c0_i32_0 = arith.constant 0 : i32
    %c0_i32_1 = arith.constant 0 : i32
    %c0_i32_2 = arith.constant 0 : i32
    return %c0_i32, %c0_i32_0, %c0_i32_1 : i32, i32, i32
  }
}

</mosaic_0001>

<llo_original>
// kernel: tpu_custom_call.1
$region0: #{tpu_custom_call.1}
  #allocation0 [shape = 'u32[]', space=smem, size = 0x4, offset = 0x4, fixed_abs, tag = 'smem constant byte address 0x4 - core index']
  #allocation1 [shape = 'u32[144,128]{1,0:T(1,128)}', space=vmem, size = 0x12000, scoped, tag = 'internal scratch']
  #allocation2 [shape = 'f32[2,5,32]{2,1,0:T(8,128)}', space=vmem, size = 0x2000, scoped, tag = 'scratch operand']
  %s0 = inlined_call_operand.vmem [shape: f32[2,5,32], index: 0, kind: input, shape index: {}]
  %s1 = inlined_call_operand.vmem [shape: bf16[2,3,32,32], index: 1, kind: input, shape index: {}]
  %s2 = inlined_call_operand.vmem [shape: bf16[2,32,32], index: 2, kind: input, shape index: {}]
  %s3 = inlined_call_operand.vmem [shape: f32[2,1,32], index: 3, kind: input, shape index: {}]
  %s4 = inlined_call_operand.vmem [shape: f32[2,2,32], index: 4, kind: input, shape index: {}]
  %s5 = inlined_call_operand.vmem [shape: f32[2,2,32], index: 5, kind: input, shape index: {}]
  %s6 = inlined_call_operand.vmem [shape: bf16[2,32,128], index: 6, kind: input, shape index: {}]
  %s7 = inlined_call_operand.vmem [shape: f32[2,1,128], index: 7, kind: input, shape index: {}]
  %s8 = inlined_call_operand.vmem [shape: bf16[2,128,32], index: 8, kind: input, shape index: {}]
  %s9 = inlined_call_operand.vmem [shape: f32[2,1,32], index: 9, kind: input, shape index: {}]
  %s10 = inlined_call_operand.vmem [shape: f32[1,32], index: 10, kind: input, shape index: {}]
  %s11 = inlined_call_operand.vmem [shape: f32[1,32], index: 11, kind: input, shape index: {}]
  %s12 = inlined_call_operand.vmem [shape: bf16[40,5], index: 12, kind: input, shape index: {}]
  %s13 = inlined_call_operand.vmem [shape: f32[40,32], index: 13, kind: input, shape index: {}]
  %s14 = inlined_call_operand.vmem [shape: f32[40,8], index: 14, kind: input, shape index: {}]
  %s15 = inlined_call_operand.vmem [shape: f32[2,5,32], index: 15, kind: output, shape index: {}]
  %s16 = sld [smem:[#allocation0]]
  $region101: #{tpu_custom_call.1} parent=0
    _
  %s18 = ssub.s32 1, %s16
  %s19 = scalar_select 0, %s18, %s16
  loop: start=0, step=1, limit=4
  $region2: #{tpu_custom_call.1} parent=0 // loop_pre_header
    _
  $region3: #{tpu_custom_call.1} parent=0 // loop_header
    %s21 = sphi 0, %s25
    %p22 = scmp.ge.s32.totalorder %s21, 4
    %s29 = sphi 0, %s29
    %s31 = sphi 0, %s29
    %s32 = sphi 0, %s31
    %s46 = sphi 0, %s32
    %s52 = sphi 0, %s54
    %s55 = sphi 0, %s52
    %s56 = sphi 0, %s55
    %s72 = sphi 0, %s56
    %s78 = sphi 0, %s80
    %s81 = sphi 0, %s78
    %s82 = sphi 0, %s81
    %s98 = sphi 0, %s82
    %s104 = sphi 0, %s106
    %s107 = sphi 0, %s104
    %s108 = sphi 0, %s107
    %s124 = sphi 0, %s108
    %s130 = sphi 0, %s132
    %s133 = sphi 0, %s130
    %s134 = sphi 0, %s133
    %s150 = sphi 0, %s134
    %s156 = sphi 0, %s158
    %s159 = sphi 0, %s156
    %s160 = sphi 0, %s159
    %s176 = sphi 0, %s160
    %s182 = sphi 0, %s184
    %s185 = sphi 0, %s182
    %s186 = sphi 0, %s185
    %s202 = sphi 0, %s186
    %s208 = sphi 0, %s210
    %s211 = sphi 0, %s208
    %s212 = sphi 0, %s211
    %s228 = sphi 0, %s212
    %s234 = sphi 0, %s236
    %s237 = sphi 0, %s234
    %s238 = sphi 0, %s237
    %s254 = sphi 0, %s238
    %s260 = sphi 0, %s262
    %s263 = sphi 0, %s260
    %s264 = sphi 0, %s263
    %s280 = sphi 0, %s264
    %s284 = sphi 0, %s284
    %s286 = sphi 0, %s284
    %s287 = sphi 0, %s286
    %s301 = sphi 0, %s287
    %s305 = sphi 0, %s305
    %s307 = sphi 0, %s305
    %s308 = sphi 0, %s307
    %s322 = sphi 0, %s308
    %s326 = sphi 0, %s326
    %s328 = sphi 0, %s326
    %s329 = sphi 0, %s328
    %s343 = sphi 0, %s329
    %s347 = sphi 0, %s347
    %s349 = sphi 0, %s347
    %s350 = sphi 0, %s349
    %s364 = sphi 0, %s350
    %s368 = sphi 0, %s368
    %s370 = sphi 0, %s368
    %s371 = sphi 0, %s370
    %s385 = sphi 0, %s371
    %s389 = sphi 0, %s389
    %s391 = sphi 0, %s389
    %s392 = sphi 0, %s391
    %s406 = sphi 0, %s392
  $region4: #{tpu_custom_call.1} parent=0 // loop_header_branch
    %24 = sbr.rel (%p22) target = $region8
  $region5: #{tpu_custom_call.1} parent=0 // loop_body
    %s26 = ssub.s32 %s21, 1
    %s27 = ssub.s32 %s21, 2
    %s28 = sadd.s32 %s21, 1
    %s30 = sadd.s32 %s29, 1
    %p33 = scmp.eq.s32.totalorder %s21, 1
    %p34 = scmp.ne.s32.totalorder %s29, %s31
    %p35 = scmp.eq.s32.totalorder %s21, 0
    %p36 = por %p34, %p35
    %p37 = scmp.ne.s32.totalorder %s29, %s31
    %p38 = scmp.eq.s32.totalorder %s26, 1
    %p39 = por %p37, %p38
    %p40 = scmp.ne.s32.totalorder %s31, %s32
    %p41 = scmp.eq.s32.totalorder %s26, 0
    %p42 = por %p40, %p41
    %p43 = scmp.ne.s32.totalorder %s31, %s32
    %p44 = scmp.eq.s32.totalorder %s27, 1
    %p45 = por %p43, %p44
    %p47 = scmp.ne.s32.totalorder %s32, %s46
    %p48 = scmp.eq.s32.totalorder %s27, 0
    %p49 = por %p47, %p48
    %s50 = ssub.s32 %s21, %s28
    %p51 = scmp.eq.s32.totalorder %s50, 0
    %s53 = sadd.s32 %s52, 1
    %s54 = scalar_select %p51, %s52, %s53
    %p57 = pneg %p51
    %p58 = scmp.eq.s32.totalorder %s21, 1
    %p59 = por %p57, %p58
    %p60 = scmp.ne.s32.totalorder %s52, %s55
    %p61 = scmp.eq.s32.totalorder %s21, 0
    %p62 = por %p60, %p61
    %p63 = scmp.ne.s32.totalorder %s52, %s55
    %p64 = scmp.eq.s32.totalorder %s26, 1
    %p65 = por %p63, %p64
    %p66 = scmp.ne.s32.totalorder %s55, %s56
    %p67 = scmp.eq.s32.totalorder %s26, 0
    %p68 = por %p66, %p67
    %p69 = scmp.ne.s32.totalorder %s55, %s56
    %p70 = scmp.eq.s32.totalorder %s27, 1
    %p71 = por %p69, %p70
    %p73 = scmp.ne.s32.totalorder %s56, %s72
    %p74 = scmp.eq.s32.totalorder %s27, 0
    %p75 = por %p73, %p74
    %s76 = ssub.s32 %s21, %s28
    %p77 = scmp.eq.s32.totalorder %s76, 0
    %s79 = sadd.s32 %s78, 1
    %s80 = scalar_select %p77, %s78, %s79
    %p83 = pneg %p77
    %p84 = scmp.eq.s32.totalorder %s21, 1
    %p85 = por %p83, %p84
    %p86 = scmp.ne.s32.totalorder %s78, %s81
    %p87 = scmp.eq.s32.totalorder %s21, 0
    %p88 = por %p86, %p87
    %p89 = scmp.ne.s32.totalorder %s78, %s81
    %p90 = scmp.eq.s32.totalorder %s26, 1
    %p91 = por %p89, %p90
    %p92 = scmp.ne.s32.totalorder %s81, %s82
    %p93 = scmp.eq.s32.totalorder %s26, 0
    %p94 = por %p92, %p93
    %p95 = scmp.ne.s32.totalorder %s81, %s82
    %p96 = scmp.eq.s32.totalorder %s27, 1
    %p97 = por %p95, %p96
    %p99 = scmp.ne.s32.totalorder %s82, %s98
    %p100 = scmp.eq.s32.totalorder %s27, 0
    %p101 = por %p99, %p100
    %s102 = ssub.s32 %s21, %s28
    %p103 = scmp.eq.s32.totalorder %s102, 0
    %s105 = sadd.s32 %s104, 1
    %s106 = scalar_select %p103, %s104, %s105
    %p109 = pneg %p103
    %p110 = scmp.eq.s32.totalorder %s21, 1
    %p111 = por %p109, %p110
    %p112 = scmp.ne.s32.totalorder %s104, %s107
    %p113 = scmp.eq.s32.totalorder %s21, 0
    %p114 = por %p112, %p113
    %p115 = scmp.ne.s32.totalorder %s104, %s107
    %p116 = scmp.eq.s32.totalorder %s26, 1
    %p117 = por %p115, %p116
    %p118 = scmp.ne.s32.totalorder %s107, %s108
    %p119 = scmp.eq.s32.totalorder %s26, 0
    %p120 = por %p118, %p119
    %p121 = scmp.ne.s32.totalorder %s107, %s108
    %p122 = scmp.eq.s32.totalorder %s27, 1
    %p123 = por %p121, %p122
    %p125 = scmp.ne.s32.totalorder %s108, %s124
    %p126 = scmp.eq.s32.totalorder %s27, 0
    %p127 = por %p125, %p126
    %s128 = ssub.s32 %s21, %s28
    %p129 = scmp.eq.s32.totalorder %s128, 0
    %s131 = sadd.s32 %s130, 1
    %s132 = scalar_select %p129, %s130, %s131
    %p135 = pneg %p129
    %p136 = scmp.eq.s32.totalorder %s21, 1
    %p137 = por %p135, %p136
    %p138 = scmp.ne.s32.totalorder %s130, %s133
    %p139 = scmp.eq.s32.totalorder %s21, 0
    %p140 = por %p138, %p139
    %p141 = scmp.ne.s32.totalorder %s130, %s133
    %p142 = scmp.eq.s32.totalorder %s26, 1
    %p143 = por %p141, %p142
    %p144 = scmp.ne.s32.totalorder %s133, %s134
    %p145 = scmp.eq.s32.totalorder %s26, 0
    %p146 = por %p144, %p145
    %p147 = scmp.ne.s32.totalorder %s133, %s134
    %p148 = scmp.eq.s32.totalorder %s27, 1
    %p149 = por %p147, %p148
    %p151 = scmp.ne.s32.totalorder %s134, %s150
    %p152 = scmp.eq.s32.totalorder %s27, 0
    %p153 = por %p151, %p152
    %s154 = ssub.s32 %s21, %s28
    %p155 = scmp.eq.s32.totalorder %s154, 0
    %s157 = sadd.s32 %s156, 1
    %s158 = scalar_select %p155, %s156, %s157
    %p161 = pneg %p155
    %p162 = scmp.eq.s32.totalorder %s21, 1
    %p163 = por %p161, %p162
    %p164 = scmp.ne.s32.totalorder %s156, %s159
    %p165 = scmp.eq.s32.totalorder %s21, 0
    %p166 = por %p164, %p165
    %p167 = scmp.ne.s32.totalorder %s156, %s159
    %p168 = scmp.eq.s32.totalorder %s26, 1
    %p169 = por %p167, %p168
    %p170 = scmp.ne.s32.totalorder %s159, %s160
    %p171 = scmp.eq.s32.totalorder %s26, 0
    %p172 = por %p170, %p171
    %p173 = scmp.ne.s32.totalorder %s159, %s160
    %p174 = scmp.eq.s32.totalorder %s27, 1
    %p175 = por %p173, %p174
    %p177 = scmp.ne.s32.totalorder %s160, %s176
    %p178 = scmp.eq.s32.totalorder %s27, 0
    %p179 = por %p177, %p178
    %s180 = ssub.s32 %s21, %s28
    %p181 = scmp.eq.s32.totalorder %s180, 0
    %s183 = sadd.s32 %s182, 1
    %s184 = scalar_select %p181, %s182, %s183
    %p187 = pneg %p181
    %p188 = scmp.eq.s32.totalorder %s21, 1
    %p189 = por %p187, %p188
    %p190 = scmp.ne.s32.totalorder %s182, %s185
    %p191 = scmp.eq.s32.totalorder %s21, 0
    %p192 = por %p190, %p191
    %p193 = scmp.ne.s32.totalorder %s182, %s185
    %p194 = scmp.eq.s32.totalorder %s26, 1
    %p195 = por %p193, %p194
    %p196 = scmp.ne.s32.totalorder %s185, %s186
    %p197 = scmp.eq.s32.totalorder %s26, 0
    %p198 = por %p196, %p197
    %p199 = scmp.ne.s32.totalorder %s185, %s186
    %p200 = scmp.eq.s32.totalorder %s27, 1
    %p201 = por %p199, %p200
    %p203 = scmp.ne.s32.totalorder %s186, %s202
    %p204 = scmp.eq.s32.totalorder %s27, 0
    %p205 = por %p203, %p204
    %s206 = ssub.s32 %s21, %s28
    %p207 = scmp.eq.s32.totalorder %s206, 0
    %s209 = sadd.s32 %s208, 1
    %s210 = scalar_select %p207, %s208, %s209
    %p213 = pneg %p207
    %p214 = scmp.eq.s32.totalorder %s21, 1
    %p215 = por %p213, %p214
    %p216 = scmp.ne.s32.totalorder %s208, %s211
    %p217 = scmp.eq.s32.totalorder %s21, 0
    %p218 = por %p216, %p217
    %p219 = scmp.ne.s32.totalorder %s208, %s211
    %p220 = scmp.eq.s32.totalorder %s26, 1
    %p221 = por %p219, %p220
    %p222 = scmp.ne.s32.totalorder %s211, %s212
    %p223 = scmp.eq.s32.totalorder %s26, 0
    %p224 = por %p222, %p223
    %p225 = scmp.ne.s32.totalorder %s211, %s212
    %p226 = scmp.eq.s32.totalorder %s27, 1
    %p227 = por %p225, %p226
    %p229 = scmp.ne.s32.totalorder %s212, %s228
    %p230 = scmp.eq.s32.totalorder %s27, 0
    %p231 = por %p229, %p230
    %s232 = ssub.s32 %s21, %s28
    %p233 = scmp.eq.s32.totalorder %s232, 0
    %s235 = sadd.s32 %s234, 1
    %s236 = scalar_select %p233, %s234, %s235
    %p239 = pneg %p233
    %p240 = scmp.eq.s32.totalorder %s21, 1
    %p241 = por %p239, %p240
    %p242 = scmp.ne.s32.totalorder %s234, %s237
    %p243 = scmp.eq.s32.totalorder %s21, 0
    %p244 = por %p242, %p243
    %p245 = scmp.ne.s32.totalorder %s234, %s237
    %p246 = scmp.eq.s32.totalorder %s26, 1
    %p247 = por %p245, %p246
    %p248 = scmp.ne.s32.totalorder %s237, %s238
    %p249 = scmp.eq.s32.totalorder %s26, 0
    %p250 = por %p248, %p249
    %p251 = scmp.ne.s32.totalorder %s237, %s238
    %p252 = scmp.eq.s32.totalorder %s27, 1
    %p253 = por %p251, %p252
    %p255 = scmp.ne.s32.totalorder %s238, %s254
    %p256 = scmp.eq.s32.totalorder %s27, 0
    %p257 = por %p255, %p256
    %s258 = ssub.s32 %s21, %s28
    %p259 = scmp.eq.s32.totalorder %s258, 0
    %s261 = sadd.s32 %s260, 1
    %s262 = scalar_select %p259, %s260, %s261
    %p265 = pneg %p259
    %p266 = scmp.eq.s32.totalorder %s21, 1
    %p267 = por %p265, %p266
    %p268 = scmp.ne.s32.totalorder %s260, %s263
    %p269 = scmp.eq.s32.totalorder %s21, 0
    %p270 = por %p268, %p269
    %p271 = scmp.ne.s32.totalorder %s260, %s263
    %p272 = scmp.eq.s32.totalorder %s26, 1
    %p273 = por %p271, %p272
    %p274 = scmp.ne.s32.totalorder %s263, %s264
    %p275 = scmp.eq.s32.totalorder %s26, 0
    %p276 = por %p274, %p275
    %p277 = scmp.ne.s32.totalorder %s263, %s264
    %p278 = scmp.eq.s32.totalorder %s27, 1
    %p279 = por %p277, %p278
    %p281 = scmp.ne.s32.totalorder %s264, %s280
    %p282 = scmp.eq.s32.totalorder %s27, 0
    %p283 = por %p281, %p282
    %s285 = sadd.s32 %s284, 1
    %p288 = scmp.eq.s32.totalorder %s21, 1
    %p289 = scmp.ne.s32.totalorder %s284, %s286
    %p290 = scmp.eq.s32.totalorder %s21, 0
    %p291 = por %p289, %p290
    %p292 = scmp.ne.s32.totalorder %s284, %s286
    %p293 = scmp.eq.s32.totalorder %s26, 1
    %p294 = por %p292, %p293
    %p295 = scmp.ne.s32.totalorder %s286, %s287
    %p296 = scmp.eq.s32.totalorder %s26, 0
    %p297 = por %p295, %p296
    %p298 = scmp.ne.s32.totalorder %s286, %s287
    %p299 = scmp.eq.s32.totalorder %s27, 1
    %p300 = por %p298, %p299
    %p302 = scmp.ne.s32.totalorder %s287, %s301
    %p303 = scmp.eq.s32.totalorder %s27, 0
    %p304 = por %p302, %p303
    %s306 = sadd.s32 %s305, 1
    %p309 = scmp.eq.s32.totalorder %s21, 1
    %p310 = scmp.ne.s32.totalorder %s305, %s307
    %p311 = scmp.eq.s32.totalorder %s21, 0
    %p312 = por %p310, %p311
    %p313 = scmp.ne.s32.totalorder %s305, %s307
    %p314 = scmp.eq.s32.totalorder %s26, 1
    %p315 = por %p313, %p314
    %p316 = scmp.ne.s32.totalorder %s307, %s308
    %p317 = scmp.eq.s32.totalorder %s26, 0
    %p318 = por %p316, %p317
    %p319 = scmp.ne.s32.totalorder %s307, %s308
    %p320 = scmp.eq.s32.totalorder %s27, 1
    %p321 = por %p319, %p320
    %p323 = scmp.ne.s32.totalorder %s308, %s322
    %p324 = scmp.eq.s32.totalorder %s27, 0
    %p325 = por %p323, %p324
    %s327 = sadd.s32 %s326, 1
    %p330 = scmp.eq.s32.totalorder %s21, 1
    %p331 = scmp.ne.s32.totalorder %s326, %s328
    %p332 = scmp.eq.s32.totalorder %s21, 0
    %p333 = por %p331, %p332
    %p334 = scmp.ne.s32.totalorder %s326, %s328
    %p335 = scmp.eq.s32.totalorder %s26, 1
    %p336 = por %p334, %p335
    %p337 = scmp.ne.s32.totalorder %s328, %s329
    %p338 = scmp.eq.s32.totalorder %s26, 0
    %p339 = por %p337, %p338
    %p340 = scmp.ne.s32.totalorder %s328, %s329
    %p341 = scmp.eq.s32.totalorder %s27, 1
    %p342 = por %p340, %p341
    %p344 = scmp.ne.s32.totalorder %s329, %s343
    %p345 = scmp.eq.s32.totalorder %s27, 0
    %p346 = por %p344, %p345
    %s348 = sadd.s32 %s347, 1
    %p351 = scmp.eq.s32.totalorder %s21, 1
    %p352 = scmp.ne.s32.totalorder %s347, %s349
    %p353 = scmp.eq.s32.totalorder %s21, 0
    %p354 = por %p352, %p353
    %p355 = scmp.ne.s32.totalorder %s347, %s349
    %p356 = scmp.eq.s32.totalorder %s26, 1
    %p357 = por %p355, %p356
    %p358 = scmp.ne.s32.totalorder %s349, %s350
    %p359 = scmp.eq.s32.totalorder %s26, 0
    %p360 = por %p358, %p359
    %p361 = scmp.ne.s32.totalorder %s349, %s350
    %p362 = scmp.eq.s32.totalorder %s27, 1
    %p363 = por %p361, %p362
    %p365 = scmp.ne.s32.totalorder %s350, %s364
    %p366 = scmp.eq.s32.totalorder %s27, 0
    %p367 = por %p365, %p366
    %s369 = sadd.s32 %s368, 1
    %p372 = scmp.eq.s32.totalorder %s21, 1
    %p373 = scmp.ne.s32.totalorder %s368, %s370
    %p374 = scmp.eq.s32.totalorder %s21, 0
    %p375 = por %p373, %p374
    %p376 = scmp.ne.s32.totalorder %s368, %s370
    %p377 = scmp.eq.s32.totalorder %s26, 1
    %p378 = por %p376, %p377
    %p379 = scmp.ne.s32.totalorder %s370, %s371
    %p380 = scmp.eq.s32.totalorder %s26, 0
    %p381 = por %p379, %p380
    %p382 = scmp.ne.s32.totalorder %s370, %s371
    %p383 = scmp.eq.s32.totalorder %s27, 1
    %p384 = por %p382, %p383
    %p386 = scmp.ne.s32.totalorder %s371, %s385
    %p387 = scmp.eq.s32.totalorder %s27, 0
    %p388 = por %p386, %p387
    %s390 = sadd.s32 %s389, 1
    %p393 = scmp.eq.s32.totalorder %s21, 1
    %p394 = scmp.ne.s32.totalorder %s389, %s391
    %p395 = scmp.eq.s32.totalorder %s21, 0
    %p396 = por %p394, %p395
    %p397 = scmp.ne.s32.totalorder %s389, %s391
    %p398 = scmp.eq.s32.totalorder %s26, 1
    %p399 = por %p397, %p398
    %p400 = scmp.ne.s32.totalorder %s391, %s392
    %p401 = scmp.eq.s32.totalorder %s26, 0
    %p402 = por %p400, %p401
    %p403 = scmp.ne.s32.totalorder %s391, %s392
    %p404 = scmp.eq.s32.totalorder %s27, 1
    %p405 = por %p403, %p404
    %p407 = scmp.ne.s32.totalorder %s392, %s406
    %p408 = scmp.eq.s32.totalorder %s27, 0
    %p409 = por %p407, %p408
    %p410 = scmp.le.s32.totalorder 1, %s21
    %p411 = scmp.lt.s32.totalorder %s21, 3
    %p412 = pnand %p410, %p411
    %p413 = pneg %p412
    // Predicated region
    $region9: #{tpu_custom_call.1} parent=5 // pred_check
      _
    $region10: #{tpu_custom_call.1} parent=5 // pred_check_branch
      %415 = sbr.rel (%p412) target = $region12
    $region11: #{tpu_custom_call.1} parent=5 // pred_region
      %s416 = ssub.s32 %s21, 1
      // Predicated region
      $region13: #{tpu_custom_call.1} parent=11 // pred_check
        %p417 = pneg %p42
      $region14: #{tpu_custom_call.1} parent=11 // pred_check_branch
        %419 = sbr.rel (%p417) target = $region16
      $region15: #{tpu_custom_call.1} parent=11 // pred_region
        _
      $region16: #{tpu_custom_call.1} parent=11 // pred_fallthru
        _
      // Predicated region
      $region17: #{tpu_custom_call.1} parent=11 // pred_check
        %p420 = pneg %p297
      $region18: #{tpu_custom_call.1} parent=11 // pred_check_branch
        %422 = sbr.rel (%p420) target = $region20
      $region19: #{tpu_custom_call.1} parent=11 // pred_region
        _
      $region20: #{tpu_custom_call.1} parent=11 // pred_fallthru
        _
      // Predicated region
      $region21: #{tpu_custom_call.1} parent=11 // pred_check
        %p423 = pneg %p318
      $region22: #{tpu_custom_call.1} parent=11 // pred_check_branch
        %425 = sbr.rel (%p423) target = $region24
      $region23: #{tpu_custom_call.1} parent=11 // pred_region
        _
      $region24: #{tpu_custom_call.1} parent=11 // pred_fallthru
        _
      // Predicated region
      $region25: #{tpu_custom_call.1} parent=11 // pred_check
        %p426 = pneg %p339
      $region26: #{tpu_custom_call.1} parent=11 // pred_check_branch
        %428 = sbr.rel (%p426) target = $region28
      $region27: #{tpu_custom_call.1} parent=11 // pred_region
        _
      $region28: #{tpu_custom_call.1} parent=11 // pred_fallthru
        _
      // Predicated region
      $region29: #{tpu_custom_call.1} parent=11 // pred_check
        %p429 = pneg %p360
      $region30: #{tpu_custom_call.1} parent=11 // pred_check_branch
        %431 = sbr.rel (%p429) target = $region32
      $region31: #{tpu_custom_call.1} parent=11 // pred_region
        _
      $region32: #{tpu_custom_call.1} parent=11 // pred_fallthru
        _
      // Predicated region
      $region33: #{tpu_custom_call.1} parent=11 // pred_check
        %p432 = pneg %p381
      $region34: #{tpu_custom_call.1} parent=11 // pred_check_branch
        %434 = sbr.rel (%p432) target = $region36
      $region35: #{tpu_custom_call.1} parent=11 // pred_region
        _
      $region36: #{tpu_custom_call.1} parent=11 // pred_fallthru
        _
    $region12: #{tpu_custom_call.1} parent=5 // pred_fallthru
      _
    %p435 = scmp.lt.s32.totalorder %s21, 2
    // Predicated region
    $region37: #{tpu_custom_call.1} parent=5 // pred_check
      %p436 = pneg %p435
    $region38: #{tpu_custom_call.1} parent=5 // pred_check_branch
      %438 = sbr.rel (%p436) target = $region40
    $region39: #{tpu_custom_call.1} parent=5 // pred_region
      // Predicated region
      $region41: #{tpu_custom_call.1} parent=39 // pred_check
        %p439 = pneg %p62
      $region42: #{tpu_custom_call.1} parent=39 // pred_check_branch
        %441 = sbr.rel (%p439) target = $region44
      $region43: #{tpu_custom_call.1} parent=39 // pred_region
        %p442 = scmp.lt.s32.totalorder %s21, 1
        %s443 = scalar_select %p442, %s21, 1
        %s444 = smul.addr %s443, 12
        %s445 = smul.addr %s444, 4
        %s446 = scalar_lea.vmem %s1, %s445
      $region44: #{tpu_custom_call.1} parent=39 // pred_fallthru
        _
      // Predicated region
      $region45: #{tpu_custom_call.1} parent=39 // pred_check
        %p447 = pneg %p88
      $region46: #{tpu_custom_call.1} parent=39 // pred_check_branch
        %449 = sbr.rel (%p447) target = $region48
      $region47: #{tpu_custom_call.1} parent=39 // pred_region
        %p450 = scmp.lt.s32.totalorder %s21, 1
        %s451 = scalar_select %p450, %s21, 1
        %s452 = smul.addr %s451, 4
        %s453 = smul.addr %s452, 4
        %s454 = scalar_lea.vmem %s2, %s453
      $region48: #{tpu_custom_call.1} parent=39 // pred_fallthru
        _
      // Predicated region
      $region49: #{tpu_custom_call.1} parent=39 // pred_check
        %p455 = pneg %p114
      $region50: #{tpu_custom_call.1} parent=39 // pred_check_branch
        %457 = sbr.rel (%p455) target = $region52
      $region51: #{tpu_custom_call.1} parent=39 // pred_region
        %p458 = scmp.lt.s32.totalorder %s21, 1
        %s459 = scalar_select %p458, %s21, 1
        %s460 = scalar_lea.vmem %s3, %s459
      $region52: #{tpu_custom_call.1} parent=39 // pred_fallthru
        _
      // Predicated region
      $region53: #{tpu_custom_call.1} parent=39 // pred_check
        %p461 = pneg %p140
      $region54: #{tpu_custom_call.1} parent=39 // pred_check_branch
        %463 = sbr.rel (%p461) target = $region56
      $region55: #{tpu_custom_call.1} parent=39 // pred_region
        %p464 = scmp.lt.s32.totalorder %s21, 1
        %s465 = scalar_select %p464, %s21, 1
        %s466 = smul.addr %s465, 2
        %s467 = scalar_lea.vmem %s4, %s466
      $region56: #{tpu_custom_call.1} parent=39 // pred_fallthru
        _
      // Predicated region
      $region57: #{tpu_custom_call.1} parent=39 // pred_check
        %p468 = pneg %p166
      $region58: #{tpu_custom_call.1} parent=39 // pred_check_branch
        %470 = sbr.rel (%p468) target = $region60
      $region59: #{tpu_custom_call.1} parent=39 // pred_region
        %p471 = scmp.lt.s32.totalorder %s21, 1
        %s472 = scalar_select %p471, %s21, 1
        %s473 = smul.addr %s472, 2
        %s474 = scalar_lea.vmem %s5, %s473
      $region60: #{tpu_custom_call.1} parent=39 // pred_fallthru
        _
      // Predicated region
      $region61: #{tpu_custom_call.1} parent=39 // pred_check
        %p475 = pneg %p192
      $region62: #{tpu_custom_call.1} parent=39 // pred_check_branch
        %477 = sbr.rel (%p475) target = $region64
      $region63: #{tpu_custom_call.1} parent=39 // pred_region
        %p478 = scmp.lt.s32.totalorder %s21, 1
        %s479 = scalar_select %p478, %s21, 1
        %s480 = smul.addr %s479, 4
        %s481 = smul.addr %s480, 4
        %s482 = scalar_lea.vmem %s6, %s481
      $region64: #{tpu_custom_call.1} parent=39 // pred_fallthru
        _
      // Predicated region
      $region65: #{tpu_custom_call.1} parent=39 // pred_check
        %p483 = pneg %p218
      $region66: #{tpu_custom_call.1} parent=39 // pred_check_branch
        %485 = sbr.rel (%p483) target = $region68
      $region67: #{tpu_custom_call.1} parent=39 // pred_region
        %p486 = scmp.lt.s32.totalorder %s21, 1
        %s487 = scalar_select %p486, %s21, 1
        %s488 = scalar_lea.vmem %s7, %s487
      $region68: #{tpu_custom_call.1} parent=39 // pred_fallthru
        _
      // Predicated region
      $region69: #{tpu_custom_call.1} parent=39 // pred_check
        %p489 = pneg %p244
      $region70: #{tpu_custom_call.1} parent=39 // pred_check_branch
        %491 = sbr.rel (%p489) target = $region72
      $region71: #{tpu_custom_call.1} parent=39 // pred_region
        %p492 = scmp.lt.s32.totalorder %s21, 1
        %s493 = scalar_select %p492, %s21, 1
        %s494 = smul.addr %s493, 16
        %s495 = smul.addr %s494, 4
        %s496 = scalar_lea.vmem %s8, %s495
      $region72: #{tpu_custom_call.1} parent=39 // pred_fallthru
        _
      // Predicated region
      $region73: #{tpu_custom_call.1} parent=39 // pred_check
        %p497 = pneg %p270
      $region74: #{tpu_custom_call.1} parent=39 // pred_check_branch
        %499 = sbr.rel (%p497) target = $region76
      $region75: #{tpu_custom_call.1} parent=39 // pred_region
        %p500 = scmp.lt.s32.totalorder %s21, 1
        %s501 = scalar_select %p500, %s21, 1
        %s502 = scalar_lea.vmem %s9, %s501
      $region76: #{tpu_custom_call.1} parent=39 // pred_fallthru
        _
    $region40: #{tpu_custom_call.1} parent=5 // pred_fallthru
      _
    %p503 = scmp.le.s32.totalorder 1, %s21
    %p504 = scmp.lt.s32.totalorder %s21, 3
    %p505 = pnand %p503, %p504
    %p506 = pneg %p505
    // Predicated region
    $region77: #{tpu_custom_call.1} parent=5 // pred_check
      _
    $region78: #{tpu_custom_call.1} parent=5 // pred_check_branch
      %508 = sbr.rel (%p505) target = $region80
    $region79: #{tpu_custom_call.1} parent=5 // pred_region
      %s509 = ssub.s32 %s21, 1
      %p510 = pneg %p42
      %p511 = pneg %p39
      %p512 = scmp.lt.s32.totalorder %s26, 1
      %s513 = scalar_select %p512, %s26, 1
      %s514 = smul.addr %s513, 12
      %s515 = smul.addr %s514, 4
      %s516 = scalar_lea.vmem %s1, %s515
      %p517 = pneg %p68
      %p518 = pneg %p65
      %p519 = scmp.lt.s32.totalorder %s26, 1
      %s520 = scalar_select %p519, %s26, 1
      %s521 = smul.addr %s520, 4
      %s522 = smul.addr %s521, 4
      %s523 = scalar_lea.vmem %s2, %s522
      %p524 = pneg %p94
      %p525 = pneg %p91
      %p526 = scmp.lt.s32.totalorder %s26, 1
      %s527 = scalar_select %p526, %s26, 1
      %s528 = scalar_lea.vmem %s3, %s527
      %p529 = pneg %p120
      %p530 = pneg %p117
      %p531 = scmp.lt.s32.totalorder %s26, 1
      %s532 = scalar_select %p531, %s26, 1
      %s533 = smul.addr %s532, 2
      %s534 = scalar_lea.vmem %s4, %s533
      %p535 = pneg %p146
      %p536 = pneg %p143
      %p537 = scmp.lt.s32.totalorder %s26, 1
      %s538 = scalar_select %p537, %s26, 1
      %s539 = smul.addr %s538, 2
      %s540 = scalar_lea.vmem %s5, %s539
      %p541 = pneg %p172
      %p542 = pneg %p169
      %p543 = scmp.lt.s32.totalorder %s26, 1
      %s544 = scalar_select %p543, %s26, 1
      %s545 = smul.addr %s544, 4
      %s546 = smul.addr %s545, 4
      %s547 = scalar_lea.vmem %s6, %s546
      %p548 = pneg %p198
      %p549 = pneg %p195
      %p550 = scmp.lt.s32.totalorder %s26, 1
      %s551 = scalar_select %p550, %s26, 1
      %s552 = scalar_lea.vmem %s7, %s551
      %p553 = pneg %p224
      %p554 = pneg %p221
      %p555 = scmp.lt.s32.totalorder %s26, 1
      %s556 = scalar_select %p555, %s26, 1
      %s557 = smul.addr %s556, 16
      %s558 = smul.addr %s557, 4
      %s559 = scalar_lea.vmem %s8, %s558
      %p560 = pneg %p250
      %p561 = pneg %p247
      %p562 = scmp.lt.s32.totalorder %s26, 1
      %s563 = scalar_select %p562, %s26, 1
      %s564 = scalar_lea.vmem %s9, %s563
      %p565 = pneg %p276
      %p566 = pneg %p273
      %p567 = pneg %p297
      %p568 = pneg %p294
      %p569 = pneg %p318
      %p570 = pneg %p315
      %p571 = pneg %p339
      %p572 = pneg %p336
      %p573 = pneg %p360
      %p574 = pneg %p357
      %p575 = pneg %p381
      %p576 = pneg %p378
      %p577 = pneg %p402
      %p578 = pneg %p399
      %p579 = scmp.lt.s32.totalorder %s26, 1
      %s580 = scalar_select %p579, %s26, 1
      %s581 = smul.addr %s580, 12
      %s582 = smul.addr %s581, 4
      %s583 = scalar_lea.vmem %s1, %s582
      %p584 = scmp.lt.s32.totalorder %s26, 1
      %s585 = scalar_select %p584, %s26, 1
      %s586 = smul.addr %s585, 4
      %s587 = smul.addr %s586, 4
      %s588 = scalar_lea.vmem %s2, %s587
      %p589 = scmp.lt.s32.totalorder %s26, 1
      %s590 = scalar_select %p589, %s26, 1
      %s591 = scalar_lea.vmem %s3, %s590
      %p592 = scmp.lt.s32.totalorder %s26, 1
      %s593 = scalar_select %p592, %s26, 1
      %s594 = smul.addr %s593, 2
      %s595 = scalar_lea.vmem %s4, %s594
      %p596 = scmp.lt.s32.totalorder %s26, 1
      %s597 = scalar_select %p596, %s26, 1
      %s598 = smul.addr %s597, 2
      %s599 = scalar_lea.vmem %s5, %s598
      %p600 = scmp.lt.s32.totalorder %s26, 1
      %s601 = scalar_select %p600, %s26, 1
      %s602 = smul.addr %s601, 4
      %s603 = smul.addr %s602, 4
      %s604 = scalar_lea.vmem %s6, %s603
      %p605 = scmp.lt.s32.totalorder %s26, 1
      %s606 = scalar_select %p605, %s26, 1
      %s607 = scalar_lea.vmem %s7, %s606
      %p608 = scmp.lt.s32.totalorder %s26, 1
      %s609 = scalar_select %p608, %s26, 1
      %s610 = smul.addr %s609, 16
      %s611 = smul.addr %s610, 4
      %s612 = scalar_lea.vmem %s8, %s611
      %p613 = scmp.lt.s32.totalorder %s26, 1
      %s614 = scalar_select %p613, %s26, 1
      %s615 = scalar_lea.vmem %s9, %s614
      %p617 = scmp.eq.s32.totalorder %s26, 0
      // Predicated region
      $region81: #{tpu_custom_call.1} parent=79 // pred_check
        %p618 = pneg %p617
      $region82: #{tpu_custom_call.1} parent=79 // pred_check_branch
        %620 = sbr.rel (%p618) target = $region84
      $region83: #{tpu_custom_call.1} parent=79 // pred_region
        %v621 = vld [vmem:[%s0] sm:$0x1f]
        %v622 = vld [vmem:[%s0 + $0x8] sm:$0x1f]
        %vm623 = vcmask 258048
        %624 = vst.msk [vmem:[#allocation2] sm:$0x1f] %vm623, %v621
        %625 = vst.msk [vmem:[#allocation2 + $0x8] sm:$0x1f] %vm623, %v622
      $region84: #{tpu_custom_call.1} parent=79 // pred_fallthru
        _
      %v626 = vld [vmem:[%s583] sm:$0xf]
      %v627 = vld [vmem:[%s583 + $0x4] sm:$0xf]
      %v628 = vld [vmem:[%s583 + $0x8] sm:$0xf]
      %v629 = vld [vmem:[%s583 + $0xc] sm:$0xf]
      %s630 = scalar_lea.vmem %s583, 16
      %v631 = vld [vmem:[%s630] sm:$0xf]
      %v632 = vld [vmem:[%s630 + $0x4] sm:$0xf]
      %v633 = vld [vmem:[%s630 + $0x8] sm:$0xf]
      %v634 = vld [vmem:[%s630 + $0xc] sm:$0xf]
      %s635 = scalar_lea.vmem %s583, 32
      %v636 = vld [vmem:[%s635] sm:$0xf]
      %v637 = vld [vmem:[%s635 + $0x4] sm:$0xf]
      %v638 = vld [vmem:[%s635 + $0x8] sm:$0xf]
      %v639 = vld [vmem:[%s635 + $0xc] sm:$0xf]
      %v640 = vld [vmem:[%s588] sm:$0xf]
      %v641 = vld [vmem:[%s588 + $0x4] sm:$0xf]
      %v642 = vld [vmem:[%s588 + $0x8] sm:$0xf]
      %v643 = vld [vmem:[%s588 + $0xc] sm:$0xf]
      %v644 = vld [vmem:[%s591] sm:$0x1]
      %v645 = vld [vmem:[%s595] sm:$0x3]
      %v646 = vld [vmem:[%s599] sm:$0x3]
      %v647 = vld [vmem:[%s604] sm:$0xf]
      %v648 = vld [vmem:[%s604 + $0x4] sm:$0xf]
      %v649 = vld [vmem:[%s604 + $0x8] sm:$0xf]
      %v650 = vld [vmem:[%s604 + $0xc] sm:$0xf]
      %v651 = vld [vmem:[%s607] sm:$0x1]
      %v652 = vld [vmem:[%s612] sm:$0xf]
      %v653 = vld [vmem:[%s612 + $0x4] sm:$0xf]
      %v654 = vld [vmem:[%s612 + $0x8] sm:$0xf]
      %v655 = vld [vmem:[%s612 + $0xc] sm:$0xf]
      %v656 = vld [vmem:[%s612 + $0x10] sm:$0xf]
      %v657 = vld [vmem:[%s612 + $0x14] sm:$0xf]
      %v658 = vld [vmem:[%s612 + $0x18] sm:$0xf]
      %v659 = vld [vmem:[%s612 + $0x1c] sm:$0xf]
      %v660 = vld [vmem:[%s612 + $0x20] sm:$0xf]
      %v661 = vld [vmem:[%s612 + $0x24] sm:$0xf]
      %v662 = vld [vmem:[%s612 + $0x28] sm:$0xf]
      %v663 = vld [vmem:[%s612 + $0x2c] sm:$0xf]
      %v664 = vld [vmem:[%s612 + $0x30] sm:$0xf]
      %v665 = vld [vmem:[%s612 + $0x34] sm:$0xf]
      %v666 = vld [vmem:[%s612 + $0x38] sm:$0xf]
      %v667 = vld [vmem:[%s612 + $0x3c] sm:$0xf]
      %v668 = vld [vmem:[%s615] sm:$0x1]
      %v669 = vld [vmem:[%s12] sm:$0xf]
      %v670 = vld [vmem:[%s12 + $0x4] sm:$0xf]
      %v671 = vld [vmem:[%s12 + $0x8] sm:$0xf]
      %v672 = vld [vmem:[%s12 + $0xc] sm:$0xf]
      %v673 = vld [vmem:[%s12 + $0x10] sm:$0xf]
      %v674 = vld [vmem:[%s13] sm:$0xff]
      %v675 = vld [vmem:[%s13 + $0x8] sm:$0xff]
      %v676 = vld [vmem:[%s13 + $0x10] sm:$0xff]
      %v677 = vld [vmem:[%s13 + $0x18] sm:$0xff]
      %v678 = vld [vmem:[%s13 + $0x20] sm:$0xff]
      %v679 = vld [vmem:[%s14] sm:$0xff]
      %v680 = vld [vmem:[%s14 + $0x8] sm:$0xff]
      %v681 = vld [vmem:[%s14 + $0x10] sm:$0xff]
      %v682 = vld [vmem:[%s14 + $0x18] sm:$0xff]
      %v683 = vld [vmem:[%s14 + $0x20] sm:$0xff]
      %v684 = vld [vmem:[#allocation2] sm:$0x1f]
      %v685 = vpack.c.bf16 %v684, %v684
      %v690 = vunpack.c.l.b16 %v626
      %v691 = vunpack.c.l.b16 %v627
      %v692 = vunpack.c.l.b16 %v628
      %v693 = vunpack.c.l.b16 %v629
      %v694 = vpack.c.b16 %v691, %v690
      %v695 = vpack.c.b16 %v693, %v692
      %vm698 = vcmask 261120
      %v700 = vsel %vm698, %v685, 0
      %702 = vmatprep.subr.bf16.mxu0 0
      %703 = vmatpush1.bf16.msra.mxu0 0
      %704 = vmatprep.subr.bf16.mxu0 0
      %705 = vmatpush1.bf16.msra.mxu0 0
      %706 = vmatprep.subr.bf16.mxu0 0
      %707 = vmatpush1.bf16.msra.mxu0 0
      %708 = vmatprep.subr.bf16.mxu0 0
      %709 = vmatpush1.bf16.msra.mxu0 0
      %710 = vmatprep.subr.bf16.mxu0 0
      %711 = vmatpush1.bf16.msra.mxu0 0
      %712 = vmatprep.subr.bf16.mxu0 0
      %713 = vmatpush1.bf16.msra.mxu0 0
      %714 = vmatprep.subr.bf16.mxu0 0
      %715 = vmatpush1.bf16.msra.mxu0 %v695
      %716 = vmatprep.subr.bf16.mxu0 0
      %717 = vmatpush1.bf16.msra.mxu0 %v694
      %718 = vmatprep.subr.bf16.mxu0 0
      %719 = vmatpush2.bf16.msra.mxu0 0
      %720 = vmatprep.subr.bf16.mxu0 0
      %721 = vmatpush2.bf16.msra.mxu0 0
      %722 = vmatprep.subr.bf16.mxu0 0
      %723 = vmatpush2.bf16.msra.mxu0 0
      %724 = vmatprep.subr.bf16.mxu0 0
      %725 = vmatpush2.bf16.msra.mxu0 0
      %726 = vmatprep.subr.bf16.mxu0 0
      %727 = vmatpush2.bf16.msra.mxu0 0
      %728 = vmatprep.subr.bf16.mxu0 0
      %729 = vmatpush2.bf16.msra.mxu0 0
      %730 = vmatprep.subr.bf16.mxu0 0
      %731 = vmatpush2.bf16.msra.mxu0 0
      %732 = vmatprep.subr.bf16.mxu0 0
      %733 = vmatpush2.bf16.msra.mxu0 0
      %734 = vmatprep.mubr.bf16.mxu0 0
      %735 = vmatmul.mubr.bf16.gmra.mxu0 %v700
      %v736 = vpop.f32.mrf.mxu0
      %v737 = vadd.f32 0.0, %v736
      %v738 = vpop.f32.mrf.mxu0
      %v739 = vpop.f32.mrf.mxu0
      %v740 = vpop.f32.mrf.mxu0
      %741 = vdwg.mxu0
      %v746 = vunpack.c.l.b16 %v631
      %v747 = vunpack.c.l.b16 %v632
      %v748 = vunpack.c.l.b16 %v633
      %v749 = vunpack.c.l.b16 %v634
      %v750 = vpack.c.b16 %v747, %v746
      %v751 = vpack.c.b16 %v749, %v748
      %754 = vmatprep.subr.bf16.mxu0 0
      %755 = vmatpush1.bf16.msra.mxu0 0
      %756 = vmatprep.subr.bf16.mxu0 0
      %757 = vmatpush1.bf16.msra.mxu0 0
      %758 = vmatprep.subr.bf16.mxu0 0
      %759 = vmatpush1.bf16.msra.mxu0 0
      %760 = vmatprep.subr.bf16.mxu0 0
      %761 = vmatpush1.bf16.msra.mxu0 0
      %762 = vmatprep.subr.bf16.mxu0 0
      %763 = vmatpush1.bf16.msra.mxu0 0
      %764 = vmatprep.subr.bf16.mxu0 0
      %765 = vmatpush1.bf16.msra.mxu0 0
      %766 = vmatprep.subr.bf16.mxu0 0
      %767 = vmatpush1.bf16.msra.mxu0 %v751
      %768 = vmatprep.subr.bf16.mxu0 0
      %769 = vmatpush1.bf16.msra.mxu0 %v750
      %770 = vmatprep.subr.bf16.mxu0 0
      %771 = vmatpush2.bf16.msra.mxu0 0
      %772 = vmatprep.subr.bf16.mxu0 0
      %773 = vmatpush2.bf16.msra.mxu0 0
      %774 = vmatprep.subr.bf16.mxu0 0
      %775 = vmatpush2.bf16.msra.mxu0 0
      %776 = vmatprep.subr.bf16.mxu0 0
      %777 = vmatpush2.bf16.msra.mxu0 0
      %778 = vmatprep.subr.bf16.mxu0 0
      %779 = vmatpush2.bf16.msra.mxu0 0
      %780 = vmatprep.subr.bf16.mxu0 0
      %781 = vmatpush2.bf16.msra.mxu0 0
      %782 = vmatprep.subr.bf16.mxu0 0
      %783 = vmatpush2.bf16.msra.mxu0 0
      %784 = vmatprep.subr.bf16.mxu0 0
      %785 = vmatpush2.bf16.msra.mxu0 0
      %786 = vmatprep.mubr.bf16.mxu0 0
      %787 = vmatmul.mubr.bf16.gmra.mxu0 %v700
      %v788 = vpop.f32.mrf.mxu0
      %v789 = vadd.f32 0.0, %v788
      %v790 = vpop.f32.mrf.mxu0
      %v791 = vpop.f32.mrf.mxu0
      %v792 = vpop.f32.mrf.mxu0
      %793 = vdwg.mxu0
      %v798 = vunpack.c.l.b16 %v636
      %v799 = vunpack.c.l.b16 %v637
      %v800 = vunpack.c.l.b16 %v638
      %v801 = vunpack.c.l.b16 %v639
      %v802 = vpack.c.b16 %v799, %v798
      %v803 = vpack.c.b16 %v801, %v800
      %806 = vmatprep.subr.bf16.mxu0 0
      %807 = vmatpush1.bf16.msra.mxu0 0
      %808 = vmatprep.subr.bf16.mxu0 0
      %809 = vmatpush1.bf16.msra.mxu0 0
      %810 = vmatprep.subr.bf16.mxu0 0
      %811 = vmatpush1.bf16.msra.mxu0 0
      %812 = vmatprep.subr.bf16.mxu0 0
      %813 = vmatpush1.bf16.msra.mxu0 0
      %814 = vmatprep.subr.bf16.mxu0 0
      %815 = vmatpush1.bf16.msra.mxu0 0
      %816 = vmatprep.subr.bf16.mxu0 0
      %817 = vmatpush1.bf16.msra.mxu0 0
      %818 = vmatprep.subr.bf16.mxu0 0
      %819 = vmatpush1.bf16.msra.mxu0 %v803
      %820 = vmatprep.subr.bf16.mxu0 0
      %821 = vmatpush1.bf16.msra.mxu0 %v802
      %822 = vmatprep.subr.bf16.mxu0 0
      %823 = vmatpush2.bf16.msra.mxu0 0
      %824 = vmatprep.subr.bf16.mxu0 0
      %825 = vmatpush2.bf16.msra.mxu0 0
      %826 = vmatprep.subr.bf16.mxu0 0
      %827 = vmatpush2.bf16.msra.mxu0 0
      %828 = vmatprep.subr.bf16.mxu0 0
      %829 = vmatpush2.bf16.msra.mxu0 0
      %830 = vmatprep.subr.bf16.mxu0 0
      %831 = vmatpush2.bf16.msra.mxu0 0
      %832 = vmatprep.subr.bf16.mxu0 0
      %833 = vmatpush2.bf16.msra.mxu0 0
      %834 = vmatprep.subr.bf16.mxu0 0
      %835 = vmatpush2.bf16.msra.mxu0 0
      %836 = vmatprep.subr.bf16.mxu0 0
      %837 = vmatpush2.bf16.msra.mxu0 0
      %838 = vmatprep.mubr.bf16.mxu0 0
      %839 = vmatmul.mubr.bf16.gmra.mxu0 %v700
      %v840 = vpop.f32.mrf.mxu0
      %v841 = vadd.f32 0.0, %v840
      %v842 = vpop.f32.mrf.mxu0
      %v843 = vpop.f32.mrf.mxu0
      %v844 = vpop.f32.mrf.mxu0
      %845 = vdwg.mxu0
      %v846 = vpack.c.bf16 %v789, %v789
      %v852 = vunpack.c.l.b16 %v669
      %v853 = vunpack.c.l.b16 %v670
      %v854 = vunpack.c.l.b16 %v671
      %v855 = vunpack.c.l.b16 %v672
      %v856 = vunpack.c.l.b16 %v673
      %v857 = vpack.c.b16 %v853, %v852
      %v858 = vpack.c.b16 %v855, %v854
      %v859 = vpack.c.b16 %v856, %v856
      %vm860 = vcmask 39936
      %v862 = vsel %vm860, %v857, 0
      %v865 = vsel %vm860, %v858, 0
      %v868 = vsel %vm860, %v859, 0
      %vm870 = vcmask 1041408
      %vm871 = vcmask 1042432
      %v872 = vsel %vm870, 4294967295, 65535
      %v873 = vsel %vm871, %v872, 0
      %v875 = vand.u32 %v846, %v873
      %877 = vmatprep.subr.bf16.mxu0 0
      %878 = vmatpush1.bf16.msra.mxu0 0
      %879 = vmatprep.subr.bf16.mxu0 0
      %880 = vmatpush1.bf16.msra.mxu0 0
      %881 = vmatprep.subr.bf16.mxu0 0
      %882 = vmatpush1.bf16.msra.mxu0 0
      %883 = vmatprep.subr.bf16.mxu0 0
      %884 = vmatpush1.bf16.msra.mxu0 0
      %885 = vmatprep.subr.bf16.mxu0 0
      %886 = vmatpush1.bf16.msra.mxu0 0
      %887 = vmatprep.subr.bf16.mxu0 0
      %888 = vmatpush1.bf16.msra.mxu0 0
      %889 = vmatprep.subr.bf16.mxu0 0
      %890 = vmatpush1.bf16.msra.mxu0 0
      %891 = vmatprep.subr.bf16.mxu0 0
      %892 = vmatpush1.bf16.msra.mxu0 %v875
      %893 = vmatprep.subr.bf16.mxu0 0
      %894 = vmatpush2.bf16.msra.mxu0 0
      %895 = vmatprep.subr.bf16.mxu0 0
      %896 = vmatpush2.bf16.msra.mxu0 0
      %897 = vmatprep.subr.bf16.mxu0 0
      %898 = vmatpush2.bf16.msra.mxu0 0
      %899 = vmatprep.subr.bf16.mxu0 0
      %900 = vmatpush2.bf16.msra.mxu0 0
      %901 = vmatprep.subr.bf16.mxu0 0
      %902 = vmatpush2.bf16.msra.mxu0 0
      %903 = vmatprep.subr.bf16.mxu0 0
      %904 = vmatpush2.bf16.msra.mxu0 0
      %905 = vmatprep.subr.bf16.mxu0 0
      %906 = vmatpush2.bf16.msra.mxu0 0
      %907 = vmatprep.subr.bf16.mxu0 0
      %908 = vmatpush2.bf16.msra.mxu0 0
      %909 = vmatprep.mubr.bf16.mxu0 0
      %910 = vmatmul.mubr.bf16.gmra.mxu0 %v862
      %v911 = vpop.f32.mrf.mxu0
      %v912 = vadd.f32 0.0, %v911
      %v913 = vpop.f32.mrf.mxu0
      %v914 = vpop.f32.mrf.mxu0
      %v915 = vadd.f32 0.0, %v914
      %v916 = vpop.f32.mrf.mxu0
      %917 = vmatprep.mubr.bf16.mxu0 0
      %918 = vmatmul.mubr.bf16.gmra.mxu0 %v865
      %v919 = vpop.f32.mrf.mxu0
      %v920 = vadd.f32 0.0, %v919
      %v921 = vpop.f32.mrf.mxu0
      %v922 = vpop.f32.mrf.mxu0
      %v923 = vadd.f32 0.0, %v922
      %v924 = vpop.f32.mrf.mxu0
      %925 = vmatprep.mubr.bf16.mxu0 0
      %926 = vmatmul.mubr.bf16.gmra.mxu0 %v868
      %v927 = vpop.f32.mrf.mxu0
      %v928 = vadd.f32 0.0, %v927
      %v929 = vpop.f32.mrf.mxu0
      %v930 = vpop.f32.mrf.mxu0
      %v931 = vpop.f32.mrf.mxu0
      %932 = vdwg.mxu0
      %v933 = vmul.f32 %v912, %v674
      %v934 = vmul.f32 %v915, %v675
      %v935 = vmul.f32 %v920, %v676
      %v936 = vmul.f32 %v923, %v677
      %v937 = vmul.f32 %v928, %v678
      %v938 = vpack.c.bf16 %v841, %v841
      %v940 = vand.u32 %v938, %v873
      %942 = vmatprep.subr.bf16.mxu0 0
      %943 = vmatpush1.bf16.msra.mxu0 0
      %944 = vmatprep.subr.bf16.mxu0 0
      %945 = vmatpush1.bf16.msra.mxu0 0
      %946 = vmatprep.subr.bf16.mxu0 0
      %947 = vmatpush1.bf16.msra.mxu0 0
      %948 = vmatprep.subr.bf16.mxu0 0
      %949 = vmatpush1.bf16.msra.mxu0 0
      %950 = vmatprep.subr.bf16.mxu0 0
      %951 = vmatpush1.bf16.msra.mxu0 0
      %952 = vmatprep.subr.bf16.mxu0 0
      %953 = vmatpush1.bf16.msra.mxu0 0
      %954 = vmatprep.subr.bf16.mxu0 0
      %955 = vmatpush1.bf16.msra.mxu0 0
      %956 = vmatprep.subr.bf16.mxu0 0
      %957 = vmatpush1.bf16.msra.mxu0 %v940
      %958 = vmatprep.subr.bf16.mxu0 0
      %959 = vmatpush2.bf16.msra.mxu0 0
      %960 = vmatprep.subr.bf16.mxu0 0
      %961 = vmatpush2.bf16.msra.mxu0 0
      %962 = vmatprep.subr.bf16.mxu0 0
      %963 = vmatpush2.bf16.msra.mxu0 0
      %964 = vmatprep.subr.bf16.mxu0 0
      %965 = vmatpush2.bf16.msra.mxu0 0
      %966 = vmatprep.subr.bf16.mxu0 0
      %967 = vmatpush2.bf16.msra.mxu0 0
      %968 = vmatprep.subr.bf16.mxu0 0
      %969 = vmatpush2.bf16.msra.mxu0 0
      %970 = vmatprep.subr.bf16.mxu0 0
      %971 = vmatpush2.bf16.msra.mxu0 0
      %972 = vmatprep.subr.bf16.mxu0 0
      %973 = vmatpush2.bf16.msra.mxu0 0
      %974 = vmatprep.mubr.bf16.mxu0 0
      %975 = vmatmul.mubr.bf16.gmra.mxu0 %v862
      %v976 = vpop.f32.mrf.mxu0
      %v977 = vadd.f32 0.0, %v976
      %v978 = vpop.f32.mrf.mxu0
      %v979 = vpop.f32.mrf.mxu0
      %v980 = vadd.f32 0.0, %v979
      %v981 = vpop.f32.mrf.mxu0
      %982 = vmatprep.mubr.bf16.mxu0 0
      %983 = vmatmul.mubr.bf16.gmra.mxu0 %v865
      %v984 = vpop.f32.mrf.mxu0
      %v985 = vadd.f32 0.0, %v984
      %v986 = vpop.f32.mrf.mxu0
      %v987 = vpop.f32.mrf.mxu0
      %v988 = vadd.f32 0.0, %v987
      %v989 = vpop.f32.mrf.mxu0
      %990 = vmatprep.mubr.bf16.mxu0 0
      %991 = vmatmul.mubr.bf16.gmra.mxu0 %v868
      %v992 = vpop.f32.mrf.mxu0
      %v993 = vadd.f32 0.0, %v992
      %v994 = vpop.f32.mrf.mxu0
      %v995 = vpop.f32.mrf.mxu0
      %v996 = vpop.f32.mrf.mxu0
      %997 = vdwg.mxu0
      %v998 = vmul.f32 %v977, %v674
      %v999 = vmul.f32 %v980, %v675
      %v1000 = vmul.f32 %v985, %v676
      %v1001 = vmul.f32 %v988, %v677
      %v1002 = vmul.f32 %v993, %v678
      %v1003 = vpack.c.bf16 %v737, %v737
      %v1004 = vpack.c.bf16 %v934, %v933
      %v1005 = vpack.c.bf16 %v936, %v935
      %v1006 = vpack.c.bf16 %v937, %v937
      %v1008 = vsel %vm698, %v1003, 0
      %v1011 = vsel %vm698, %v1004, 0
      %v1014 = vsel %vm698, %v1005, 0
      %v1017 = vsel %vm698, %v1006, 0
      %1019 = vmatprep.subr.bf16.mxu0 0
      %1020 = vmatpush1.bf16.xpose.msra.mxu0 0
      %1021 = vmatprep.subr.bf16.mxu0 0
      %1022 = vmatpush1.bf16.xpose.msra.mxu0 0
      %1023 = vmatprep.subr.bf16.mxu0 0
      %1024 = vmatpush1.bf16.xpose.msra.mxu0 0
      %1025 = vmatprep.subr.bf16.mxu0 0
      %1026 = vmatpush1.bf16.xpose.msra.mxu0 0
      %1027 = vmatprep.subr.bf16.mxu0 0
      %1028 = vmatpush1.bf16.xpose.msra.mxu0 0
      %1029 = vmatprep.subr.bf16.mxu0 0
      %1030 = vmatpush1.bf16.xpose.msra.mxu0 %v1017
      %1031 = vmatprep.subr.bf16.mxu0 0
      %1032 = vmatpush1.bf16.xpose.msra.mxu0 %v1014
      %1033 = vmatprep.subr.bf16.mxu0 0
      %1034 = vmatpush1.bf16.xpose.msra.mxu0 %v1011
      %1035 = vmatprep.subr.bf16.mxu0 0
      %1036 = vmatpush2.bf16.xpose.msra.mxu0 0
      %1037 = vmatprep.subr.bf16.mxu0 0
      %1038 = vmatpush2.bf16.xpose.msra.mxu0 0
      %1039 = vmatprep.subr.bf16.mxu0 0
      %1040 = vmatpush2.bf16.xpose.msra.mxu0 0
      %1041 = vmatprep.subr.bf16.mxu0 0
      %1042 = vmatpush2.bf16.xpose.msra.mxu0 0
      %1043 = vmatprep.subr.bf16.mxu0 0
      %1044 = vmatpush2.bf16.xpose.msra.mxu0 0
      %1045 = vmatprep.subr.bf16.mxu0 0
      %1046 = vmatpush2.bf16.xpose.msra.mxu0 0
      %1047 = vmatprep.subr.bf16.mxu0 0
      %1048 = vmatpush2.bf16.xpose.msra.mxu0 0
      %1049 = vmatprep.subr.bf16.mxu0 0
      %1050 = vmatpush2.bf16.xpose.msra.mxu0 0
      %1051 = vmatprep.mubr.bf16.mxu0 0
      %1052 = vmatmul.mubr.bf16.gmra.mxu0 %v1008
      %v1053 = vpop.f32.mrf.mxu0
      %v1054 = vadd.f32 0.0, %v1053
      %v1055 = vpop.f32.mrf.mxu0
      %v1056 = vpop.f32.mrf.mxu0
      %v1057 = vpop.f32.mrf.mxu0
      %1058 = vdwg.mxu0
      %v1059 = vmul.f32 %v1054, 0.5
      %vm1060 = vcmask 323584
      %v1061 = vsel %vm1060, %v1059, -inf
      %1062 = vmax.xlane.f32.xlu0 %v1061
      %v1063 = vpop.xlane.xlu0 %1062
      %v1064 = vsub.f32 %v1059, %v1063
      %v1065 = vmul.f32 %v1064, 1.442695
      %v1066 = vpow.pop %v1065
      %vm1067 = vcmask 326656
      %v1069 = vsel %vm1067, %v1066, 0
      %1071 = vmatprep.subr.mxu0 0.0
      %1072 = vmatpush1.msra.mxu0 0.0
      %1073 = vmatprep.subr.mxu0 0.0
      %1074 = vmatpush1.msra.mxu0 0.0
      %1075 = vmatprep.subr.mxu0 0.0
      %1076 = vmatpush1.msra.mxu0 0.0
      %1077 = vmatprep.subr.mxu0 0.0
      %1078 = vmatpush1.msra.mxu0 0.0
      %1079 = vmatprep.subr.mxu0 0.0
      %1080 = vmatpush1.msra.mxu0 0.0
      %1081 = vmatprep.subr.mxu0 0.0
      %1082 = vmatpush1.msra.mxu0 0.0
      %1083 = vmatprep.subr.mxu0 0.0
      %1084 = vmatpush1.msra.mxu0 0.0
      %1085 = vmatprep.subr.mxu0 0.0
      %1086 = vmatpush1.msra.mxu0 0.0
      %1087 = vmatprep.subr.mxu0 0.0
      %1088 = vmatpush1.msra.mxu0 0.0
      %1089 = vmatprep.subr.mxu0 0.0
      %1090 = vmatpush1.msra.mxu0 0.0
      %1091 = vmatprep.subr.mxu0 0.0
      %1092 = vmatpush1.msra.mxu0 0.0
      %1093 = vmatprep.subr.mxu0 0.0
      %1094 = vmatpush1.msra.mxu0 %v683
      %1095 = vmatprep.subr.mxu0 0.0
      %1096 = vmatpush1.msra.mxu0 %v682
      %1097 = vmatprep.subr.mxu0 0.0
      %1098 = vmatpush1.msra.mxu0 %v681
      %1099 = vmatprep.subr.mxu0 0.0
      %1100 = vmatpush1.msra.mxu0 %v680
      %1101 = vmatprep.subr.mxu0 0.0
      %1102 = vmatpush1.msra.mxu0 %v679
      %1103 = vmatprep.subr.mxu0 0.0
      %1104 = vmatpush2.msra.mxu0 0.0
      %1105 = vmatprep.subr.mxu0 0.0
      %1106 = vmatpush2.msra.mxu0 0.0
      %1107 = vmatprep.subr.mxu0 0.0
      %1108 = vmatpush2.msra.mxu0 0.0
      %1109 = vmatprep.subr.mxu0 0.0
      %1110 = vmatpush2.msra.mxu0 0.0
      %1111 = vmatprep.subr.mxu0 0.0
      %1112 = vmatpush2.msra.mxu0 0.0
      %1113 = vmatprep.subr.mxu0 0.0
      %1114 = vmatpush2.msra.mxu0 0.0
      %1115 = vmatprep.subr.mxu0 0.0
      %1116 = vmatpush2.msra.mxu0 0.0
      %1117 = vmatprep.subr.mxu0 0.0
      %1118 = vmatpush2.msra.mxu0 0.0
      %1119 = vmatprep.subr.mxu0 0.0
      %1120 = vmatpush2.msra.mxu0 0.0
      %1121 = vmatprep.subr.mxu0 0.0
      %1122 = vmatpush2.msra.mxu0 0.0
      %1123 = vmatprep.subr.mxu0 0.0
      %1124 = vmatpush2.msra.mxu0 0.0
      %1125 = vmatprep.subr.mxu0 0.0
      %1126 = vmatpush2.msra.mxu0 0.0
      %1127 = vmatprep.subr.mxu0 0.0
      %1128 = vmatpush2.msra.mxu0 0.0
      %1129 = vmatprep.subr.mxu0 0.0
      %1130 = vmatpush2.msra.mxu0 0.0
      %1131 = vmatprep.subr.mxu0 0.0
      %1132 = vmatpush2.msra.mxu0 0.0
      %1133 = vmatprep.subr.mxu0 0.0
      %1134 = vmatpush2.msra.mxu0 0.0
      %1135 = vmatprep.mubr.f32.mxu0 0.0
      %1136 = vmatmul.mubr.f32.gmra.mxu0 %v1069
      %v1137 = vpop.f32.mrf.mxu0
      %v1138 = vadd.f32 0.0, %v1137
      %v1139 = vpop.f32.mrf.mxu0
      %1140 = vdwg.mxu0
      %vm1141 = vcmask 64512
      %v1143 = vsel %vm1141, %v1138, 0
      %v1146 = vsel %vm1141, %v679, 0
      %v1149 = vsel %vm1141, %v680, 0
      %v1152 = vsel %vm1141, %v681, 0
      %v1155 = vsel %vm1141, %v682, 0
      %v1158 = vsel %vm1141, %v683, 0
      %1160 = vmatprep.subr.mxu0 0.0
      %1161 = vmatpush1.xpose.msra.mxu0 0.0
      %1162 = vmatprep.subr.mxu0 0.0
      %1163 = vmatpush1.xpose.msra.mxu0 0.0
      %1164 = vmatprep.subr.mxu0 0.0
      %1165 = vmatpush1.xpose.msra.mxu0 0.0
      %1166 = vmatprep.subr.mxu0 0.0
      %1167 = vmatpush1.xpose.msra.mxu0 0.0
      %1168 = vmatprep.subr.mxu0 0.0
      %1169 = vmatpush1.xpose.msra.mxu0 0.0
      %1170 = vmatprep.subr.mxu0 0.0
      %1171 = vmatpush1.xpose.msra.mxu0 0.0
      %1172 = vmatprep.subr.mxu0 0.0
      %1173 = vmatpush1.xpose.msra.mxu0 0.0
      %1174 = vmatprep.subr.mxu0 0.0
      %1175 = vmatpush1.xpose.msra.mxu0 0.0
      %1176 = vmatprep.subr.mxu0 0.0
      %1177 = vmatpush1.xpose.msra.mxu0 0.0
      %1178 = vmatprep.subr.mxu0 0.0
      %1179 = vmatpush1.xpose.msra.mxu0 0.0
      %1180 = vmatprep.subr.mxu0 0.0
      %1181 = vmatpush1.xpose.msra.mxu0 0.0
      %1182 = vmatprep.subr.mxu0 0.0
      %1183 = vmatpush1.xpose.msra.mxu0 %v1158
      %1184 = vmatprep.subr.mxu0 0.0
      %1185 = vmatpush1.xpose.msra.mxu0 %v1155
      %1186 = vmatprep.subr.mxu0 0.0
      %1187 = vmatpush1.xpose.msra.mxu0 %v1152
      %1188 = vmatprep.subr.mxu0 0.0
      %1189 = vmatpush1.xpose.msra.mxu0 %v1149
      %1190 = vmatprep.subr.mxu0 0.0
      %1191 = vmatpush1.xpose.msra.mxu0 %v1146
      %1192 = vmatprep.subr.mxu0 0.0
      %1193 = vmatpush2.xpose.msra.mxu0 0.0
      %1194 = vmatprep.subr.mxu0 0.0
      %1195 = vmatpush2.xpose.msra.mxu0 0.0
      %1196 = vmatprep.subr.mxu0 0.0
      %1197 = vmatpush2.xpose.msra.mxu0 0.0
      %1198 = vmatprep.subr.mxu0 0.0
      %1199 = vmatpush2.xpose.msra.mxu0 0.0
      %1200 = vmatprep.subr.mxu0 0.0
      %1201 = vmatpush2.xpose.msra.mxu0 0.0
      %1202 = vmatprep.subr.mxu0 0.0
      %1203 = vmatpush2.xpose.msra.mxu0 0.0
      %1204 = vmatprep.subr.mxu0 0.0
      %1205 = vmatpush2.xpose.msra.mxu0 0.0
      %1206 = vmatprep.subr.mxu0 0.0
      %1207 = vmatpush2.xpose.msra.mxu0 0.0
      %1208 = vmatprep.subr.mxu0 0.0
      %1209 = vmatpush2.xpose.msra.mxu0 0.0
      %1210 = vmatprep.subr.mxu0 0.0
      %1211 = vmatpush2.xpose.msra.mxu0 0.0
      %1212 = vmatprep.subr.mxu0 0.0
      %1213 = vmatpush2.xpose.msra.mxu0 0.0
      %1214 = vmatprep.subr.mxu0 0.0
      %1215 = vmatpush2.xpose.msra.mxu0 0.0
      %1216 = vmatprep.subr.mxu0 0.0
      %1217 = vmatpush2.xpose.msra.mxu0 0.0
      %1218 = vmatprep.subr.mxu0 0.0
      %1219 = vmatpush2.xpose.msra.mxu0 0.0
      %1220 = vmatprep.subr.mxu0 0.0
      %1221 = vmatpush2.xpose.msra.mxu0 0.0
      %1222 = vmatprep.subr.mxu0 0.0
      %1223 = vmatpush2.xpose.msra.mxu0 0.0
      %1224 = vmatprep.mubr.f32.mxu0 0.0
      %1225 = vmatmul.mubr.f32.gmra.mxu0 %v1143
      %v1226 = vpop.f32.mrf.mxu0
      %v1227 = vadd.f32 0.0, %v1226
      %v1228 = vpop.f32.mrf.mxu0
      %1229 = vdwg.mxu0
      %v1230 = vrcp.pop %v1227
      %v1231 = vmul.f32 %v1066, %v1230
      %v1232 = vpack.c.bf16 %v1231, %v1231
      %v1233 = vpack.c.bf16 %v999, %v998
      %v1234 = vpack.c.bf16 %v1001, %v1000
      %v1235 = vpack.c.bf16 %v1002, %v1002
      %v1237 = vsel %vm1067, %v1232, 0
      %vm1239 = vcmask 1043456
      %v1241 = vsel %vm1239, %v1235, 0
      %1243 = vmatprep.subr.bf16.mxu0 0
      %1244 = vmatpush1.bf16.msra.mxu0 0
      %1245 = vmatprep.subr.bf16.mxu0 0
      %1246 = vmatpush1.bf16.msra.mxu0 0
      %1247 = vmatprep.subr.bf16.mxu0 0
      %1248 = vmatpush1.bf16.msra.mxu0 0
      %1249 = vmatprep.subr.bf16.mxu0 0
      %1250 = vmatpush1.bf16.msra.mxu0 0
      %1251 = vmatprep.subr.bf16.mxu0 0
      %1252 = vmatpush1.bf16.msra.mxu0 0
      %1253 = vmatprep.subr.bf16.mxu0 0
      %1254 = vmatpush1.bf16.msra.mxu0 %v1241
      %1255 = vmatprep.subr.bf16.mxu0 0
      %1256 = vmatpush1.bf16.msra.mxu0 %v1234
      %1257 = vmatprep.subr.bf16.mxu0 0
      %1258 = vmatpush1.bf16.msra.mxu0 %v1233
      %1259 = vmatprep.subr.bf16.mxu0 0
      %1260 = vmatpush2.bf16.msra.mxu0 0
      %1261 = vmatprep.subr.bf16.mxu0 0
      %1262 = vmatpush2.bf16.msra.mxu0 0
      %1263 = vmatprep.subr.bf16.mxu0 0
      %1264 = vmatpush2.bf16.msra.mxu0 0
      %1265 = vmatprep.subr.bf16.mxu0 0
      %1266 = vmatpush2.bf16.msra.mxu0 0
      %1267 = vmatprep.subr.bf16.mxu0 0
      %1268 = vmatpush2.bf16.msra.mxu0 0
      %1269 = vmatprep.subr.bf16.mxu0 0
      %1270 = vmatpush2.bf16.msra.mxu0 0
      %1271 = vmatprep.subr.bf16.mxu0 0
      %1272 = vmatpush2.bf16.msra.mxu0 0
      %1273 = vmatprep.subr.bf16.mxu0 0
      %1274 = vmatpush2.bf16.msra.mxu0 0
      %1275 = vmatprep.mubr.bf16.mxu0 0
      %1276 = vmatmul.mubr.bf16.gmra.mxu0 %v1237
      %v1277 = vpop.f32.mrf.mxu0
      %v1278 = vadd.f32 0.0, %v1277
      %v1279 = vpop.f32.mrf.mxu0
      %v1280 = vpop.f32.mrf.mxu0
      %v1281 = vpop.f32.mrf.mxu0
      %1282 = vdwg.mxu0
      %v1283 = vpack.c.bf16 %v1278, %v1278
      %v1285 = vlaneseq
      %v1286 = vshrl.u32 %v1285, 7
      %v1287 = vsub.s32 0, %v1286
      %v1288 = vrot.slane %v644, %v1287
      %v1294 = vunpack.c.l.b16 %v640
      %v1295 = vunpack.c.l.b16 %v641
      %v1296 = vunpack.c.l.b16 %v642
      %v1297 = vunpack.c.l.b16 %v643
      %v1298 = vpack.c.b16 %v1295, %v1294
      %v1299 = vpack.c.b16 %v1297, %v1296
      %v1303 = vsel %vm698, %v1283, 0
      %1305 = vmatprep.subr.bf16.mxu0 0
      %1306 = vmatpush1.bf16.msra.mxu0 0
      %1307 = vmatprep.subr.bf16.mxu0 0
      %1308 = vmatpush1.bf16.msra.mxu0 0
      %1309 = vmatprep.subr.bf16.mxu0 0
      %1310 = vmatpush1.bf16.msra.mxu0 0
      %1311 = vmatprep.subr.bf16.mxu0 0
      %1312 = vmatpush1.bf16.msra.mxu0 0
      %1313 = vmatprep.subr.bf16.mxu0 0
      %1314 = vmatpush1.bf16.msra.mxu0 0
      %1315 = vmatprep.subr.bf16.mxu0 0
      %1316 = vmatpush1.bf16.msra.mxu0 0
      %1317 = vmatprep.subr.bf16.mxu0 0
      %1318 = vmatpush1.bf16.msra.mxu0 %v1299
      %1319 = vmatprep.subr.bf16.mxu0 0
      %1320 = vmatpush1.bf16.msra.mxu0 %v1298
      %1321 = vmatprep.subr.bf16.mxu0 0
      %1322 = vmatpush2.bf16.msra.mxu0 0
      %1323 = vmatprep.subr.bf16.mxu0 0
      %1324 = vmatpush2.bf16.msra.mxu0 0
      %1325 = vmatprep.subr.bf16.mxu0 0
      %1326 = vmatpush2.bf16.msra.mxu0 0
      %1327 = vmatprep.subr.bf16.mxu0 0
      %1328 = vmatpush2.bf16.msra.mxu0 0
      %1329 = vmatprep.subr.bf16.mxu0 0
      %1330 = vmatpush2.bf16.msra.mxu0 0
      %1331 = vmatprep.subr.bf16.mxu0 0
      %1332 = vmatpush2.bf16.msra.mxu0 0
      %1333 = vmatprep.subr.bf16.mxu0 0
      %1334 = vmatpush2.bf16.msra.mxu0 0
      %1335 = vmatprep.subr.bf16.mxu0 0
      %1336 = vmatpush2.bf16.msra.mxu0 0
      %1337 = vmatprep.mubr.bf16.mxu0 0
      %1338 = vmatmul.mubr.bf16.gmra.mxu0 %v1303
      %v1339 = vpop.f32.mrf.mxu0
      %v1340 = vadd.f32 %v1288, %v1339
      %v1341 = vpop.f32.mrf.mxu0
      %v1342 = vpop.f32.mrf.mxu0
      %v1343 = vpop.f32.mrf.mxu0
      %1344 = vdwg.mxu0
      %v1345 = vadd.f32 %v1340, %v684
      %vm1346 = vcmask 258048
      %v1347 = vsel %vm1346, %v1345, 0.0
      %1348 = vadd.xlane.f32.xlu0 %v1347
      %v1349 = vpop.xlane.xlu0 %1348
      %v1350 = vrcp.pop 32.0
      %v1351 = vmul.f32 %v1349, %v1350
      %v1352 = vsub.f32 %v1345, %v1351
      %v1353 = vmul.f32 %v1352, %v1352
      %v1354 = vsel %vm1346, %v1353, 0.0
      %1355 = vadd.xlane.f32.xlu0 %v1354
      %v1356 = vpop.xlane.xlu0 %1355
      %v1357 = vmul.f32 %v1356, %v1350
      %v1358 = vadd.f32 %v1357, 1e-05
      %v1359 = vrsqrt.pop %v1358
      %v1360 = vmul.f32 %v1352, %v1359
      %v1361 = vlaneseq
      %v1362 = vshrl.u32 %v1361, 7
      %v1363 = vsub.s32 0, %v1362
      %v1364 = vrot.slane %v645, %v1363
      %v1365 = vmul.f32 %v1360, %v1364
      %v1366 = vlaneseq
      %v1367 = vshrl.u32 %v1366, 7
      %v1368 = vsub.s32 0, %v1367
      %v1369 = vrot.slane %v646, %v1368
      %v1370 = vadd.f32 %v1365, %v1369
      %v1371 = vpack.c.bf16 %v1370, %v1370
      %v1373 = vlaneseq
      %v1374 = vshrl.u32 %v1373, 7
      %v1375 = vsub.s32 0, %v1374
      %v1376 = vrot.slane %v651, %v1375
      %v1382 = vunpack.c.l.b16 %v647
      %v1383 = vunpack.c.l.b16 %v648
      %v1384 = vunpack.c.l.b16 %v649
      %v1385 = vunpack.c.l.b16 %v650
      %v1386 = vpack.c.b16 %v1383, %v1382
      %v1387 = vpack.c.b16 %v1385, %v1384
      %v1391 = vsel %vm698, %v1371, 0
      %1393 = vmatprep.subr.bf16.mxu0 0
      %1394 = vmatpush1.bf16.msra.mxu0 0
      %1395 = vmatprep.subr.bf16.mxu0 0
      %1396 = vmatpush1.bf16.msra.mxu0 0
      %1397 = vmatprep.subr.bf16.mxu0 0
      %1398 = vmatpush1.bf16.msra.mxu0 0
      %1399 = vmatprep.subr.bf16.mxu0 0
      %1400 = vmatpush1.bf16.msra.mxu0 0
      %1401 = vmatprep.subr.bf16.mxu0 0
      %1402 = vmatpush1.bf16.msra.mxu0 0
      %1403 = vmatprep.subr.bf16.mxu0 0
      %1404 = vmatpush1.bf16.msra.mxu0 0
      %1405 = vmatprep.subr.bf16.mxu0 0
      %1406 = vmatpush1.bf16.msra.mxu0 %v1387
      %1407 = vmatprep.subr.bf16.mxu0 0
      %1408 = vmatpush1.bf16.msra.mxu0 %v1386
      %1409 = vmatprep.subr.bf16.mxu0 0
      %1410 = vmatpush2.bf16.msra.mxu0 0
      %1411 = vmatprep.subr.bf16.mxu0 0
      %1412 = vmatpush2.bf16.msra.mxu0 0
      %1413 = vmatprep.subr.bf16.mxu0 0
      %1414 = vmatpush2.bf16.msra.mxu0 0
      %1415 = vmatprep.subr.bf16.mxu0 0
      %1416 = vmatpush2.bf16.msra.mxu0 0
      %1417 = vmatprep.subr.bf16.mxu0 0
      %1418 = vmatpush2.bf16.msra.mxu0 0
      %1419 = vmatprep.subr.bf16.mxu0 0
      %1420 = vmatpush2.bf16.msra.mxu0 0
      %1421 = vmatprep.subr.bf16.mxu0 0
      %1422 = vmatpush2.bf16.msra.mxu0 0
      %1423 = vmatprep.subr.bf16.mxu0 0
      %1424 = vmatpush2.bf16.msra.mxu0 0
      %1425 = vmatprep.mubr.bf16.mxu0 0
      %1426 = vmatmul.mubr.bf16.gmra.mxu0 %v1391
      %v1427 = vpop.f32.mrf.mxu0
      %v1428 = vadd.f32 %v1376, %v1427
      %v1429 = vpop.f32.mrf.mxu0
      %v1430 = vpop.f32.mrf.mxu0
      %v1431 = vpop.f32.mrf.mxu0
      %1432 = vdwg.mxu0
      %v1433 = vmax.f32 %v1428, 0.0
      %v1434 = vpack.c.bf16 %v1433, %v1433
      %v1436 = vlaneseq
      %v1437 = vshrl.u32 %v1436, 7
      %v1438 = vsub.s32 0, %v1437
      %v1439 = vrot.slane %v668, %v1438
      %v1457 = vunpack.c.l.b16 %v652
      %v1458 = vunpack.c.l.b16 %v653
      %v1459 = vunpack.c.l.b16 %v654
      %v1460 = vunpack.c.l.b16 %v655
      %v1461 = vunpack.c.l.b16 %v656
      %v1462 = vunpack.c.l.b16 %v657
      %v1463 = vunpack.c.l.b16 %v658
      %v1464 = vunpack.c.l.b16 %v659
      %v1465 = vunpack.c.l.b16 %v660
      %v1466 = vunpack.c.l.b16 %v661
      %v1467 = vunpack.c.l.b16 %v662
      %v1468 = vunpack.c.l.b16 %v663
      %v1469 = vunpack.c.l.b16 %v664
      %v1470 = vunpack.c.l.b16 %v665
      %v1471 = vunpack.c.l.b16 %v666
      %v1472 = vunpack.c.l.b16 %v667
      %v1473 = vpack.c.b16 %v1458, %v1457
      %v1474 = vpack.c.b16 %v1460, %v1459
      %v1475 = vpack.c.b16 %v1462, %v1461
      %v1476 = vpack.c.b16 %v1464, %v1463
      %v1477 = vpack.c.b16 %v1466, %v1465
      %v1478 = vpack.c.b16 %v1468, %v1467
      %v1479 = vpack.c.b16 %v1470, %v1469
      %v1480 = vpack.c.b16 %v1472, %v1471
      %1489 = vmatprep.subr.bf16.mxu0 0
      %1490 = vmatpush1.bf16.msra.mxu0 %v1480
      %1491 = vmatprep.subr.bf16.mxu0 0
      %1492 = vmatpush1.bf16.msra.mxu0 %v1479
      %1493 = vmatprep.subr.bf16.mxu0 0
      %1494 = vmatpush1.bf16.msra.mxu0 %v1478
      %1495 = vmatprep.subr.bf16.mxu0 0
      %1496 = vmatpush1.bf16.msra.mxu0 %v1477
      %1497 = vmatprep.subr.bf16.mxu0 0
      %1498 = vmatpush1.bf16.msra.mxu0 %v1476
      %1499 = vmatprep.subr.bf16.mxu0 0
      %1500 = vmatpush1.bf16.msra.mxu0 %v1475
      %1501 = vmatprep.subr.bf16.mxu0 0
      %1502 = vmatpush1.bf16.msra.mxu0 %v1474
      %1503 = vmatprep.subr.bf16.mxu0 0
      %1504 = vmatpush1.bf16.msra.mxu0 %v1473
      %1505 = vmatprep.subr.bf16.mxu0 0
      %1506 = vmatpush2.bf16.msra.mxu0 0
      %1507 = vmatprep.subr.bf16.mxu0 0
      %1508 = vmatpush2.bf16.msra.mxu0 0
      %1509 = vmatprep.subr.bf16.mxu0 0
      %1510 = vmatpush2.bf16.msra.mxu0 0
      %1511 = vmatprep.subr.bf16.mxu0 0
      %1512 = vmatpush2.bf16.msra.mxu0 0
      %1513 = vmatprep.subr.bf16.mxu0 0
      %1514 = vmatpush2.bf16.msra.mxu0 0
      %1515 = vmatprep.subr.bf16.mxu0 0
      %1516 = vmatpush2.bf16.msra.mxu0 0
      %1517 = vmatprep.subr.bf16.mxu0 0
      %1518 = vmatpush2.bf16.msra.mxu0 0
      %1519 = vmatprep.subr.bf16.mxu0 0
      %1520 = vmatpush2.bf16.msra.mxu0 0
      %1521 = vmatprep.mubr.bf16.mxu0 0
      %1522 = vmatmul.mubr.bf16.gmra.mxu0 %v1434
      %v1523 = vpop.f32.mrf.mxu0
      %v1524 = vadd.f32 %v1439, %v1523
      %v1525 = vpop.f32.mrf.mxu0
      %v1526 = vpop.f32.mrf.mxu0
      %v1527 = vpop.f32.mrf.mxu0
      %1528 = vdwg.mxu0
      %v1529 = vadd.f32 %v1524, %v1370
      %v1530 = vsel %vm1346, %v1529, 0.0
      %1531 = vadd.xlane.f32.xlu0 %v1530
      %v1532 = vpop.xlane.xlu0 %1531
      %v1533 = vmul.f32 %v1532, %v1350
      %v1534 = vsub.f32 %v1529, %v1533
      %v1535 = vmul.f32 %v1534, %v1534
      %v1536 = vsel %vm1346, %v1535, 0.0
      %1537 = vadd.xlane.f32.xlu0 %v1536
      %v1538 = vpop.xlane.xlu0 %1537
      %v1539 = vmul.f32 %v1538, %v1350
      %v1540 = vadd.f32 %v1539, 1e-05
      %v1541 = vrsqrt.pop %v1540
      %v1542 = vmul.f32 %v1534, %v1541
      %v1543 = vlaneseq
      %v1544 = vshrl.u32 %v1543, 7
      %v1545 = vsub.s32 1, %v1544
      %v1546 = vrot.slane %v645, %v1545
      %v1547 = vmul.f32 %v1542, %v1546
      %v1548 = vlaneseq
      %v1549 = vshrl.u32 %v1548, 7
      %v1550 = vsub.s32 1, %v1549
      %v1551 = vrot.slane %v646, %v1550
      %v1552 = vadd.f32 %v1547, %v1551
      %1553 = vst.msk [vmem:[#allocation2] sm:$0x1f] %vm1346, %v1552
      %s1554 = scalar_lea.vmem [#allocation2], 8
      %v1555 = vld [vmem:[%s1554] sm:$0x1f]
      %v1556 = vpack.c.bf16 %v1555, %v1555
      %v1558 = vsel %vm698, %v1556, 0
      %1560 = vmatprep.subr.bf16.mxu0 0
      %1561 = vmatpush1.bf16.msra.mxu0 0
      %1562 = vmatprep.subr.bf16.mxu0 0
      %1563 = vmatpush1.bf16.msra.mxu0 0
      %1564 = vmatprep.subr.bf16.mxu0 0
      %1565 = vmatpush1.bf16.msra.mxu0 0
      %1566 = vmatprep.subr.bf16.mxu0 0
      %1567 = vmatpush1.bf16.msra.mxu0 0
      %1568 = vmatprep.subr.bf16.mxu0 0
      %1569 = vmatpush1.bf16.msra.mxu0 0
      %1570 = vmatprep.subr.bf16.mxu0 0
      %1571 = vmatpush1.bf16.msra.mxu0 0
      %1572 = vmatprep.subr.bf16.mxu0 0
      %1573 = vmatpush1.bf16.msra.mxu0 %v695
      %1574 = vmatprep.subr.bf16.mxu0 0
      %1575 = vmatpush1.bf16.msra.mxu0 %v694
      %1576 = vmatprep.subr.bf16.mxu0 0
      %1577 = vmatpush2.bf16.msra.mxu0 0
      %1578 = vmatprep.subr.bf16.mxu0 0
      %1579 = vmatpush2.bf16.msra.mxu0 0
      %1580 = vmatprep.subr.bf16.mxu0 0
      %1581 = vmatpush2.bf16.msra.mxu0 0
      %1582 = vmatprep.subr.bf16.mxu0 0
      %1583 = vmatpush2.bf16.msra.mxu0 0
      %1584 = vmatprep.subr.bf16.mxu0 0
      %1585 = vmatpush2.bf16.msra.mxu0 0
      %1586 = vmatprep.subr.bf16.mxu0 0
      %1587 = vmatpush2.bf16.msra.mxu0 0
      %1588 = vmatprep.subr.bf16.mxu0 0
      %1589 = vmatpush2.bf16.msra.mxu0 0
      %1590 = vmatprep.subr.bf16.mxu0 0
      %1591 = vmatpush2.bf16.msra.mxu0 0
      %1592 = vmatprep.mubr.bf16.mxu0 0
      %1593 = vmatmul.mubr.bf16.gmra.mxu0 %v1558
      %v1594 = vpop.f32.mrf.mxu0
      %v1595 = vadd.f32 0.0, %v1594
      %v1596 = vpop.f32.mrf.mxu0
      %v1597 = vpop.f32.mrf.mxu0
      %v1598 = vpop.f32.mrf.mxu0
      %1599 = vdwg.mxu0
      %1600 = vmatprep.subr.bf16.mxu0 0
      %1601 = vmatpush1.bf16.msra.mxu0 0
      %1602 = vmatprep.subr.bf16.mxu0 0
      %1603 = vmatpush1.bf16.msra.mxu0 0
      %1604 = vmatprep.subr.bf16.mxu0 0
      %1605 = vmatpush1.bf16.msra.mxu0 0
      %1606 = vmatprep.subr.bf16.mxu0 0
      %1607 = vmatpush1.bf16.msra.mxu0 0
      %1608 = vmatprep.subr.bf16.mxu0 0
      %1609 = vmatpush1.bf16.msra.mxu0 0
      %1610 = vmatprep.subr.bf16.mxu0 0
      %1611 = vmatpush1.bf16.msra.mxu0 0
      %1612 = vmatprep.subr.bf16.mxu0 0
      %1613 = vmatpush1.bf16.msra.mxu0 %v751
      %1614 = vmatprep.subr.bf16.mxu0 0
      %1615 = vmatpush1.bf16.msra.mxu0 %v750
      %1616 = vmatprep.subr.bf16.mxu0 0
      %1617 = vmatpush2.bf16.msra.mxu0 0
      %1618 = vmatprep.subr.bf16.mxu0 0
      %1619 = vmatpush2.bf16.msra.mxu0 0
      %1620 = vmatprep.subr.bf16.mxu0 0
      %1621 = vmatpush2.bf16.msra.mxu0 0
      %1622 = vmatprep.subr.bf16.mxu0 0
      %1623 = vmatpush2.bf16.msra.mxu0 0
      %1624 = vmatprep.subr.bf16.mxu0 0
      %1625 = vmatpush2.bf16.msra.mxu0 0
      %1626 = vmatprep.subr.bf16.mxu0 0
      %1627 = vmatpush2.bf16.msra.mxu0 0
      %1628 = vmatprep.subr.bf16.mxu0 0
      %1629 = vmatpush2.bf16.msra.mxu0 0
      %1630 = vmatprep.subr.bf16.mxu0 0
      %1631 = vmatpush2.bf16.msra.mxu0 0
      %1632 = vmatprep.mubr.bf16.mxu0 0
      %1633 = vmatmul.mubr.bf16.gmra.mxu0 %v1558
      %v1634 = vpop.f32.mrf.mxu0
      %v1635 = vadd.f32 0.0, %v1634
      %v1636 = vpop.f32.mrf.mxu0
      %v1637 = vpop.f32.mrf.mxu0
      %v1638 = vpop.f32.mrf.mxu0
      %1639 = vdwg.mxu0
      %1640 = vmatprep.subr.bf16.mxu0 0
      %1641 = vmatpush1.bf16.msra.mxu0 0
      %1642 = vmatprep.subr.bf16.mxu0 0
      %1643 = vmatpush1.bf16.msra.mxu0 0
      %1644 = vmatprep.subr.bf16.mxu0 0
      %1645 = vmatpush1.bf16.msra.mxu0 0
      %1646 = vmatprep.subr.bf16.mxu0 0
      %1647 = vmatpush1.bf16.msra.mxu0 0
      %1648 = vmatprep.subr.bf16.mxu0 0
      %1649 = vmatpush1.bf16.msra.mxu0 0
      %1650 = vmatprep.subr.bf16.mxu0 0
      %1651 = vmatpush1.bf16.msra.mxu0 0
      %1652 = vmatprep.subr.bf16.mxu0 0
      %1653 = vmatpush1.bf16.msra.mxu0 %v803
      %1654 = vmatprep.subr.bf16.mxu0 0
      %1655 = vmatpush1.bf16.msra.mxu0 %v802
      %1656 = vmatprep.subr.bf16.mxu0 0
      %1657 = vmatpush2.bf16.msra.mxu0 0
      %1658 = vmatprep.subr.bf16.mxu0 0
      %1659 = vmatpush2.bf16.msra.mxu0 0
      %1660 = vmatprep.subr.bf16.mxu0 0
      %1661 = vmatpush2.bf16.msra.mxu0 0
      %1662 = vmatprep.subr.bf16.mxu0 0
      %1663 = vmatpush2.bf16.msra.mxu0 0
      %1664 = vmatprep.subr.bf16.mxu0 0
      %1665 = vmatpush2.bf16.msra.mxu0 0
      %1666 = vmatprep.subr.bf16.mxu0 0
      %1667 = vmatpush2.bf16.msra.mxu0 0
      %1668 = vmatprep.subr.bf16.mxu0 0
      %1669 = vmatpush2.bf16.msra.mxu0 0
      %1670 = vmatprep.subr.bf16.mxu0 0
      %1671 = vmatpush2.bf16.msra.mxu0 0
      %1672 = vmatprep.mubr.bf16.mxu0 0
      %1673 = vmatmul.mubr.bf16.gmra.mxu0 %v1558
      %v1674 = vpop.f32.mrf.mxu0
      %v1675 = vadd.f32 0.0, %v1674
      %v1676 = vpop.f32.mrf.mxu0
      %v1677 = vpop.f32.mrf.mxu0
      %v1678 = vpop.f32.mrf.mxu0
      %1679 = vdwg.mxu0
      %v1680 = vpack.c.bf16 %v1635, %v1635
      %v1682 = vand.u32 %v1680, %v873
      %1684 = vmatprep.subr.bf16.mxu0 0
      %1685 = vmatpush1.bf16.msra.mxu0 0
      %1686 = vmatprep.subr.bf16.mxu0 0
      %1687 = vmatpush1.bf16.msra.mxu0 0
      %1688 = vmatprep.subr.bf16.mxu0 0
      %1689 = vmatpush1.bf16.msra.mxu0 0
      %1690 = vmatprep.subr.bf16.mxu0 0
      %1691 = vmatpush1.bf16.msra.mxu0 0
      %1692 = vmatprep.subr.bf16.mxu0 0
      %1693 = vmatpush1.bf16.msra.mxu0 0
      %1694 = vmatprep.subr.bf16.mxu0 0
      %1695 = vmatpush1.bf16.msra.mxu0 0
      %1696 = vmatprep.subr.bf16.mxu0 0
      %1697 = vmatpush1.bf16.msra.mxu0 0
      %1698 = vmatprep.subr.bf16.mxu0 0
      %1699 = vmatpush1.bf16.msra.mxu0 %v1682
      %1700 = vmatprep.subr.bf16.mxu0 0
      %1701 = vmatpush2.bf16.msra.mxu0 0
      %1702 = vmatprep.subr.bf16.mxu0 0
      %1703 = vmatpush2.bf16.msra.mxu0 0
      %1704 = vmatprep.subr.bf16.mxu0 0
      %1705 = vmatpush2.bf16.msra.mxu0 0
      %1706 = vmatprep.subr.bf16.mxu0 0
      %1707 = vmatpush2.bf16.msra.mxu0 0
      %1708 = vmatprep.subr.bf16.mxu0 0
      %1709 = vmatpush2.bf16.msra.mxu0 0
      %1710 = vmatprep.subr.bf16.mxu0 0
      %1711 = vmatpush2.bf16.msra.mxu0 0
      %1712 = vmatprep.subr.bf16.mxu0 0
      %1713 = vmatpush2.bf16.msra.mxu0 0
      %1714 = vmatprep.subr.bf16.mxu0 0
      %1715 = vmatpush2.bf16.msra.mxu0 0
      %1716 = vmatprep.mubr.bf16.mxu0 0
      %1717 = vmatmul.mubr.bf16.gmra.mxu0 %v862
      %v1718 = vpop.f32.mrf.mxu0
      %v1719 = vadd.f32 0.0, %v1718
      %v1720 = vpop.f32.mrf.mxu0
      %v1721 = vpop.f32.mrf.mxu0
      %v1722 = vadd.f32 0.0, %v1721
      %v1723 = vpop.f32.mrf.mxu0
      %1724 = vmatprep.mubr.bf16.mxu0 0
      %1725 = vmatmul.mubr.bf16.gmra.mxu0 %v865
      %v1726 = vpop.f32.mrf.mxu0
      %v1727 = vadd.f32 0.0, %v1726
      %v1728 = vpop.f32.mrf.mxu0
      %v1729 = vpop.f32.mrf.mxu0
      %v1730 = vadd.f32 0.0, %v1729
      %v1731 = vpop.f32.mrf.mxu0
      %1732 = vmatprep.mubr.bf16.mxu0 0
      %1733 = vmatmul.mubr.bf16.gmra.mxu0 %v868
      %v1734 = vpop.f32.mrf.mxu0
      %v1735 = vadd.f32 0.0, %v1734
      %v1736 = vpop.f32.mrf.mxu0
      %v1737 = vpop.f32.mrf.mxu0
      %v1738 = vpop.f32.mrf.mxu0
      %1739 = vdwg.mxu0
      %v1740 = vmul.f32 %v1719, %v674
      %v1741 = vmul.f32 %v1722, %v675
      %v1742 = vmul.f32 %v1727, %v676
      %v1743 = vmul.f32 %v1730, %v677
      %v1744 = vmul.f32 %v1735, %v678
      %v1745 = vpack.c.bf16 %v1675, %v1675
      %v1747 = vand.u32 %v1745, %v873
      %1749 = vmatprep.subr.bf16.mxu0 0
      %1750 = vmatpush1.bf16.msra.mxu0 0
      %1751 = vmatprep.subr.bf16.mxu0 0
      %1752 = vmatpush1.bf16.msra.mxu0 0
      %1753 = vmatprep.subr.bf16.mxu0 0
      %1754 = vmatpush1.bf16.msra.mxu0 0
      %1755 = vmatprep.subr.bf16.mxu0 0
      %1756 = vmatpush1.bf16.msra.mxu0 0
      %1757 = vmatprep.subr.bf16.mxu0 0
      %1758 = vmatpush1.bf16.msra.mxu0 0
      %1759 = vmatprep.subr.bf16.mxu0 0
      %1760 = vmatpush1.bf16.msra.mxu0 0
      %1761 = vmatprep.subr.bf16.mxu0 0
      %1762 = vmatpush1.bf16.msra.mxu0 0
      %1763 = vmatprep.subr.bf16.mxu0 0
      %1764 = vmatpush1.bf16.msra.mxu0 %v1747
      %1765 = vmatprep.subr.bf16.mxu0 0
      %1766 = vmatpush2.bf16.msra.mxu0 0
      %1767 = vmatprep.subr.bf16.mxu0 0
      %1768 = vmatpush2.bf16.msra.mxu0 0
      %1769 = vmatprep.subr.bf16.mxu0 0
      %1770 = vmatpush2.bf16.msra.mxu0 0
      %1771 = vmatprep.subr.bf16.mxu0 0
      %1772 = vmatpush2.bf16.msra.mxu0 0
      %1773 = vmatprep.subr.bf16.mxu0 0
      %1774 = vmatpush2.bf16.msra.mxu0 0
      %1775 = vmatprep.subr.bf16.mxu0 0
      %1776 = vmatpush2.bf16.msra.mxu0 0
      %1777 = vmatprep.subr.bf16.mxu0 0
      %1778 = vmatpush2.bf16.msra.mxu0 0
      %1779 = vmatprep.subr.bf16.mxu0 0
      %1780 = vmatpush2.bf16.msra.mxu0 0
      %1781 = vmatprep.mubr.bf16.mxu0 0
      %1782 = vmatmul.mubr.bf16.gmra.mxu0 %v862
      %v1783 = vpop.f32.mrf.mxu0
      %v1784 = vadd.f32 0.0, %v1783
      %v1785 = vpop.f32.mrf.mxu0
      %v1786 = vpop.f32.mrf.mxu0
      %v1787 = vadd.f32 0.0, %v1786
      %v1788 = vpop.f32.mrf.mxu0
      %1789 = vmatprep.mubr.bf16.mxu0 0
      %1790 = vmatmul.mubr.bf16.gmra.mxu0 %v865
      %v1791 = vpop.f32.mrf.mxu0
      %v1792 = vadd.f32 0.0, %v1791
      %v1793 = vpop.f32.mrf.mxu0
      %v1794 = vpop.f32.mrf.mxu0
      %v1795 = vadd.f32 0.0, %v1794
      %v1796 = vpop.f32.mrf.mxu0
      %1797 = vmatprep.mubr.bf16.mxu0 0
      %1798 = vmatmul.mubr.bf16.gmra.mxu0 %v868
      %v1799 = vpop.f32.mrf.mxu0
      %v1800 = vadd.f32 0.0, %v1799
      %v1801 = vpop.f32.mrf.mxu0
      %v1802 = vpop.f32.mrf.mxu0
      %v1803 = vpop.f32.mrf.mxu0
      %1804 = vdwg.mxu0
      %v1805 = vmul.f32 %v1784, %v674
      %v1806 = vmul.f32 %v1787, %v675
      %v1807 = vmul.f32 %v1792, %v676
      %v1808 = vmul.f32 %v1795, %v677
      %v1809 = vmul.f32 %v1800, %v678
      %v1810 = vpack.c.bf16 %v1595, %v1595
      %v1811 = vpack.c.bf16 %v1741, %v1740
      %v1812 = vpack.c.bf16 %v1743, %v1742
      %v1813 = vpack.c.bf16 %v1744, %v1744
      %v1815 = vsel %vm698, %v1810, 0
      %v1818 = vsel %vm698, %v1811, 0
      %v1821 = vsel %vm698, %v1812, 0
      %v1824 = vsel %vm698, %v1813, 0
      %1826 = vmatprep.subr.bf16.mxu0 0
      %1827 = vmatpush1.bf16.xpose.msra.mxu0 0
      %1828 = vmatprep.subr.bf16.mxu0 0
      %1829 = vmatpush1.bf16.xpose.msra.mxu0 0
      %1830 = vmatprep.subr.bf16.mxu0 0
      %1831 = vmatpush1.bf16.xpose.msra.mxu0 0
      %1832 = vmatprep.subr.bf16.mxu0 0
      %1833 = vmatpush1.bf16.xpose.msra.mxu0 0
      %1834 = vmatprep.subr.bf16.mxu0 0
      %1835 = vmatpush1.bf16.xpose.msra.mxu0 0
      %1836 = vmatprep.subr.bf16.mxu0 0
      %1837 = vmatpush1.bf16.xpose.msra.mxu0 %v1824
      %1838 = vmatprep.subr.bf16.mxu0 0
      %1839 = vmatpush1.bf16.xpose.msra.mxu0 %v1821
      %1840 = vmatprep.subr.bf16.mxu0 0
      %1841 = vmatpush1.bf16.xpose.msra.mxu0 %v1818
      %1842 = vmatprep.subr.bf16.mxu0 0
      %1843 = vmatpush2.bf16.xpose.msra.mxu0 0
      %1844 = vmatprep.subr.bf16.mxu0 0
      %1845 = vmatpush2.bf16.xpose.msra.mxu0 0
      %1846 = vmatprep.subr.bf16.mxu0 0
      %1847 = vmatpush2.bf16.xpose.msra.mxu0 0
      %1848 = vmatprep.subr.bf16.mxu0 0
      %1849 = vmatpush2.bf16.xpose.msra.mxu0 0
      %1850 = vmatprep.subr.bf16.mxu0 0
      %1851 = vmatpush2.bf16.xpose.msra.mxu0 0
      %1852 = vmatprep.subr.bf16.mxu0 0
      %1853 = vmatpush2.bf16.xpose.msra.mxu0 0
      %1854 = vmatprep.subr.bf16.mxu0 0
      %1855 = vmatpush2.bf16.xpose.msra.mxu0 0
      %1856 = vmatprep.subr.bf16.mxu0 0
      %1857 = vmatpush2.bf16.xpose.msra.mxu0 0
      %1858 = vmatprep.mubr.bf16.mxu0 0
      %1859 = vmatmul.mubr.bf16.gmra.mxu0 %v1815
      %v1860 = vpop.f32.mrf.mxu0
      %v1861 = vadd.f32 0.0, %v1860
      %v1862 = vpop.f32.mrf.mxu0
      %v1863 = vpop.f32.mrf.mxu0
      %v1864 = vpop.f32.mrf.mxu0
      %1865 = vdwg.mxu0
      %v1866 = vmul.f32 %v1861, 0.5
      %v1867 = vsel %vm1060, %v1866, -inf
      %1868 = vmax.xlane.f32.xlu0 %v1867
      %v1869 = vpop.xlane.xlu0 %1868
      %v1870 = vsub.f32 %v1866, %v1869
      %v1871 = vmul.f32 %v1870, 1.442695
      %v1872 = vpow.pop %v1871
      %v1874 = vsel %vm1067, %v1872, 0
      %1876 = vmatprep.subr.mxu0 0.0
      %1877 = vmatpush1.msra.mxu0 0.0
      %1878 = vmatprep.subr.mxu0 0.0
      %1879 = vmatpush1.msra.mxu0 0.0
      %1880 = vmatprep.subr.mxu0 0.0
      %1881 = vmatpush1.msra.mxu0 0.0
      %1882 = vmatprep.subr.mxu0 0.0
      %1883 = vmatpush1.msra.mxu0 0.0
      %1884 = vmatprep.subr.mxu0 0.0
      %1885 = vmatpush1.msra.mxu0 0.0
      %1886 = vmatprep.subr.mxu0 0.0
      %1887 = vmatpush1.msra.mxu0 0.0
      %1888 = vmatprep.subr.mxu0 0.0
      %1889 = vmatpush1.msra.mxu0 0.0
      %1890 = vmatprep.subr.mxu0 0.0
      %1891 = vmatpush1.msra.mxu0 0.0
      %1892 = vmatprep.subr.mxu0 0.0
      %1893 = vmatpush1.msra.mxu0 0.0
      %1894 = vmatprep.subr.mxu0 0.0
      %1895 = vmatpush1.msra.mxu0 0.0
      %1896 = vmatprep.subr.mxu0 0.0
      %1897 = vmatpush1.msra.mxu0 0.0
      %1898 = vmatprep.subr.mxu0 0.0
      %1899 = vmatpush1.msra.mxu0 %v683
      %1900 = vmatprep.subr.mxu0 0.0
      %1901 = vmatpush1.msra.mxu0 %v682
      %1902 = vmatprep.subr.mxu0 0.0
      %1903 = vmatpush1.msra.mxu0 %v681
      %1904 = vmatprep.subr.mxu0 0.0
      %1905 = vmatpush1.msra.mxu0 %v680
      %1906 = vmatprep.subr.mxu0 0.0
      %1907 = vmatpush1.msra.mxu0 %v679
      %1908 = vmatprep.subr.mxu0 0.0
      %1909 = vmatpush2.msra.mxu0 0.0
      %1910 = vmatprep.subr.mxu0 0.0
      %1911 = vmatpush2.msra.mxu0 0.0
      %1912 = vmatprep.subr.mxu0 0.0
      %1913 = vmatpush2.msra.mxu0 0.0
      %1914 = vmatprep.subr.mxu0 0.0
      %1915 = vmatpush2.msra.mxu0 0.0
      %1916 = vmatprep.subr.mxu0 0.0
      %1917 = vmatpush2.msra.mxu0 0.0
      %1918 = vmatprep.subr.mxu0 0.0
      %1919 = vmatpush2.msra.mxu0 0.0
      %1920 = vmatprep.subr.mxu0 0.0
      %1921 = vmatpush2.msra.mxu0 0.0
      %1922 = vmatprep.subr.mxu0 0.0
      %1923 = vmatpush2.msra.mxu0 0.0
      %1924 = vmatprep.subr.mxu0 0.0
      %1925 = vmatpush2.msra.mxu0 0.0
      %1926 = vmatprep.subr.mxu0 0.0
      %1927 = vmatpush2.msra.mxu0 0.0
      %1928 = vmatprep.subr.mxu0 0.0
      %1929 = vmatpush2.msra.mxu0 0.0
      %1930 = vmatprep.subr.mxu0 0.0
      %1931 = vmatpush2.msra.mxu0 0.0
      %1932 = vmatprep.subr.mxu0 0.0
      %1933 = vmatpush2.msra.mxu0 0.0
      %1934 = vmatprep.subr.mxu0 0.0
      %1935 = vmatpush2.msra.mxu0 0.0
      %1936 = vmatprep.subr.mxu0 0.0
      %1937 = vmatpush2.msra.mxu0 0.0
      %1938 = vmatprep.subr.mxu0 0.0
      %1939 = vmatpush2.msra.mxu0 0.0
      %1940 = vmatprep.mubr.f32.mxu0 0.0
      %1941 = vmatmul.mubr.f32.gmra.mxu0 %v1874
      %v1942 = vpop.f32.mrf.mxu0
      %v1943 = vadd.f32 0.0, %v1942
      %v1944 = vpop.f32.mrf.mxu0
      %1945 = vdwg.mxu0
      %v1947 = vsel %vm1141, %v1943, 0
      %1949 = vmatprep.subr.mxu0 0.0
      %1950 = vmatpush1.xpose.msra.mxu0 0.0
      %1951 = vmatprep.subr.mxu0 0.0
      %1952 = vmatpush1.xpose.msra.mxu0 0.0
      %1953 = vmatprep.subr.mxu0 0.0
      %1954 = vmatpush1.xpose.msra.mxu0 0.0
      %1955 = vmatprep.subr.mxu0 0.0
      %1956 = vmatpush1.xpose.msra.mxu0 0.0
      %1957 = vmatprep.subr.mxu0 0.0
      %1958 = vmatpush1.xpose.msra.mxu0 0.0
      %1959 = vmatprep.subr.mxu0 0.0
      %1960 = vmatpush1.xpose.msra.mxu0 0.0
      %1961 = vmatprep.subr.mxu0 0.0
      %1962 = vmatpush1.xpose.msra.mxu0 0.0
      %1963 = vmatprep.subr.mxu0 0.0
      %1964 = vmatpush1.xpose.msra.mxu0 0.0
      %1965 = vmatprep.subr.mxu0 0.0
      %1966 = vmatpush1.xpose.msra.mxu0 0.0
      %1967 = vmatprep.subr.mxu0 0.0
      %1968 = vmatpush1.xpose.msra.mxu0 0.0
      %1969 = vmatprep.subr.mxu0 0.0
      %1970 = vmatpush1.xpose.msra.mxu0 0.0
      %1971 = vmatprep.subr.mxu0 0.0
      %1972 = vmatpush1.xpose.msra.mxu0 %v1158
      %1973 = vmatprep.subr.mxu0 0.0
      %1974 = vmatpush1.xpose.msra.mxu0 %v1155
      %1975 = vmatprep.subr.mxu0 0.0
      %1976 = vmatpush1.xpose.msra.mxu0 %v1152
      %1977 = vmatprep.subr.mxu0 0.0
      %1978 = vmatpush1.xpose.msra.mxu0 %v1149
      %1979 = vmatprep.subr.mxu0 0.0
      %1980 = vmatpush1.xpose.msra.mxu0 %v1146
      %1981 = vmatprep.subr.mxu0 0.0
      %1982 = vmatpush2.xpose.msra.mxu0 0.0
      %1983 = vmatprep.subr.mxu0 0.0
      %1984 = vmatpush2.xpose.msra.mxu0 0.0
      %1985 = vmatprep.subr.mxu0 0.0
      %1986 = vmatpush2.xpose.msra.mxu0 0.0
      %1987 = vmatprep.subr.mxu0 0.0
      %1988 = vmatpush2.xpose.msra.mxu0 0.0
      %1989 = vmatprep.subr.mxu0 0.0
      %1990 = vmatpush2.xpose.msra.mxu0 0.0
      %1991 = vmatprep.subr.mxu0 0.0
      %1992 = vmatpush2.xpose.msra.mxu0 0.0
      %1993 = vmatprep.subr.mxu0 0.0
      %1994 = vmatpush2.xpose.msra.mxu0 0.0
      %1995 = vmatprep.subr.mxu0 0.0
      %1996 = vmatpush2.xpose.msra.mxu0 0.0
      %1997 = vmatprep.subr.mxu0 0.0
      %1998 = vmatpush2.xpose.msra.mxu0 0.0
      %1999 = vmatprep.subr.mxu0 0.0
      %2000 = vmatpush2.xpose.msra.mxu0 0.0
      %2001 = vmatprep.subr.mxu0 0.0
      %2002 = vmatpush2.xpose.msra.mxu0 0.0
      %2003 = vmatprep.subr.mxu0 0.0
      %2004 = vmatpush2.xpose.msra.mxu0 0.0
      %2005 = vmatprep.subr.mxu0 0.0
      %2006 = vmatpush2.xpose.msra.mxu0 0.0
      %2007 = vmatprep.subr.mxu0 0.0
      %2008 = vmatpush2.xpose.msra.mxu0 0.0
      %2009 = vmatprep.subr.mxu0 0.0
      %2010 = vmatpush2.xpose.msra.mxu0 0.0
      %2011 = vmatprep.subr.mxu0 0.0
      %2012 = vmatpush2.xpose.msra.mxu0 0.0
      %2013 = vmatprep.mubr.f32.mxu0 0.0
      %2014 = vmatmul.mubr.f32.gmra.mxu0 %v1947
      %v2015 = vpop.f32.mrf.mxu0
      %v2016 = vadd.f32 0.0, %v2015
      %v2017 = vpop.f32.mrf.mxu0
      %2018 = vdwg.mxu0
      %v2019 = vrcp.pop %v2016
      %v2020 = vmul.f32 %v1872, %v2019
      %v2021 = vpack.c.bf16 %v2020, %v2020
      %v2022 = vpack.c.bf16 %v1806, %v1805
      %v2023 = vpack.c.bf16 %v1808, %v1807
      %v2024 = vpack.c.bf16 %v1809, %v1809
      %v2026 = vsel %vm1067, %v2021, 0
      %v2029 = vsel %vm1239, %v2024, 0
      %2031 = vmatprep.subr.bf16.mxu0 0
      %2032 = vmatpush1.bf16.msra.mxu0 0
      %2033 = vmatprep.subr.bf16.mxu0 0
      %2034 = vmatpush1.bf16.msra.mxu0 0
      %2035 = vmatprep.subr.bf16.mxu0 0
      %2036 = vmatpush1.bf16.msra.mxu0 0
      %2037 = vmatprep.subr.bf16.mxu0 0
      %2038 = vmatpush1.bf16.msra.mxu0 0
      %2039 = vmatprep.subr.bf16.mxu0 0
      %2040 = vmatpush1.bf16.msra.mxu0 0
      %2041 = vmatprep.subr.bf16.mxu0 0
      %2042 = vmatpush1.bf16.msra.mxu0 %v2029
      %2043 = vmatprep.subr.bf16.mxu0 0
      %2044 = vmatpush1.bf16.msra.mxu0 %v2023
      %2045 = vmatprep.subr.bf16.mxu0 0
      %2046 = vmatpush1.bf16.msra.mxu0 %v2022
      %2047 = vmatprep.subr.bf16.mxu0 0
      %2048 = vmatpush2.bf16.msra.mxu0 0
      %2049 = vmatprep.subr.bf16.mxu0 0
      %2050 = vmatpush2.bf16.msra.mxu0 0
      %2051 = vmatprep.subr.bf16.mxu0 0
      %2052 = vmatpush2.bf16.msra.mxu0 0
      %2053 = vmatprep.subr.bf16.mxu0 0
      %2054 = vmatpush2.bf16.msra.mxu0 0
      %2055 = vmatprep.subr.bf16.mxu0 0
      %2056 = vmatpush2.bf16.msra.mxu0 0
      %2057 = vmatprep.subr.bf16.mxu0 0
      %2058 = vmatpush2.bf16.msra.mxu0 0
      %2059 = vmatprep.subr.bf16.mxu0 0
      %2060 = vmatpush2.bf16.msra.mxu0 0
      %2061 = vmatprep.subr.bf16.mxu0 0
      %2062 = vmatpush2.bf16.msra.mxu0 0
      %2063 = vmatprep.mubr.bf16.mxu0 0
      %2064 = vmatmul.mubr.bf16.gmra.mxu0 %v2026
      %v2065 = vpop.f32.mrf.mxu0
      %v2066 = vadd.f32 0.0, %v2065
      %v2067 = vpop.f32.mrf.mxu0
      %v2068 = vpop.f32.mrf.mxu0
      %v2069 = vpop.f32.mrf.mxu0
      %2070 = vdwg.mxu0
      %v2071 = vpack.c.bf16 %v2066, %v2066
      %v2073 = vsel %vm698, %v2071, 0
      %2075 = vmatprep.subr.bf16.mxu0 0
      %2076 = vmatpush1.bf16.msra.mxu0 0
      %2077 = vmatprep.subr.bf16.mxu0 0
      %2078 = vmatpush1.bf16.msra.mxu0 0
      %2079 = vmatprep.subr.bf16.mxu0 0
      %2080 = vmatpush1.bf16.msra.mxu0 0
      %2081 = vmatprep.subr.bf16.mxu0 0
      %2082 = vmatpush1.bf16.msra.mxu0 0
      %2083 = vmatprep.subr.bf16.mxu0 0
      %2084 = vmatpush1.bf16.msra.mxu0 0
      %2085 = vmatprep.subr.bf16.mxu0 0
      %2086 = vmatpush1.bf16.msra.mxu0 0
      %2087 = vmatprep.subr.bf16.mxu0 0
      %2088 = vmatpush1.bf16.msra.mxu0 %v1299
      %2089 = vmatprep.subr.bf16.mxu0 0
      %2090 = vmatpush1.bf16.msra.mxu0 %v1298
      %2091 = vmatprep.subr.bf16.mxu0 0
      %2092 = vmatpush2.bf16.msra.mxu0 0
      %2093 = vmatprep.subr.bf16.mxu0 0
      %2094 = vmatpush2.bf16.msra.mxu0 0
      %2095 = vmatprep.subr.bf16.mxu0 0
      %2096 = vmatpush2.bf16.msra.mxu0 0
      %2097 = vmatprep.subr.bf16.mxu0 0
      %2098 = vmatpush2.bf16.msra.mxu0 0
      %2099 = vmatprep.subr.bf16.mxu0 0
      %2100 = vmatpush2.bf16.msra.mxu0 0
      %2101 = vmatprep.subr.bf16.mxu0 0
      %2102 = vmatpush2.bf16.msra.mxu0 0
      %2103 = vmatprep.subr.bf16.mxu0 0
      %2104 = vmatpush2.bf16.msra.mxu0 0
      %2105 = vmatprep.subr.bf16.mxu0 0
      %2106 = vmatpush2.bf16.msra.mxu0 0
      %2107 = vmatprep.mubr.bf16.mxu0 0
      %2108 = vmatmul.mubr.bf16.gmra.mxu0 %v2073
      %v2109 = vpop.f32.mrf.mxu0
      %v2110 = vadd.f32 %v1288, %v2109
      %v2111 = vpop.f32.mrf.mxu0
      %v2112 = vpop.f32.mrf.mxu0
      %v2113 = vpop.f32.mrf.mxu0
      %2114 = vdwg.mxu0
      %v2115 = vadd.f32 %v2110, %v1555
      %v2116 = vsel %vm1346, %v2115, 0.0
      %2117 = vadd.xlane.f32.xlu0 %v2116
      %v2118 = vpop.xlane.xlu0 %2117
      %v2119 = vmul.f32 %v2118, %v1350
      %v2120 = vsub.f32 %v2115, %v2119
      %v2121 = vmul.f32 %v2120, %v2120
      %v2122 = vsel %vm1346, %v2121, 0.0
      %2123 = vadd.xlane.f32.xlu0 %v2122
      %v2124 = vpop.xlane.xlu0 %2123
      %v2125 = vmul.f32 %v2124, %v1350
      %v2126 = vadd.f32 %v2125, 1e-05
      %v2127 = vrsqrt.pop %v2126
      %v2128 = vmul.f32 %v2120, %v2127
      %v2129 = vmul.f32 %v2128, %v1364
      %v2130 = vadd.f32 %v2129, %v1369
      %v2131 = vpack.c.bf16 %v2130, %v2130
      %v2133 = vsel %vm698, %v2131, 0
      %2135 = vmatprep.subr.bf16.mxu0 0
      %2136 = vmatpush1.bf16.msra.mxu0 0
      %2137 = vmatprep.subr.bf16.mxu0 0
      %2138 = vmatpush1.bf16.msra.mxu0 0
      %2139 = vmatprep.subr.bf16.mxu0 0
      %2140 = vmatpush1.bf16.msra.mxu0 0
      %2141 = vmatprep.subr.bf16.mxu0 0
      %2142 = vmatpush1.bf16.msra.mxu0 0
      %2143 = vmatprep.subr.bf16.mxu0 0
      %2144 = vmatpush1.bf16.msra.mxu0 0
      %2145 = vmatprep.subr.bf16.mxu0 0
      %2146 = vmatpush1.bf16.msra.mxu0 0
      %2147 = vmatprep.subr.bf16.mxu0 0
      %2148 = vmatpush1.bf16.msra.mxu0 %v1387
      %2149 = vmatprep.subr.bf16.mxu0 0
      %2150 = vmatpush1.bf16.msra.mxu0 %v1386
      %2151 = vmatprep.subr.bf16.mxu0 0
      %2152 = vmatpush2.bf16.msra.mxu0 0
      %2153 = vmatprep.subr.bf16.mxu0 0
      %2154 = vmatpush2.bf16.msra.mxu0 0
      %2155 = vmatprep.subr.bf16.mxu0 0
      %2156 = vmatpush2.bf16.msra.mxu0 0
      %2157 = vmatprep.subr.bf16.mxu0 0
      %2158 = vmatpush2.bf16.msra.mxu0 0
      %2159 = vmatprep.subr.bf16.mxu0 0
      %2160 = vmatpush2.bf16.msra.mxu0 0
      %2161 = vmatprep.subr.bf16.mxu0 0
      %2162 = vmatpush2.bf16.msra.mxu0 0
      %2163 = vmatprep.subr.bf16.mxu0 0
      %2164 = vmatpush2.bf16.msra.mxu0 0
      %2165 = vmatprep.subr.bf16.mxu0 0
      %2166 = vmatpush2.bf16.msra.mxu0 0
      %2167 = vmatprep.mubr.bf16.mxu0 0
      %2168 = vmatmul.mubr.bf16.gmra.mxu0 %v2133
      %v2169 = vpop.f32.mrf.mxu0
      %v2170 = vadd.f32 %v1376, %v2169
      %v2171 = vpop.f32.mrf.mxu0
      %v2172 = vpop.f32.mrf.mxu0
      %v2173 = vpop.f32.mrf.mxu0
      %2174 = vdwg.mxu0
      %v2175 = vmax.f32 %v2170, 0.0
      %v2176 = vpack.c.bf16 %v2175, %v2175
      %2177 = vmatprep.subr.bf16.mxu0 0
      %2178 = vmatpush1.bf16.msra.mxu0 %v1480
      %2179 = vmatprep.subr.bf16.mxu0 0
      %2180 = vmatpush1.bf16.msra.mxu0 %v1479
      %2181 = vmatprep.subr.bf16.mxu0 0
      %2182 = vmatpush1.bf16.msra.mxu0 %v1478
      %2183 = vmatprep.subr.bf16.mxu0 0
      %2184 = vmatpush1.bf16.msra.mxu0 %v1477
      %2185 = vmatprep.subr.bf16.mxu0 0
      %2186 = vmatpush1.bf16.msra.mxu0 %v1476
      %2187 = vmatprep.subr.bf16.mxu0 0
      %2188 = vmatpush1.bf16.msra.mxu0 %v1475
      %2189 = vmatprep.subr.bf16.mxu0 0
      %2190 = vmatpush1.bf16.msra.mxu0 %v1474
      %2191 = vmatprep.subr.bf16.mxu0 0
      %2192 = vmatpush1.bf16.msra.mxu0 %v1473
      %2193 = vmatprep.subr.bf16.mxu0 0
      %2194 = vmatpush2.bf16.msra.mxu0 0
      %2195 = vmatprep.subr.bf16.mxu0 0
      %2196 = vmatpush2.bf16.msra.mxu0 0
      %2197 = vmatprep.subr.bf16.mxu0 0
      %2198 = vmatpush2.bf16.msra.mxu0 0
      %2199 = vmatprep.subr.bf16.mxu0 0
      %2200 = vmatpush2.bf16.msra.mxu0 0
      %2201 = vmatprep.subr.bf16.mxu0 0
      %2202 = vmatpush2.bf16.msra.mxu0 0
      %2203 = vmatprep.subr.bf16.mxu0 0
      %2204 = vmatpush2.bf16.msra.mxu0 0
      %2205 = vmatprep.subr.bf16.mxu0 0
      %2206 = vmatpush2.bf16.msra.mxu0 0
      %2207 = vmatprep.subr.bf16.mxu0 0
      %2208 = vmatpush2.bf16.msra.mxu0 0
      %2209 = vmatprep.mubr.bf16.mxu0 0
      %2210 = vmatmul.mubr.bf16.gmra.mxu0 %v2176
      %v2211 = vpop.f32.mrf.mxu0
      %v2212 = vadd.f32 %v1439, %v2211
      %v2213 = vpop.f32.mrf.mxu0
      %v2214 = vpop.f32.mrf.mxu0
      %v2215 = vpop.f32.mrf.mxu0
      %2216 = vdwg.mxu0
      %v2217 = vadd.f32 %v2212, %v2130
      %v2218 = vsel %vm1346, %v2217, 0.0
      %2219 = vadd.xlane.f32.xlu0 %v2218
      %v2220 = vpop.xlane.xlu0 %2219
      %v2221 = vmul.f32 %v2220, %v1350
      %v2222 = vsub.f32 %v2217, %v2221
      %v2223 = vmul.f32 %v2222, %v2222
      %v2224 = vsel %vm1346, %v2223, 0.0
      %2225 = vadd.xlane.f32.xlu0 %v2224
      %v2226 = vpop.xlane.xlu0 %2225
      %v2227 = vmul.f32 %v2226, %v1350
      %v2228 = vadd.f32 %v2227, 1e-05
      %v2229 = vrsqrt.pop %v2228
      %v2230 = vmul.f32 %v2222, %v2229
      %v2231 = vmul.f32 %v2230, %v1546
      %v2232 = vadd.f32 %v2231, %v1551
      %2233 = vst.msk [vmem:[%s1554] sm:$0x1f] %vm1346, %v2232
      %p2234 = scmp.eq.s32.totalorder %s26, 1
      // Predicated region
      $region85: #{tpu_custom_call.1} parent=79 // pred_check
        %p2235 = pneg %p2234
      $region86: #{tpu_custom_call.1} parent=79 // pred_check_branch
        %2237 = sbr.rel (%p2235) target = $region88
      $region87: #{tpu_custom_call.1} parent=79 // pred_region
        %v2238 = vld [vmem:[#allocation2] sm:$0x1f]
        %v2239 = vld [vmem:[%s10] sm:$0x1]
        %v2240 = vld [vmem:[%s11] sm:$0x1]
        %v2241 = vsel %vm1346, %v2238, 0.0
        %2242 = vadd.xlane.f32.xlu0 %v2241
        %v2243 = vpop.xlane.xlu0 %2242
        %v2244 = vmul.f32 %v2243, %v1350
        %v2245 = vsub.f32 %v2238, %v2244
        %v2246 = vmul.f32 %v2245, %v2245
        %v2247 = vsel %vm1346, %v2246, 0.0
        %2248 = vadd.xlane.f32.xlu0 %v2247
        %v2249 = vpop.xlane.xlu0 %2248
        %v2250 = vmul.f32 %v2249, %v1350
        %v2251 = vadd.f32 %v2250, 1e-06
        %v2252 = vrsqrt.pop %v2251
        %v2253 = vmul.f32 %v2245, %v2252
        %v2255 = vlaneseq
        %v2256 = vshrl.u32 %v2255, 7
        %v2257 = vsub.s32 0, %v2256
        %v2258 = vrot.slane %v2239, %v2257
        %v2260 = vmul.f32 %v2253, %v2258
        %v2262 = vlaneseq
        %v2263 = vshrl.u32 %v2262, 7
        %v2264 = vsub.s32 0, %v2263
        %v2265 = vrot.slane %v2240, %v2264
        %v2267 = vadd.f32 %v2260, %v2265
        %2268 = vst.msk [vmem:[%s15] sm:$0x1f] %vm1346, %v2267
        %v2269 = vld [vmem:[%s1554] sm:$0x1f]
        %v2270 = vld [vmem:[%s10] sm:$0x1]
        %v2271 = vld [vmem:[%s11] sm:$0x1]
        %v2272 = vsel %vm1346, %v2269, 0.0
        %2273 = vadd.xlane.f32.xlu0 %v2272
        %v2274 = vpop.xlane.xlu0 %2273
        %v2275 = vmul.f32 %v2274, %v1350
        %v2276 = vsub.f32 %v2269, %v2275
        %v2277 = vmul.f32 %v2276, %v2276
        %v2278 = vsel %vm1346, %v2277, 0.0
        %2279 = vadd.xlane.f32.xlu0 %v2278
        %v2280 = vpop.xlane.xlu0 %2279
        %v2281 = vmul.f32 %v2280, %v1350
        %v2282 = vadd.f32 %v2281, 1e-06
        %v2283 = vrsqrt.pop %v2282
        %v2284 = vmul.f32 %v2276, %v2283
        %v2286 = vlaneseq
        %v2287 = vshrl.u32 %v2286, 7
        %v2288 = vsub.s32 0, %v2287
        %v2289 = vrot.slane %v2270, %v2288
        %v2291 = vmul.f32 %v2284, %v2289
        %v2293 = vlaneseq
        %v2294 = vshrl.u32 %v2293, 7
        %v2295 = vsub.s32 0, %v2294
        %v2296 = vrot.slane %v2271, %v2295
        %v2298 = vadd.f32 %v2291, %v2296
        %s2299 = scalar_lea.vmem %s15, 8
        %2300 = vst.msk [vmem:[%s2299] sm:$0x1f] %vm1346, %v2298
      $region88: #{tpu_custom_call.1} parent=79 // pred_fallthru
        _
      // Predicated region
      $region89: #{tpu_custom_call.1} parent=79 // pred_check
        %p2301 = pneg %p399
      $region90: #{tpu_custom_call.1} parent=79 // pred_check_branch
        %2303 = sbr.rel (%p2301) target = $region92
      $region91: #{tpu_custom_call.1} parent=79 // pred_region
        _
      $region92: #{tpu_custom_call.1} parent=79 // pred_fallthru
        _
      // Predicated region
      $region93: #{tpu_custom_call.1} parent=79 // pred_check
        %p2304 = pneg %p399
      $region94: #{tpu_custom_call.1} parent=79 // pred_check_branch
        %2306 = sbr.rel (%p2304) target = $region96
      $region95: #{tpu_custom_call.1} parent=79 // pred_region
        _
      $region96: #{tpu_custom_call.1} parent=79 // pred_fallthru
        _
    $region80: #{tpu_custom_call.1} parent=5 // pred_fallthru
      _
    %p2307 = scmp.le.s32.totalorder 2, %s21
    // Predicated region
    $region97: #{tpu_custom_call.1} parent=5 // pred_check
      %p2308 = pneg %p2307
    $region98: #{tpu_custom_call.1} parent=5 // pred_check_branch
      %2310 = sbr.rel (%p2308) target = $region100
    $region99: #{tpu_custom_call.1} parent=5 // pred_region
      %s2311 = ssub.s32 %s21, 2
    $region100: #{tpu_custom_call.1} parent=5 // pred_fallthru
      _
  $region6: #{tpu_custom_call.1} parent=0 // loop_footer
    %s25 = sadd.s32 1, %s21
  $region7: #{tpu_custom_call.1} parent=0 // loop_footer_branch
    %20 = sbr.rel target = $region3
  $region8: #{tpu_custom_call.1} parent=0 // loop_exit
    _

</llo_original>
